<compile_context>
chip_gen: v7x
topology: tpu7x:2x2x1
jax: 0.10.0
libtpu: 0.0.40
codegen_flags: <defaults>
</compile_context>

<pallas_src>
import jax
import jax.numpy as jnp
from jax.experimental import pallas as pl
from jax.experimental.pallas import tpu as pltpu

B = 2        # batch
S_SRC = 8    # source sequence length
T_TRG = 6    # target sequence length
EMB = 16     # embedding dim
HID = 32     # GRU hidden dim (encoder == decoder)
ATT = 32     # attention energy dim
V_SRC = 30   # source vocab size
V_TRG = 24   # target vocab size (decoder.output_dim)


# ------------------------- fused Seq2Seq kernel ----------------------------- #
def seq2seq_kernel(src_emb_ref, trg_emb_ref, tf_ref, dec_emb_ref,
                   wih_e_ref, whh_e_ref, bih_e_ref, bhh_e_ref,
                   wah_ref, wae_ref, ba_ref, v_ref,
                   wix_d_ref, whh_d_ref, bih_d_ref, bhh_d_ref,
                   wout_ref, bo_ref,
                   out_ref):
    f32, bf16 = jnp.float32, jnp.bfloat16
    Bb, S, E = src_emb_ref.shape
    T = trg_emb_ref.shape[1]
    H = whh_e_ref.shape[0]
    A = wah_ref.shape[1]
    V = bo_ref.shape[1]

    def mm(a, w_bf16):
        # bf16 operands -> single MXU pass; f32 accumulation.
        return jnp.dot(a.astype(bf16), w_bf16, preferred_element_type=f32)

    # ---- load weights once (bf16 for the MXU), biases stay f32 -------------
    wih_e = wih_e_ref[...].astype(bf16)      # (E, 3H)
    whh_e = whh_e_ref[...].astype(bf16)      # (H, 3H)
    bih_e = bih_e_ref[...]                   # (1, 3H)
    bhh_e = bhh_e_ref[...]                   # (1, 3H)
    wah = wah_ref[...].astype(bf16)          # (H, A)
    wae = wae_ref[...].astype(bf16)          # (H, A)
    ba = ba_ref[...]                         # (1, A)
    v_att = v_ref[...].reshape(1, 1, A)      # (1, 1, A) f32
    wix_d = wix_d_ref[...].astype(bf16)      # (E+H, 3H)
    whh_d = whh_d_ref[...].astype(bf16)      # (H, 3H)
    bih_d = bih_d_ref[...]                   # (1, 3H)
    bhh_d = bhh_d_ref[...]                   # (1, 3H)
    wout = wout_ref[...].astype(bf16)        # (2H+E, V)
    bo = bo_ref[...]                         # (1, V)
    dec_emb = dec_emb_ref[...].astype(bf16)  # (V, E)

    x_all = src_emb_ref[...]                 # (B, S, E) f32
    trg_emb_all = trg_emb_ref[...]           # (B, T, E) f32

    # ----------------------------- encoder ----------------------------------
    h = jnp.zeros((Bb, H), f32)
    enc_list, encp_list = [], []
    for s in range(S):                       # fully unrolled (S static)
        x_t = x_all[:, s, :]                                     # (B, E)
        gi = mm(x_t, wih_e) + bih_e                              # (B, 3H)
        gh = mm(h, whh_e) + bhh_e                                # (B, 3H)
        r = jax.nn.sigmoid(gi[:, 0:H] + gh[:, 0:H])
        z = jax.nn.sigmoid(gi[:, H:2 * H] + gh[:, H:2 * H])
        n = jnp.tanh(gi[:, 2 * H:3 * H] + r * gh[:, 2 * H:3 * H])
        h = (1.0 - z) * n + z * h
        enc_list.append(h)
        encp_list.append(mm(h, wae) + ba)    # hoisted attention projection

    enc = jnp.stack(enc_list, axis=1)        # (B, S, H) vreg-resident
    enc_proj = jnp.stack(encp_list, axis=1)  # (B, S, A) loop-invariant

    # ----------------------------- decoder ----------------------------------
    iota_v = jax.lax.broadcasted_iota(jnp.int32, (Bb, V), 1)
    emb = trg_emb_all[:, 0, :]               # <sos> embedding, plain load
    logits_list = [jnp.zeros((Bb, V), f32)]  # t = 0 row stays zero (torch.zeros)

    for t in range(1, T):                    # fully unrolled (T static)
        # Bahdanau attention, lane-friendly (B, S, .) layout
        h_proj = mm(h, wah)                                      # (B, A)
        energy = jnp.tanh(enc_proj + h_proj[:, None, :])         # (B, S, A)
        scores = jnp.sum(energy * v_att, axis=2)                 # (B, S)
        scores = scores - jnp.max(scores, axis=1, keepdims=True)
        e_s = jnp.exp(scores)
        attw = e_s / jnp.sum(e_s, axis=1, keepdims=True)         # exact softmax
        context = jnp.sum(attw[:, :, None] * enc, axis=1)        # (B, H)

        # GRU cell: fused [emb ; context] input dot + fused hidden dot
        xcat = jnp.concatenate([emb, context], axis=1)           # (B, E+H)
        gi = mm(xcat, wix_d) + bih_d                             # (B, 3H)
        gh = mm(h, whh_d) + bhh_d                                # (B, 3H)
        r = jax.nn.sigmoid(gi[:, 0:H] + gh[:, 0:H])
        z = jax.nn.sigmoid(gi[:, H:2 * H] + gh[:, H:2 * H])
        n = jnp.tanh(gi[:, 2 * H:3 * H] + r * gh[:, 2 * H:3 * H])
        h = (1.0 - z) * n + z * h

        # fused output projection fc([gru_out ; context ; emb]) -> vocab
        ocat = jnp.concatenate([h, context, emb], axis=1)        # (B, 2H+E)
        logits = mm(ocat, wout) + bo                             # (B, V)
        logits_list.append(logits)

        # next input: teacher forcing (SMEM coin) vs greedy argmax
        mx = jnp.max(logits, axis=1, keepdims=True)
        pred_idx = jnp.min(jnp.where(logits >= mx, iota_v, V),
                           axis=1, keepdims=True)                # first argmax
        pred_onehot = (iota_v == pred_idx).astype(f32)           # (B, V)
        greedy_emb = mm(pred_onehot, dec_emb)                    # (B, E)
        emb = jnp.where(tf_ref[t] > 0, trg_emb_all[:, t, :], greedy_emb)

    # one dense (B, T, V) writeback
    out_ref[...] = jnp.stack(logits_list, axis=1)


def run_seq2seq(src_emb, trg_emb, tf_mask, p):
    Bb, T = trg_emb.shape[0], trg_emb.shape[1]
    V = p['bo'].shape[1]

    vmem = pl.BlockSpec(memory_space=pltpu.MemorySpace.VMEM)
    smem = pl.BlockSpec(memory_space=pltpu.MemorySpace.SMEM)

    inputs = (src_emb, trg_emb, tf_mask, p['dec_emb'],
              p['wih_e'], p['whh_e'], p['bih_e'], p['bhh_e'],
              p['wah'], p['wae'], p['ba'], p['v'],
              p['wix_d'], p['whh_d'], p['bih_d'], p['bhh_d'],
              p['wout'], p['bo'])
    in_specs = [vmem, vmem, smem] + [vmem] * (len(inputs) - 3)

    return pl.pallas_call(
        seq2seq_kernel,
        out_shape=jax.ShapeDtypeStruct((Bb, T, V), jnp.float32),
        in_specs=in_specs,
        out_specs=vmem,
    )(*inputs)


# ------------------------------- parameters --------------------------------- #
def init_params(key):
    ks = iter(jax.random.split(key, 24))
    s = 0.1

    def rnd(shape):
        return (jax.random.normal(next(ks), shape) * s).astype(jnp.float32)

    return {
        'enc_emb': rnd((V_SRC, EMB)),
        'dec_emb': rnd((V_TRG, EMB)),
        # encoder GRU, gates fused along N in order [r | z | n]
        'wih_e': rnd((EMB, 3 * HID)),
        'whh_e': rnd((HID, 3 * HID)),
        'bih_e': rnd((1, 3 * HID)),
        'bhh_e': rnd((1, 3 * HID)),
        # attention (W_a split into hidden / encoder parts; v)
        'wah': rnd((HID, ATT)),
        'wae': rnd((HID, ATT)),
        'ba': rnd((1, ATT)),
        'v': rnd((1, ATT)),
        # decoder GRU: input = [emb ; context], K-fused; gates fused along N
        'wix_d': rnd((EMB + HID, 3 * HID)),
        'whh_d': rnd((HID, 3 * HID)),
        'bih_d': rnd((1, 3 * HID)),
        'bhh_d': rnd((1, 3 * HID)),
        # output fc([gru_out ; context ; emb]) -> vocab, K-fused
        'wout': rnd((2 * HID + EMB, V_TRG)),
        'bo': rnd((1, V_TRG)),
    }


# ------------------------------ Seq2Seq.forward ------------------------------ #
@jax.jit
def seq2seq_forward(src, trg, tf_mask, p):
    # embedding gathers stay in the wrapper (one-shot, loop-invariant);
    # everything else runs inside the single fused kernel.
    src_emb = jnp.take(p['enc_emb'], src, axis=0)        # (B, S, E)
    trg_emb = jnp.take(p['dec_emb'], trg, axis=0)        # (B, T, E)
    return run_seq2seq(src_emb, trg_emb, tf_mask, p)


if __name__ == "__main__":
    key = jax.random.PRNGKey(0)
    kp, ksrc, ktrg, ktf = jax.random.split(key, 4)
    params = init_params(kp)
    src = jax.random.randint(ksrc, (B, S_SRC), 0, V_SRC, dtype=jnp.int32)
    trg = jax.random.randint(ktrg, (B, T_TRG), 0, V_TRG, dtype=jnp.int32)

    # precomputed stand-in for the per-step torch.rand(1) teacher-forcing coins
    coins = jax.random.uniform(ktf, (T_TRG,))
    tf_mask = (coins < 0.5).astype(jnp.int32)

    out = seq2seq_forward(src, trg, tf_mask, params)
    out = jax.block_until_ready(out)
    assert out.shape == (B, T_TRG, V_TRG), out.shape
    assert bool(jnp.all(jnp.isfinite(out)))
    print("KERNEL_OK")
</pallas_src>

<mosaic_0001>
module attributes {stable_mosaic.version = 11 : i64} {
  func.func @seq2seq_kernel(%arg0: memref<2x8x16xf32, #tpu.memory_space<vmem>>, %arg1: memref<2x6x16xf32, #tpu.memory_space<vmem>>, %arg2: memref<6xi32, #tpu.memory_space<smem>>, %arg3: memref<24x16xf32, #tpu.memory_space<vmem>>, %arg4: memref<16x96xf32, #tpu.memory_space<vmem>>, %arg5: memref<32x96xf32, #tpu.memory_space<vmem>>, %arg6: memref<1x96xf32, #tpu.memory_space<vmem>>, %arg7: memref<1x96xf32, #tpu.memory_space<vmem>>, %arg8: memref<32x32xf32, #tpu.memory_space<vmem>>, %arg9: memref<32x32xf32, #tpu.memory_space<vmem>>, %arg10: memref<1x32xf32, #tpu.memory_space<vmem>>, %arg11: memref<1x32xf32, #tpu.memory_space<vmem>>, %arg12: memref<48x96xf32, #tpu.memory_space<vmem>>, %arg13: memref<32x96xf32, #tpu.memory_space<vmem>>, %arg14: memref<1x96xf32, #tpu.memory_space<vmem>>, %arg15: memref<1x96xf32, #tpu.memory_space<vmem>>, %arg16: memref<80x24xf32, #tpu.memory_space<vmem>>, %arg17: memref<1x24xf32, #tpu.memory_space<vmem>>, %arg18: memref<2x6x24xf32, #tpu.memory_space<vmem>>) attributes {dimension_semantics = [], scalar_prefetch = 0 : i64, scratch_operands = 0 : i64, tpu.core_type = #tpu.core_type<tc>} {
    %c0 = arith.constant 0 : index
    %c0_0 = arith.constant 0 : index
    %0 = vector.load %arg4[%c0, %c0_0] : memref<16x96xf32, #tpu.memory_space<vmem>>, vector<16x96xf32>
    %1 = arith.truncf %0 : vector<16x96xf32> to vector<16x96xbf16>
    %c0_1 = arith.constant 0 : index
    %c0_2 = arith.constant 0 : index
    %2 = vector.load %arg5[%c0_1, %c0_2] : memref<32x96xf32, #tpu.memory_space<vmem>>, vector<32x96xf32>
    %3 = arith.truncf %2 : vector<32x96xf32> to vector<32x96xbf16>
    %c0_3 = arith.constant 0 : index
    %c0_4 = arith.constant 0 : index
    %4 = vector.load %arg6[%c0_3, %c0_4] : memref<1x96xf32, #tpu.memory_space<vmem>>, vector<1x96xf32>
    %c0_5 = arith.constant 0 : index
    %c0_6 = arith.constant 0 : index
    %5 = vector.load %arg7[%c0_5, %c0_6] : memref<1x96xf32, #tpu.memory_space<vmem>>, vector<1x96xf32>
    %c0_7 = arith.constant 0 : index
    %c0_8 = arith.constant 0 : index
    %6 = vector.load %arg8[%c0_7, %c0_8] : memref<32x32xf32, #tpu.memory_space<vmem>>, vector<32x32xf32>
    %7 = arith.truncf %6 : vector<32x32xf32> to vector<32x32xbf16>
    %c0_9 = arith.constant 0 : index
    %c0_10 = arith.constant 0 : index
    %8 = vector.load %arg9[%c0_9, %c0_10] : memref<32x32xf32, #tpu.memory_space<vmem>>, vector<32x32xf32>
    %9 = arith.truncf %8 : vector<32x32xf32> to vector<32x32xbf16>
    %c0_11 = arith.constant 0 : index
    %c0_12 = arith.constant 0 : index
    %10 = vector.load %arg10[%c0_11, %c0_12] : memref<1x32xf32, #tpu.memory_space<vmem>>, vector<1x32xf32>
    %c0_13 = arith.constant 0 : index
    %c0_14 = arith.constant 0 : index
    %11 = vector.load %arg11[%c0_13, %c0_14] : memref<1x32xf32, #tpu.memory_space<vmem>>, vector<1x32xf32>
    %12 = vector.shape_cast %11 : vector<1x32xf32> to vector<1x1x32xf32>
    %c0_15 = arith.constant 0 : index
    %c0_16 = arith.constant 0 : index
    %13 = vector.load %arg12[%c0_15, %c0_16] : memref<48x96xf32, #tpu.memory_space<vmem>>, vector<48x96xf32>
    %14 = arith.truncf %13 : vector<48x96xf32> to vector<48x96xbf16>
    %c0_17 = arith.constant 0 : index
    %c0_18 = arith.constant 0 : index
    %15 = vector.load %arg13[%c0_17, %c0_18] : memref<32x96xf32, #tpu.memory_space<vmem>>, vector<32x96xf32>
    %16 = arith.truncf %15 : vector<32x96xf32> to vector<32x96xbf16>
    %c0_19 = arith.constant 0 : index
    %c0_20 = arith.constant 0 : index
    %17 = vector.load %arg14[%c0_19, %c0_20] : memref<1x96xf32, #tpu.memory_space<vmem>>, vector<1x96xf32>
    %c0_21 = arith.constant 0 : index
    %c0_22 = arith.constant 0 : index
    %18 = vector.load %arg15[%c0_21, %c0_22] : memref<1x96xf32, #tpu.memory_space<vmem>>, vector<1x96xf32>
    %c0_23 = arith.constant 0 : index
    %c0_24 = arith.constant 0 : index
    %19 = vector.load %arg16[%c0_23, %c0_24] : memref<80x24xf32, #tpu.memory_space<vmem>>, vector<80x24xf32>
    %20 = arith.truncf %19 : vector<80x24xf32> to vector<80x24xbf16>
    %c0_25 = arith.constant 0 : index
    %c0_26 = arith.constant 0 : index
    %21 = vector.load %arg17[%c0_25, %c0_26] : memref<1x24xf32, #tpu.memory_space<vmem>>, vector<1x24xf32>
    %c0_27 = arith.constant 0 : index
    %c0_28 = arith.constant 0 : index
    %22 = vector.load %arg3[%c0_27, %c0_28] : memref<24x16xf32, #tpu.memory_space<vmem>>, vector<24x16xf32>
    %23 = arith.truncf %22 : vector<24x16xf32> to vector<24x16xbf16>
    %c0_29 = arith.constant 0 : index
    %c0_30 = arith.constant 0 : index
    %c0_31 = arith.constant 0 : index
    %24 = vector.load %arg0[%c0_29, %c0_30, %c0_31] : memref<2x8x16xf32, #tpu.memory_space<vmem>>, vector<2x8x16xf32>
    %c0_32 = arith.constant 0 : index
    %c0_33 = arith.constant 0 : index
    %c0_34 = arith.constant 0 : index
    %25 = vector.load %arg1[%c0_32, %c0_33, %c0_34] : memref<2x6x16xf32, #tpu.memory_space<vmem>>, vector<2x6x16xf32>
    %cst = arith.constant 0.000000e+00 : f32
    %26 = vector.broadcast %cst : f32 to vector<2x32xf32>
    %27 = vector.extract_strided_slice %24 {offsets = [0, 0, 0], sizes = [2, 1, 16], strides = [1, 1, 1]} : vector<2x8x16xf32> to vector<2x1x16xf32>
    %28 = vector.shape_cast %27 : vector<2x1x16xf32> to vector<2x16xf32>
    %29 = arith.truncf %28 : vector<2x16xf32> to vector<2x16xbf16>
    %cst_35 = arith.constant dense<0.000000e+00> : vector<2x96xf32>
    %30 = tpu.matmul %29, %1, %cst_35 {dimension_numbers = #tpu.dot_dimension_numbers<[1], [0], [0], [1], [0, 0, 1, 1], [], []>} : vector<2x16xbf16>, vector<16x96xbf16>, vector<2x96xf32> -> vector<2x96xf32>
    %31 = vector.broadcast %4 : vector<1x96xf32> to vector<2x96xf32>
    %32 = arith.addf %30, %31 : vector<2x96xf32>
    %33 = arith.truncf %26 : vector<2x32xf32> to vector<2x32xbf16>
    %cst_36 = arith.constant dense<0.000000e+00> : vector<2x96xf32>
    %34 = tpu.matmul %33, %3, %cst_36 {dimension_numbers = #tpu.dot_dimension_numbers<[1], [0], [0], [1], [0, 0, 1, 1], [], []>} : vector<2x32xbf16>, vector<32x96xbf16>, vector<2x96xf32> -> vector<2x96xf32>
    %35 = vector.broadcast %5 : vector<1x96xf32> to vector<2x96xf32>
    %36 = arith.addf %34, %35 : vector<2x96xf32>
    %37 = vector.extract_strided_slice %32 {offsets = [0, 0], sizes = [2, 32], strides = [1, 1]} : vector<2x96xf32> to vector<2x32xf32>
    %38 = vector.extract_strided_slice %36 {offsets = [0, 0], sizes = [2, 32], strides = [1, 1]} : vector<2x96xf32> to vector<2x32xf32>
    %39 = arith.addf %37, %38 : vector<2x32xf32>
    %40 = arith.negf %39 : vector<2x32xf32>
    %41 = math.exp %40 : vector<2x32xf32>
    %cst_37 = arith.constant 1.000000e+00 : f32
    %42 = vector.broadcast %cst_37 : f32 to vector<2x32xf32>
    %43 = arith.addf %42, %41 : vector<2x32xf32>
    %44 = arith.divf %42, %43 : vector<2x32xf32>
    %45 = vector.extract_strided_slice %32 {offsets = [0, 32], sizes = [2, 32], strides = [1, 1]} : vector<2x96xf32> to vector<2x32xf32>
    %46 = vector.extract_strided_slice %36 {offsets = [0, 32], sizes = [2, 32], strides = [1, 1]} : vector<2x96xf32> to vector<2x32xf32>
    %47 = arith.addf %45, %46 : vector<2x32xf32>
    %48 = arith.negf %47 : vector<2x32xf32>
    %49 = math.exp %48 : vector<2x32xf32>
    %cst_38 = arith.constant 1.000000e+00 : f32
    %50 = vector.broadcast %cst_38 : f32 to vector<2x32xf32>
    %51 = arith.addf %50, %49 : vector<2x32xf32>
    %52 = arith.divf %50, %51 : vector<2x32xf32>
    %53 = vector.extract_strided_slice %32 {offsets = [0, 64], sizes = [2, 32], strides = [1, 1]} : vector<2x96xf32> to vector<2x32xf32>
    %54 = vector.extract_strided_slice %36 {offsets = [0, 64], sizes = [2, 32], strides = [1, 1]} : vector<2x96xf32> to vector<2x32xf32>
    %55 = arith.mulf %44, %54 : vector<2x32xf32>
    %56 = arith.addf %53, %55 : vector<2x32xf32>
    %57 = math.tanh %56 : vector<2x32xf32>
    %cst_39 = arith.constant 1.000000e+00 : f32
    %58 = vector.broadcast %cst_39 : f32 to vector<2x32xf32>
    %59 = arith.subf %58, %52 : vector<2x32xf32>
    %60 = arith.mulf %59, %57 : vector<2x32xf32>
    %61 = arith.mulf %52, %26 : vector<2x32xf32>
    %62 = arith.addf %60, %61 : vector<2x32xf32>
    %63 = arith.truncf %62 : vector<2x32xf32> to vector<2x32xbf16>
    %cst_40 = arith.constant dense<0.000000e+00> : vector<2x32xf32>
    %64 = tpu.matmul %63, %9, %cst_40 {dimension_numbers = #tpu.dot_dimension_numbers<[1], [0], [0], [1], [0, 0, 1, 1], [], []>} : vector<2x32xbf16>, vector<32x32xbf16>, vector<2x32xf32> -> vector<2x32xf32>
    %65 = vector.broadcast %10 : vector<1x32xf32> to vector<2x32xf32>
    %66 = arith.addf %64, %65 : vector<2x32xf32>
    %67 = vector.extract_strided_slice %24 {offsets = [0, 1, 0], sizes = [2, 1, 16], strides = [1, 1, 1]} : vector<2x8x16xf32> to vector<2x1x16xf32>
    %68 = vector.shape_cast %67 : vector<2x1x16xf32> to vector<2x16xf32>
    %69 = arith.truncf %68 : vector<2x16xf32> to vector<2x16xbf16>
    %cst_41 = arith.constant dense<0.000000e+00> : vector<2x96xf32>
    %70 = tpu.matmul %69, %1, %cst_41 {dimension_numbers = #tpu.dot_dimension_numbers<[1], [0], [0], [1], [0, 0, 1, 1], [], []>} : vector<2x16xbf16>, vector<16x96xbf16>, vector<2x96xf32> -> vector<2x96xf32>
    %71 = vector.broadcast %4 : vector<1x96xf32> to vector<2x96xf32>
    %72 = arith.addf %70, %71 : vector<2x96xf32>
    %73 = arith.truncf %62 : vector<2x32xf32> to vector<2x32xbf16>
    %cst_42 = arith.constant dense<0.000000e+00> : vector<2x96xf32>
    %74 = tpu.matmul %73, %3, %cst_42 {dimension_numbers = #tpu.dot_dimension_numbers<[1], [0], [0], [1], [0, 0, 1, 1], [], []>} : vector<2x32xbf16>, vector<32x96xbf16>, vector<2x96xf32> -> vector<2x96xf32>
    %75 = vector.broadcast %5 : vector<1x96xf32> to vector<2x96xf32>
    %76 = arith.addf %74, %75 : vector<2x96xf32>
    %77 = vector.extract_strided_slice %72 {offsets = [0, 0], sizes = [2, 32], strides = [1, 1]} : vector<2x96xf32> to vector<2x32xf32>
    %78 = vector.extract_strided_slice %76 {offsets = [0, 0], sizes = [2, 32], strides = [1, 1]} : vector<2x96xf32> to vector<2x32xf32>
    %79 = arith.addf %77, %78 : vector<2x32xf32>
    %80 = arith.negf %79 : vector<2x32xf32>
    %81 = math.exp %80 : vector<2x32xf32>
    %cst_43 = arith.constant 1.000000e+00 : f32
    %82 = vector.broadcast %cst_43 : f32 to vector<2x32xf32>
    %83 = arith.addf %82, %81 : vector<2x32xf32>
    %84 = arith.divf %82, %83 : vector<2x32xf32>
    %85 = vector.extract_strided_slice %72 {offsets = [0, 32], sizes = [2, 32], strides = [1, 1]} : vector<2x96xf32> to vector<2x32xf32>
    %86 = vector.extract_strided_slice %76 {offsets = [0, 32], sizes = [2, 32], strides = [1, 1]} : vector<2x96xf32> to vector<2x32xf32>
    %87 = arith.addf %85, %86 : vector<2x32xf32>
    %88 = arith.negf %87 : vector<2x32xf32>
    %89 = math.exp %88 : vector<2x32xf32>
    %cst_44 = arith.constant 1.000000e+00 : f32
    %90 = vector.broadcast %cst_44 : f32 to vector<2x32xf32>
    %91 = arith.addf %90, %89 : vector<2x32xf32>
    %92 = arith.divf %90, %91 : vector<2x32xf32>
    %93 = vector.extract_strided_slice %72 {offsets = [0, 64], sizes = [2, 32], strides = [1, 1]} : vector<2x96xf32> to vector<2x32xf32>
    %94 = vector.extract_strided_slice %76 {offsets = [0, 64], sizes = [2, 32], strides = [1, 1]} : vector<2x96xf32> to vector<2x32xf32>
    %95 = arith.mulf %84, %94 : vector<2x32xf32>
    %96 = arith.addf %93, %95 : vector<2x32xf32>
    %97 = math.tanh %96 : vector<2x32xf32>
    %cst_45 = arith.constant 1.000000e+00 : f32
    %98 = vector.broadcast %cst_45 : f32 to vector<2x32xf32>
    %99 = arith.subf %98, %92 : vector<2x32xf32>
    %100 = arith.mulf %99, %97 : vector<2x32xf32>
    %101 = arith.mulf %92, %62 : vector<2x32xf32>
    %102 = arith.addf %100, %101 : vector<2x32xf32>
    %103 = arith.truncf %102 : vector<2x32xf32> to vector<2x32xbf16>
    %cst_46 = arith.constant dense<0.000000e+00> : vector<2x32xf32>
    %104 = tpu.matmul %103, %9, %cst_46 {dimension_numbers = #tpu.dot_dimension_numbers<[1], [0], [0], [1], [0, 0, 1, 1], [], []>} : vector<2x32xbf16>, vector<32x32xbf16>, vector<2x32xf32> -> vector<2x32xf32>
    %105 = vector.broadcast %10 : vector<1x32xf32> to vector<2x32xf32>
    %106 = arith.addf %104, %105 : vector<2x32xf32>
    %107 = vector.extract_strided_slice %24 {offsets = [0, 2, 0], sizes = [2, 1, 16], strides = [1, 1, 1]} : vector<2x8x16xf32> to vector<2x1x16xf32>
    %108 = vector.shape_cast %107 : vector<2x1x16xf32> to vector<2x16xf32>
    %109 = arith.truncf %108 : vector<2x16xf32> to vector<2x16xbf16>
    %cst_47 = arith.constant dense<0.000000e+00> : vector<2x96xf32>
    %110 = tpu.matmul %109, %1, %cst_47 {dimension_numbers = #tpu.dot_dimension_numbers<[1], [0], [0], [1], [0, 0, 1, 1], [], []>} : vector<2x16xbf16>, vector<16x96xbf16>, vector<2x96xf32> -> vector<2x96xf32>
    %111 = vector.broadcast %4 : vector<1x96xf32> to vector<2x96xf32>
    %112 = arith.addf %110, %111 : vector<2x96xf32>
    %113 = arith.truncf %102 : vector<2x32xf32> to vector<2x32xbf16>
    %cst_48 = arith.constant dense<0.000000e+00> : vector<2x96xf32>
    %114 = tpu.matmul %113, %3, %cst_48 {dimension_numbers = #tpu.dot_dimension_numbers<[1], [0], [0], [1], [0, 0, 1, 1], [], []>} : vector<2x32xbf16>, vector<32x96xbf16>, vector<2x96xf32> -> vector<2x96xf32>
    %115 = vector.broadcast %5 : vector<1x96xf32> to vector<2x96xf32>
    %116 = arith.addf %114, %115 : vector<2x96xf32>
    %117 = vector.extract_strided_slice %112 {offsets = [0, 0], sizes = [2, 32], strides = [1, 1]} : vector<2x96xf32> to vector<2x32xf32>
    %118 = vector.extract_strided_slice %116 {offsets = [0, 0], sizes = [2, 32], strides = [1, 1]} : vector<2x96xf32> to vector<2x32xf32>
    %119 = arith.addf %117, %118 : vector<2x32xf32>
    %120 = arith.negf %119 : vector<2x32xf32>
    %121 = math.exp %120 : vector<2x32xf32>
    %cst_49 = arith.constant 1.000000e+00 : f32
    %122 = vector.broadcast %cst_49 : f32 to vector<2x32xf32>
    %123 = arith.addf %122, %121 : vector<2x32xf32>
    %124 = arith.divf %122, %123 : vector<2x32xf32>
    %125 = vector.extract_strided_slice %112 {offsets = [0, 32], sizes = [2, 32], strides = [1, 1]} : vector<2x96xf32> to vector<2x32xf32>
    %126 = vector.extract_strided_slice %116 {offsets = [0, 32], sizes = [2, 32], strides = [1, 1]} : vector<2x96xf32> to vector<2x32xf32>
    %127 = arith.addf %125, %126 : vector<2x32xf32>
    %128 = arith.negf %127 : vector<2x32xf32>
    %129 = math.exp %128 : vector<2x32xf32>
    %cst_50 = arith.constant 1.000000e+00 : f32
    %130 = vector.broadcast %cst_50 : f32 to vector<2x32xf32>
    %131 = arith.addf %130, %129 : vector<2x32xf32>
    %132 = arith.divf %130, %131 : vector<2x32xf32>
    %133 = vector.extract_strided_slice %112 {offsets = [0, 64], sizes = [2, 32], strides = [1, 1]} : vector<2x96xf32> to vector<2x32xf32>
    %134 = vector.extract_strided_slice %116 {offsets = [0, 64], sizes = [2, 32], strides = [1, 1]} : vector<2x96xf32> to vector<2x32xf32>
    %135 = arith.mulf %124, %134 : vector<2x32xf32>
    %136 = arith.addf %133, %135 : vector<2x32xf32>
    %137 = math.tanh %136 : vector<2x32xf32>
    %cst_51 = arith.constant 1.000000e+00 : f32
    %138 = vector.broadcast %cst_51 : f32 to vector<2x32xf32>
    %139 = arith.subf %138, %132 : vector<2x32xf32>
    %140 = arith.mulf %139, %137 : vector<2x32xf32>
    %141 = arith.mulf %132, %102 : vector<2x32xf32>
    %142 = arith.addf %140, %141 : vector<2x32xf32>
    %143 = arith.truncf %142 : vector<2x32xf32> to vector<2x32xbf16>
    %cst_52 = arith.constant dense<0.000000e+00> : vector<2x32xf32>
    %144 = tpu.matmul %143, %9, %cst_52 {dimension_numbers = #tpu.dot_dimension_numbers<[1], [0], [0], [1], [0, 0, 1, 1], [], []>} : vector<2x32xbf16>, vector<32x32xbf16>, vector<2x32xf32> -> vector<2x32xf32>
    %145 = vector.broadcast %10 : vector<1x32xf32> to vector<2x32xf32>
    %146 = arith.addf %144, %145 : vector<2x32xf32>
    %147 = vector.extract_strided_slice %24 {offsets = [0, 3, 0], sizes = [2, 1, 16], strides = [1, 1, 1]} : vector<2x8x16xf32> to vector<2x1x16xf32>
    %148 = vector.shape_cast %147 : vector<2x1x16xf32> to vector<2x16xf32>
    %149 = arith.truncf %148 : vector<2x16xf32> to vector<2x16xbf16>
    %cst_53 = arith.constant dense<0.000000e+00> : vector<2x96xf32>
    %150 = tpu.matmul %149, %1, %cst_53 {dimension_numbers = #tpu.dot_dimension_numbers<[1], [0], [0], [1], [0, 0, 1, 1], [], []>} : vector<2x16xbf16>, vector<16x96xbf16>, vector<2x96xf32> -> vector<2x96xf32>
    %151 = vector.broadcast %4 : vector<1x96xf32> to vector<2x96xf32>
    %152 = arith.addf %150, %151 : vector<2x96xf32>
    %153 = arith.truncf %142 : vector<2x32xf32> to vector<2x32xbf16>
    %cst_54 = arith.constant dense<0.000000e+00> : vector<2x96xf32>
    %154 = tpu.matmul %153, %3, %cst_54 {dimension_numbers = #tpu.dot_dimension_numbers<[1], [0], [0], [1], [0, 0, 1, 1], [], []>} : vector<2x32xbf16>, vector<32x96xbf16>, vector<2x96xf32> -> vector<2x96xf32>
    %155 = vector.broadcast %5 : vector<1x96xf32> to vector<2x96xf32>
    %156 = arith.addf %154, %155 : vector<2x96xf32>
    %157 = vector.extract_strided_slice %152 {offsets = [0, 0], sizes = [2, 32], strides = [1, 1]} : vector<2x96xf32> to vector<2x32xf32>
    %158 = vector.extract_strided_slice %156 {offsets = [0, 0], sizes = [2, 32], strides = [1, 1]} : vector<2x96xf32> to vector<2x32xf32>
    %159 = arith.addf %157, %158 : vector<2x32xf32>
    %160 = arith.negf %159 : vector<2x32xf32>
    %161 = math.exp %160 : vector<2x32xf32>
    %cst_55 = arith.constant 1.000000e+00 : f32
    %162 = vector.broadcast %cst_55 : f32 to vector<2x32xf32>
    %163 = arith.addf %162, %161 : vector<2x32xf32>
    %164 = arith.divf %162, %163 : vector<2x32xf32>
    %165 = vector.extract_strided_slice %152 {offsets = [0, 32], sizes = [2, 32], strides = [1, 1]} : vector<2x96xf32> to vector<2x32xf32>
    %166 = vector.extract_strided_slice %156 {offsets = [0, 32], sizes = [2, 32], strides = [1, 1]} : vector<2x96xf32> to vector<2x32xf32>
    %167 = arith.addf %165, %166 : vector<2x32xf32>
    %168 = arith.negf %167 : vector<2x32xf32>
    %169 = math.exp %168 : vector<2x32xf32>
    %cst_56 = arith.constant 1.000000e+00 : f32
    %170 = vector.broadcast %cst_56 : f32 to vector<2x32xf32>
    %171 = arith.addf %170, %169 : vector<2x32xf32>
    %172 = arith.divf %170, %171 : vector<2x32xf32>
    %173 = vector.extract_strided_slice %152 {offsets = [0, 64], sizes = [2, 32], strides = [1, 1]} : vector<2x96xf32> to vector<2x32xf32>
    %174 = vector.extract_strided_slice %156 {offsets = [0, 64], sizes = [2, 32], strides = [1, 1]} : vector<2x96xf32> to vector<2x32xf32>
    %175 = arith.mulf %164, %174 : vector<2x32xf32>
    %176 = arith.addf %173, %175 : vector<2x32xf32>
    %177 = math.tanh %176 : vector<2x32xf32>
    %cst_57 = arith.constant 1.000000e+00 : f32
    %178 = vector.broadcast %cst_57 : f32 to vector<2x32xf32>
    %179 = arith.subf %178, %172 : vector<2x32xf32>
    %180 = arith.mulf %179, %177 : vector<2x32xf32>
    %181 = arith.mulf %172, %142 : vector<2x32xf32>
    %182 = arith.addf %180, %181 : vector<2x32xf32>
    %183 = arith.truncf %182 : vector<2x32xf32> to vector<2x32xbf16>
    %cst_58 = arith.constant dense<0.000000e+00> : vector<2x32xf32>
    %184 = tpu.matmul %183, %9, %cst_58 {dimension_numbers = #tpu.dot_dimension_numbers<[1], [0], [0], [1], [0, 0, 1, 1], [], []>} : vector<2x32xbf16>, vector<32x32xbf16>, vector<2x32xf32> -> vector<2x32xf32>
    %185 = vector.broadcast %10 : vector<1x32xf32> to vector<2x32xf32>
    %186 = arith.addf %184, %185 : vector<2x32xf32>
    %187 = vector.extract_strided_slice %24 {offsets = [0, 4, 0], sizes = [2, 1, 16], strides = [1, 1, 1]} : vector<2x8x16xf32> to vector<2x1x16xf32>
    %188 = vector.shape_cast %187 : vector<2x1x16xf32> to vector<2x16xf32>
    %189 = arith.truncf %188 : vector<2x16xf32> to vector<2x16xbf16>
    %cst_59 = arith.constant dense<0.000000e+00> : vector<2x96xf32>
    %190 = tpu.matmul %189, %1, %cst_59 {dimension_numbers = #tpu.dot_dimension_numbers<[1], [0], [0], [1], [0, 0, 1, 1], [], []>} : vector<2x16xbf16>, vector<16x96xbf16>, vector<2x96xf32> -> vector<2x96xf32>
    %191 = vector.broadcast %4 : vector<1x96xf32> to vector<2x96xf32>
    %192 = arith.addf %190, %191 : vector<2x96xf32>
    %193 = arith.truncf %182 : vector<2x32xf32> to vector<2x32xbf16>
    %cst_60 = arith.constant dense<0.000000e+00> : vector<2x96xf32>
    %194 = tpu.matmul %193, %3, %cst_60 {dimension_numbers = #tpu.dot_dimension_numbers<[1], [0], [0], [1], [0, 0, 1, 1], [], []>} : vector<2x32xbf16>, vector<32x96xbf16>, vector<2x96xf32> -> vector<2x96xf32>
    %195 = vector.broadcast %5 : vector<1x96xf32> to vector<2x96xf32>
    %196 = arith.addf %194, %195 : vector<2x96xf32>
    %197 = vector.extract_strided_slice %192 {offsets = [0, 0], sizes = [2, 32], strides = [1, 1]} : vector<2x96xf32> to vector<2x32xf32>
    %198 = vector.extract_strided_slice %196 {offsets = [0, 0], sizes = [2, 32], strides = [1, 1]} : vector<2x96xf32> to vector<2x32xf32>
    %199 = arith.addf %197, %198 : vector<2x32xf32>
    %200 = arith.negf %199 : vector<2x32xf32>
    %201 = math.exp %200 : vector<2x32xf32>
    %cst_61 = arith.constant 1.000000e+00 : f32
    %202 = vector.broadcast %cst_61 : f32 to vector<2x32xf32>
    %203 = arith.addf %202, %201 : vector<2x32xf32>
    %204 = arith.divf %202, %203 : vector<2x32xf32>
    %205 = vector.extract_strided_slice %192 {offsets = [0, 32], sizes = [2, 32], strides = [1, 1]} : vector<2x96xf32> to vector<2x32xf32>
    %206 = vector.extract_strided_slice %196 {offsets = [0, 32], sizes = [2, 32], strides = [1, 1]} : vector<2x96xf32> to vector<2x32xf32>
    %207 = arith.addf %205, %206 : vector<2x32xf32>
    %208 = arith.negf %207 : vector<2x32xf32>
    %209 = math.exp %208 : vector<2x32xf32>
    %cst_62 = arith.constant 1.000000e+00 : f32
    %210 = vector.broadcast %cst_62 : f32 to vector<2x32xf32>
    %211 = arith.addf %210, %209 : vector<2x32xf32>
    %212 = arith.divf %210, %211 : vector<2x32xf32>
    %213 = vector.extract_strided_slice %192 {offsets = [0, 64], sizes = [2, 32], strides = [1, 1]} : vector<2x96xf32> to vector<2x32xf32>
    %214 = vector.extract_strided_slice %196 {offsets = [0, 64], sizes = [2, 32], strides = [1, 1]} : vector<2x96xf32> to vector<2x32xf32>
    %215 = arith.mulf %204, %214 : vector<2x32xf32>
    %216 = arith.addf %213, %215 : vector<2x32xf32>
    %217 = math.tanh %216 : vector<2x32xf32>
    %cst_63 = arith.constant 1.000000e+00 : f32
    %218 = vector.broadcast %cst_63 : f32 to vector<2x32xf32>
    %219 = arith.subf %218, %212 : vector<2x32xf32>
    %220 = arith.mulf %219, %217 : vector<2x32xf32>
    %221 = arith.mulf %212, %182 : vector<2x32xf32>
    %222 = arith.addf %220, %221 : vector<2x32xf32>
    %223 = arith.truncf %222 : vector<2x32xf32> to vector<2x32xbf16>
    %cst_64 = arith.constant dense<0.000000e+00> : vector<2x32xf32>
    %224 = tpu.matmul %223, %9, %cst_64 {dimension_numbers = #tpu.dot_dimension_numbers<[1], [0], [0], [1], [0, 0, 1, 1], [], []>} : vector<2x32xbf16>, vector<32x32xbf16>, vector<2x32xf32> -> vector<2x32xf32>
    %225 = vector.broadcast %10 : vector<1x32xf32> to vector<2x32xf32>
    %226 = arith.addf %224, %225 : vector<2x32xf32>
    %227 = vector.extract_strided_slice %24 {offsets = [0, 5, 0], sizes = [2, 1, 16], strides = [1, 1, 1]} : vector<2x8x16xf32> to vector<2x1x16xf32>
    %228 = vector.shape_cast %227 : vector<2x1x16xf32> to vector<2x16xf32>
    %229 = arith.truncf %228 : vector<2x16xf32> to vector<2x16xbf16>
    %cst_65 = arith.constant dense<0.000000e+00> : vector<2x96xf32>
    %230 = tpu.matmul %229, %1, %cst_65 {dimension_numbers = #tpu.dot_dimension_numbers<[1], [0], [0], [1], [0, 0, 1, 1], [], []>} : vector<2x16xbf16>, vector<16x96xbf16>, vector<2x96xf32> -> vector<2x96xf32>
    %231 = vector.broadcast %4 : vector<1x96xf32> to vector<2x96xf32>
    %232 = arith.addf %230, %231 : vector<2x96xf32>
    %233 = arith.truncf %222 : vector<2x32xf32> to vector<2x32xbf16>
    %cst_66 = arith.constant dense<0.000000e+00> : vector<2x96xf32>
    %234 = tpu.matmul %233, %3, %cst_66 {dimension_numbers = #tpu.dot_dimension_numbers<[1], [0], [0], [1], [0, 0, 1, 1], [], []>} : vector<2x32xbf16>, vector<32x96xbf16>, vector<2x96xf32> -> vector<2x96xf32>
    %235 = vector.broadcast %5 : vector<1x96xf32> to vector<2x96xf32>
    %236 = arith.addf %234, %235 : vector<2x96xf32>
    %237 = vector.extract_strided_slice %232 {offsets = [0, 0], sizes = [2, 32], strides = [1, 1]} : vector<2x96xf32> to vector<2x32xf32>
    %238 = vector.extract_strided_slice %236 {offsets = [0, 0], sizes = [2, 32], strides = [1, 1]} : vector<2x96xf32> to vector<2x32xf32>
    %239 = arith.addf %237, %238 : vector<2x32xf32>
    %240 = arith.negf %239 : vector<2x32xf32>
    %241 = math.exp %240 : vector<2x32xf32>
    %cst_67 = arith.constant 1.000000e+00 : f32
    %242 = vector.broadcast %cst_67 : f32 to vector<2x32xf32>
    %243 = arith.addf %242, %241 : vector<2x32xf32>
    %244 = arith.divf %242, %243 : vector<2x32xf32>
    %245 = vector.extract_strided_slice %232 {offsets = [0, 32], sizes = [2, 32], strides = [1, 1]} : vector<2x96xf32> to vector<2x32xf32>
    %246 = vector.extract_strided_slice %236 {offsets = [0, 32], sizes = [2, 32], strides = [1, 1]} : vector<2x96xf32> to vector<2x32xf32>
    %247 = arith.addf %245, %246 : vector<2x32xf32>
    %248 = arith.negf %247 : vector<2x32xf32>
    %249 = math.exp %248 : vector<2x32xf32>
    %cst_68 = arith.constant 1.000000e+00 : f32
    %250 = vector.broadcast %cst_68 : f32 to vector<2x32xf32>
    %251 = arith.addf %250, %249 : vector<2x32xf32>
    %252 = arith.divf %250, %251 : vector<2x32xf32>
    %253 = vector.extract_strided_slice %232 {offsets = [0, 64], sizes = [2, 32], strides = [1, 1]} : vector<2x96xf32> to vector<2x32xf32>
    %254 = vector.extract_strided_slice %236 {offsets = [0, 64], sizes = [2, 32], strides = [1, 1]} : vector<2x96xf32> to vector<2x32xf32>
    %255 = arith.mulf %244, %254 : vector<2x32xf32>
    %256 = arith.addf %253, %255 : vector<2x32xf32>
    %257 = math.tanh %256 : vector<2x32xf32>
    %cst_69 = arith.constant 1.000000e+00 : f32
    %258 = vector.broadcast %cst_69 : f32 to vector<2x32xf32>
    %259 = arith.subf %258, %252 : vector<2x32xf32>
    %260 = arith.mulf %259, %257 : vector<2x32xf32>
    %261 = arith.mulf %252, %222 : vector<2x32xf32>
    %262 = arith.addf %260, %261 : vector<2x32xf32>
    %263 = arith.truncf %262 : vector<2x32xf32> to vector<2x32xbf16>
    %cst_70 = arith.constant dense<0.000000e+00> : vector<2x32xf32>
    %264 = tpu.matmul %263, %9, %cst_70 {dimension_numbers = #tpu.dot_dimension_numbers<[1], [0], [0], [1], [0, 0, 1, 1], [], []>} : vector<2x32xbf16>, vector<32x32xbf16>, vector<2x32xf32> -> vector<2x32xf32>
    %265 = vector.broadcast %10 : vector<1x32xf32> to vector<2x32xf32>
    %266 = arith.addf %264, %265 : vector<2x32xf32>
    %267 = vector.extract_strided_slice %24 {offsets = [0, 6, 0], sizes = [2, 1, 16], strides = [1, 1, 1]} : vector<2x8x16xf32> to vector<2x1x16xf32>
    %268 = vector.shape_cast %267 : vector<2x1x16xf32> to vector<2x16xf32>
    %269 = arith.truncf %268 : vector<2x16xf32> to vector<2x16xbf16>
    %cst_71 = arith.constant dense<0.000000e+00> : vector<2x96xf32>
    %270 = tpu.matmul %269, %1, %cst_71 {dimension_numbers = #tpu.dot_dimension_numbers<[1], [0], [0], [1], [0, 0, 1, 1], [], []>} : vector<2x16xbf16>, vector<16x96xbf16>, vector<2x96xf32> -> vector<2x96xf32>
    %271 = vector.broadcast %4 : vector<1x96xf32> to vector<2x96xf32>
    %272 = arith.addf %270, %271 : vector<2x96xf32>
    %273 = arith.truncf %262 : vector<2x32xf32> to vector<2x32xbf16>
    %cst_72 = arith.constant dense<0.000000e+00> : vector<2x96xf32>
    %274 = tpu.matmul %273, %3, %cst_72 {dimension_numbers = #tpu.dot_dimension_numbers<[1], [0], [0], [1], [0, 0, 1, 1], [], []>} : vector<2x32xbf16>, vector<32x96xbf16>, vector<2x96xf32> -> vector<2x96xf32>
    %275 = vector.broadcast %5 : vector<1x96xf32> to vector<2x96xf32>
    %276 = arith.addf %274, %275 : vector<2x96xf32>
    %277 = vector.extract_strided_slice %272 {offsets = [0, 0], sizes = [2, 32], strides = [1, 1]} : vector<2x96xf32> to vector<2x32xf32>
    %278 = vector.extract_strided_slice %276 {offsets = [0, 0], sizes = [2, 32], strides = [1, 1]} : vector<2x96xf32> to vector<2x32xf32>
    %279 = arith.addf %277, %278 : vector<2x32xf32>
    %280 = arith.negf %279 : vector<2x32xf32>
    %281 = math.exp %280 : vector<2x32xf32>
    %cst_73 = arith.constant 1.000000e+00 : f32
    %282 = vector.broadcast %cst_73 : f32 to vector<2x32xf32>
    %283 = arith.addf %282, %281 : vector<2x32xf32>
    %284 = arith.divf %282, %283 : vector<2x32xf32>
    %285 = vector.extract_strided_slice %272 {offsets = [0, 32], sizes = [2, 32], strides = [1, 1]} : vector<2x96xf32> to vector<2x32xf32>
    %286 = vector.extract_strided_slice %276 {offsets = [0, 32], sizes = [2, 32], strides = [1, 1]} : vector<2x96xf32> to vector<2x32xf32>
    %287 = arith.addf %285, %286 : vector<2x32xf32>
    %288 = arith.negf %287 : vector<2x32xf32>
    %289 = math.exp %288 : vector<2x32xf32>
    %cst_74 = arith.constant 1.000000e+00 : f32
    %290 = vector.broadcast %cst_74 : f32 to vector<2x32xf32>
    %291 = arith.addf %290, %289 : vector<2x32xf32>
    %292 = arith.divf %290, %291 : vector<2x32xf32>
    %293 = vector.extract_strided_slice %272 {offsets = [0, 64], sizes = [2, 32], strides = [1, 1]} : vector<2x96xf32> to vector<2x32xf32>
    %294 = vector.extract_strided_slice %276 {offsets = [0, 64], sizes = [2, 32], strides = [1, 1]} : vector<2x96xf32> to vector<2x32xf32>
    %295 = arith.mulf %284, %294 : vector<2x32xf32>
    %296 = arith.addf %293, %295 : vector<2x32xf32>
    %297 = math.tanh %296 : vector<2x32xf32>
    %cst_75 = arith.constant 1.000000e+00 : f32
    %298 = vector.broadcast %cst_75 : f32 to vector<2x32xf32>
    %299 = arith.subf %298, %292 : vector<2x32xf32>
    %300 = arith.mulf %299, %297 : vector<2x32xf32>
    %301 = arith.mulf %292, %262 : vector<2x32xf32>
    %302 = arith.addf %300, %301 : vector<2x32xf32>
    %303 = arith.truncf %302 : vector<2x32xf32> to vector<2x32xbf16>
    %cst_76 = arith.constant dense<0.000000e+00> : vector<2x32xf32>
    %304 = tpu.matmul %303, %9, %cst_76 {dimension_numbers = #tpu.dot_dimension_numbers<[1], [0], [0], [1], [0, 0, 1, 1], [], []>} : vector<2x32xbf16>, vector<32x32xbf16>, vector<2x32xf32> -> vector<2x32xf32>
    %305 = vector.broadcast %10 : vector<1x32xf32> to vector<2x32xf32>
    %306 = arith.addf %304, %305 : vector<2x32xf32>
    %307 = vector.extract_strided_slice %24 {offsets = [0, 7, 0], sizes = [2, 1, 16], strides = [1, 1, 1]} : vector<2x8x16xf32> to vector<2x1x16xf32>
    %308 = vector.shape_cast %307 : vector<2x1x16xf32> to vector<2x16xf32>
    %309 = arith.truncf %308 : vector<2x16xf32> to vector<2x16xbf16>
    %cst_77 = arith.constant dense<0.000000e+00> : vector<2x96xf32>
    %310 = tpu.matmul %309, %1, %cst_77 {dimension_numbers = #tpu.dot_dimension_numbers<[1], [0], [0], [1], [0, 0, 1, 1], [], []>} : vector<2x16xbf16>, vector<16x96xbf16>, vector<2x96xf32> -> vector<2x96xf32>
    %311 = vector.broadcast %4 : vector<1x96xf32> to vector<2x96xf32>
    %312 = arith.addf %310, %311 : vector<2x96xf32>
    %313 = arith.truncf %302 : vector<2x32xf32> to vector<2x32xbf16>
    %cst_78 = arith.constant dense<0.000000e+00> : vector<2x96xf32>
    %314 = tpu.matmul %313, %3, %cst_78 {dimension_numbers = #tpu.dot_dimension_numbers<[1], [0], [0], [1], [0, 0, 1, 1], [], []>} : vector<2x32xbf16>, vector<32x96xbf16>, vector<2x96xf32> -> vector<2x96xf32>
    %315 = vector.broadcast %5 : vector<1x96xf32> to vector<2x96xf32>
    %316 = arith.addf %314, %315 : vector<2x96xf32>
    %317 = vector.extract_strided_slice %312 {offsets = [0, 0], sizes = [2, 32], strides = [1, 1]} : vector<2x96xf32> to vector<2x32xf32>
    %318 = vector.extract_strided_slice %316 {offsets = [0, 0], sizes = [2, 32], strides = [1, 1]} : vector<2x96xf32> to vector<2x32xf32>
    %319 = arith.addf %317, %318 : vector<2x32xf32>
    %320 = arith.negf %319 : vector<2x32xf32>
    %321 = math.exp %320 : vector<2x32xf32>
    %cst_79 = arith.constant 1.000000e+00 : f32
    %322 = vector.broadcast %cst_79 : f32 to vector<2x32xf32>
    %323 = arith.addf %322, %321 : vector<2x32xf32>
    %324 = arith.divf %322, %323 : vector<2x32xf32>
    %325 = vector.extract_strided_slice %312 {offsets = [0, 32], sizes = [2, 32], strides = [1, 1]} : vector<2x96xf32> to vector<2x32xf32>
    %326 = vector.extract_strided_slice %316 {offsets = [0, 32], sizes = [2, 32], strides = [1, 1]} : vector<2x96xf32> to vector<2x32xf32>
    %327 = arith.addf %325, %326 : vector<2x32xf32>
    %328 = arith.negf %327 : vector<2x32xf32>
    %329 = math.exp %328 : vector<2x32xf32>
    %cst_80 = arith.constant 1.000000e+00 : f32
    %330 = vector.broadcast %cst_80 : f32 to vector<2x32xf32>
    %331 = arith.addf %330, %329 : vector<2x32xf32>
    %332 = arith.divf %330, %331 : vector<2x32xf32>
    %333 = vector.extract_strided_slice %312 {offsets = [0, 64], sizes = [2, 32], strides = [1, 1]} : vector<2x96xf32> to vector<2x32xf32>
    %334 = vector.extract_strided_slice %316 {offsets = [0, 64], sizes = [2, 32], strides = [1, 1]} : vector<2x96xf32> to vector<2x32xf32>
    %335 = arith.mulf %324, %334 : vector<2x32xf32>
    %336 = arith.addf %333, %335 : vector<2x32xf32>
    %337 = math.tanh %336 : vector<2x32xf32>
    %cst_81 = arith.constant 1.000000e+00 : f32
    %338 = vector.broadcast %cst_81 : f32 to vector<2x32xf32>
    %339 = arith.subf %338, %332 : vector<2x32xf32>
    %340 = arith.mulf %339, %337 : vector<2x32xf32>
    %341 = arith.mulf %332, %302 : vector<2x32xf32>
    %342 = arith.addf %340, %341 : vector<2x32xf32>
    %343 = arith.truncf %342 : vector<2x32xf32> to vector<2x32xbf16>
    %cst_82 = arith.constant dense<0.000000e+00> : vector<2x32xf32>
    %344 = tpu.matmul %343, %9, %cst_82 {dimension_numbers = #tpu.dot_dimension_numbers<[1], [0], [0], [1], [0, 0, 1, 1], [], []>} : vector<2x32xbf16>, vector<32x32xbf16>, vector<2x32xf32> -> vector<2x32xf32>
    %345 = vector.broadcast %10 : vector<1x32xf32> to vector<2x32xf32>
    %346 = arith.addf %344, %345 : vector<2x32xf32>
    %347 = vector.shape_cast %62 : vector<2x32xf32> to vector<2x1x32xf32>
    %348 = vector.shape_cast %102 : vector<2x32xf32> to vector<2x1x32xf32>
    %349 = vector.shape_cast %142 : vector<2x32xf32> to vector<2x1x32xf32>
    %350 = vector.shape_cast %182 : vector<2x32xf32> to vector<2x1x32xf32>
    %351 = vector.shape_cast %222 : vector<2x32xf32> to vector<2x1x32xf32>
    %352 = vector.shape_cast %262 : vector<2x32xf32> to vector<2x1x32xf32>
    %353 = vector.shape_cast %302 : vector<2x32xf32> to vector<2x1x32xf32>
    %354 = vector.shape_cast %342 : vector<2x32xf32> to vector<2x1x32xf32>
    %355 = tpu.concatenate %347, %348, %349, %350, %351, %352, %353, %354 in 1 : vector<2x1x32xf32>, vector<2x1x32xf32>, vector<2x1x32xf32>, vector<2x1x32xf32>, vector<2x1x32xf32>, vector<2x1x32xf32>, vector<2x1x32xf32>, vector<2x1x32xf32> -> vector<2x8x32xf32>
    %356 = vector.shape_cast %66 : vector<2x32xf32> to vector<2x1x32xf32>
    %357 = vector.shape_cast %106 : vector<2x32xf32> to vector<2x1x32xf32>
    %358 = vector.shape_cast %146 : vector<2x32xf32> to vector<2x1x32xf32>
    %359 = vector.shape_cast %186 : vector<2x32xf32> to vector<2x1x32xf32>
    %360 = vector.shape_cast %226 : vector<2x32xf32> to vector<2x1x32xf32>
    %361 = vector.shape_cast %266 : vector<2x32xf32> to vector<2x1x32xf32>
    %362 = vector.shape_cast %306 : vector<2x32xf32> to vector<2x1x32xf32>
    %363 = vector.shape_cast %346 : vector<2x32xf32> to vector<2x1x32xf32>
    %364 = tpu.concatenate %356, %357, %358, %359, %360, %361, %362, %363 in 1 : vector<2x1x32xf32>, vector<2x1x32xf32>, vector<2x1x32xf32>, vector<2x1x32xf32>, vector<2x1x32xf32>, vector<2x1x32xf32>, vector<2x1x32xf32>, vector<2x1x32xf32> -> vector<2x8x32xf32>
    %365 = tpu.iota {dimensions = array<i32: 1>} : vector<2x24xi32>
    %366 = vector.extract_strided_slice %25 {offsets = [0, 0, 0], sizes = [2, 1, 16], strides = [1, 1, 1]} : vector<2x6x16xf32> to vector<2x1x16xf32>
    %367 = vector.shape_cast %366 : vector<2x1x16xf32> to vector<2x16xf32>
    %cst_83 = arith.constant 0.000000e+00 : f32
    %368 = vector.broadcast %cst_83 : f32 to vector<2x24xf32>
    %369 = arith.truncf %342 : vector<2x32xf32> to vector<2x32xbf16>
    %cst_84 = arith.constant dense<0.000000e+00> : vector<2x32xf32>
    %370 = tpu.matmul %369, %7, %cst_84 {dimension_numbers = #tpu.dot_dimension_numbers<[1], [0], [0], [1], [0, 0, 1, 1], [], []>} : vector<2x32xbf16>, vector<32x32xbf16>, vector<2x32xf32> -> vector<2x32xf32>
    %371 = vector.shape_cast %370 : vector<2x32xf32> to vector<2x1x32xf32>
    %372 = vector.broadcast %371 : vector<2x1x32xf32> to vector<2x8x32xf32>
    %373 = arith.addf %364, %372 : vector<2x8x32xf32>
    %374 = math.tanh %373 : vector<2x8x32xf32>
    %375 = vector.broadcast %12 : vector<1x1x32xf32> to vector<2x8x32xf32>
    %376 = arith.mulf %374, %375 : vector<2x8x32xf32>
    %cst_85 = arith.constant dense<0.000000e+00> : vector<2x8xf32>
    %377 = vector.multi_reduction <add>, %376, %cst_85 [2] : vector<2x8x32xf32> to vector<2x8xf32>
    %cst_86 = arith.constant dense<0xFF800000> : vector<2xf32>
    %378 = vector.multi_reduction <maximumf>, %377, %cst_86 [1] : vector<2x8xf32> to vector<2xf32>
    %379 = vector.shape_cast %378 : vector<2xf32> to vector<2x1xf32>
    %380 = vector.broadcast %379 : vector<2x1xf32> to vector<2x8xf32>
    %381 = arith.subf %377, %380 : vector<2x8xf32>
    %382 = math.exp %381 : vector<2x8xf32>
    %cst_87 = arith.constant dense<0.000000e+00> : vector<2xf32>
    %383 = vector.multi_reduction <add>, %382, %cst_87 [1] : vector<2x8xf32> to vector<2xf32>
    %384 = vector.shape_cast %383 : vector<2xf32> to vector<2x1xf32>
    %385 = vector.broadcast %384 : vector<2x1xf32> to vector<2x8xf32>
    %386 = arith.divf %382, %385 : vector<2x8xf32>
    %387 = vector.shape_cast %386 : vector<2x8xf32> to vector<2x8x1xf32>
    %388 = vector.broadcast %387 : vector<2x8x1xf32> to vector<2x8x32xf32>
    %389 = arith.mulf %388, %355 : vector<2x8x32xf32>
    %cst_88 = arith.constant dense<0.000000e+00> : vector<2x32xf32>
    %390 = vector.multi_reduction <add>, %389, %cst_88 [1] : vector<2x8x32xf32> to vector<2x32xf32>
    %391 = tpu.concatenate %367, %390 in 1 : vector<2x16xf32>, vector<2x32xf32> -> vector<2x48xf32>
    %392 = arith.truncf %391 : vector<2x48xf32> to vector<2x48xbf16>
    %cst_89 = arith.constant dense<0.000000e+00> : vector<2x96xf32>
    %393 = tpu.matmul %392, %14, %cst_89 {dimension_numbers = #tpu.dot_dimension_numbers<[1], [0], [0], [1], [0, 0, 1, 1], [], []>} : vector<2x48xbf16>, vector<48x96xbf16>, vector<2x96xf32> -> vector<2x96xf32>
    %394 = vector.broadcast %17 : vector<1x96xf32> to vector<2x96xf32>
    %395 = arith.addf %393, %394 : vector<2x96xf32>
    %396 = arith.truncf %342 : vector<2x32xf32> to vector<2x32xbf16>
    %cst_90 = arith.constant dense<0.000000e+00> : vector<2x96xf32>
    %397 = tpu.matmul %396, %16, %cst_90 {dimension_numbers = #tpu.dot_dimension_numbers<[1], [0], [0], [1], [0, 0, 1, 1], [], []>} : vector<2x32xbf16>, vector<32x96xbf16>, vector<2x96xf32> -> vector<2x96xf32>
    %398 = vector.broadcast %18 : vector<1x96xf32> to vector<2x96xf32>
    %399 = arith.addf %397, %398 : vector<2x96xf32>
    %400 = vector.extract_strided_slice %395 {offsets = [0, 0], sizes = [2, 32], strides = [1, 1]} : vector<2x96xf32> to vector<2x32xf32>
    %401 = vector.extract_strided_slice %399 {offsets = [0, 0], sizes = [2, 32], strides = [1, 1]} : vector<2x96xf32> to vector<2x32xf32>
    %402 = arith.addf %400, %401 : vector<2x32xf32>
    %403 = arith.negf %402 : vector<2x32xf32>
    %404 = math.exp %403 : vector<2x32xf32>
    %cst_91 = arith.constant 1.000000e+00 : f32
    %405 = vector.broadcast %cst_91 : f32 to vector<2x32xf32>
    %406 = arith.addf %405, %404 : vector<2x32xf32>
    %407 = arith.divf %405, %406 : vector<2x32xf32>
    %408 = vector.extract_strided_slice %395 {offsets = [0, 32], sizes = [2, 32], strides = [1, 1]} : vector<2x96xf32> to vector<2x32xf32>
    %409 = vector.extract_strided_slice %399 {offsets = [0, 32], sizes = [2, 32], strides = [1, 1]} : vector<2x96xf32> to vector<2x32xf32>
    %410 = arith.addf %408, %409 : vector<2x32xf32>
    %411 = arith.negf %410 : vector<2x32xf32>
    %412 = math.exp %411 : vector<2x32xf32>
    %cst_92 = arith.constant 1.000000e+00 : f32
    %413 = vector.broadcast %cst_92 : f32 to vector<2x32xf32>
    %414 = arith.addf %413, %412 : vector<2x32xf32>
    %415 = arith.divf %413, %414 : vector<2x32xf32>
    %416 = vector.extract_strided_slice %395 {offsets = [0, 64], sizes = [2, 32], strides = [1, 1]} : vector<2x96xf32> to vector<2x32xf32>
    %417 = vector.extract_strided_slice %399 {offsets = [0, 64], sizes = [2, 32], strides = [1, 1]} : vector<2x96xf32> to vector<2x32xf32>
    %418 = arith.mulf %407, %417 : vector<2x32xf32>
    %419 = arith.addf %416, %418 : vector<2x32xf32>
    %420 = math.tanh %419 : vector<2x32xf32>
    %cst_93 = arith.constant 1.000000e+00 : f32
    %421 = vector.broadcast %cst_93 : f32 to vector<2x32xf32>
    %422 = arith.subf %421, %415 : vector<2x32xf32>
    %423 = arith.mulf %422, %420 : vector<2x32xf32>
    %424 = arith.mulf %415, %342 : vector<2x32xf32>
    %425 = arith.addf %423, %424 : vector<2x32xf32>
    %426 = tpu.concatenate %425, %390, %367 in 1 : vector<2x32xf32>, vector<2x32xf32>, vector<2x16xf32> -> vector<2x80xf32>
    %427 = arith.truncf %426 : vector<2x80xf32> to vector<2x80xbf16>
    %cst_94 = arith.constant dense<0.000000e+00> : vector<2x24xf32>
    %428 = tpu.matmul %427, %20, %cst_94 {dimension_numbers = #tpu.dot_dimension_numbers<[1], [0], [0], [1], [0, 0, 1, 1], [], []>} : vector<2x80xbf16>, vector<80x24xbf16>, vector<2x24xf32> -> vector<2x24xf32>
    %429 = vector.broadcast %21 : vector<1x24xf32> to vector<2x24xf32>
    %430 = arith.addf %428, %429 : vector<2x24xf32>
    %cst_95 = arith.constant dense<0xFF800000> : vector<2xf32>
    %431 = vector.multi_reduction <maximumf>, %430, %cst_95 [1] : vector<2x24xf32> to vector<2xf32>
    %432 = vector.shape_cast %431 : vector<2xf32> to vector<2x1xf32>
    %433 = vector.broadcast %432 : vector<2x1xf32> to vector<2x24xf32>
    %434 = arith.cmpf oge, %430, %433 : vector<2x24xf32>
    %c24_i32 = arith.constant 24 : i32
    %435 = vector.broadcast %c24_i32 : i32 to vector<2x24xi32>
    %436 = arith.select %434, %365, %435 : vector<2x24xi1>, vector<2x24xi32>
    %cst_96 = arith.constant dense<2147483647> : vector<2xi32>
    %437 = vector.multi_reduction <minsi>, %436, %cst_96 [1] : vector<2x24xi32> to vector<2xi32>
    %438 = vector.shape_cast %437 : vector<2xi32> to vector<2x1xi32>
    %439 = vector.broadcast %438 : vector<2x1xi32> to vector<2x24xi32>
    %440 = arith.cmpi eq, %365, %439 : vector<2x24xi32>
    %441 = arith.extui %440 : vector<2x24xi1> to vector<2x24xi32>
    %442 = arith.sitofp %441 : vector<2x24xi32> to vector<2x24xf32>
    %443 = arith.truncf %442 : vector<2x24xf32> to vector<2x24xbf16>
    %cst_97 = arith.constant dense<0.000000e+00> : vector<2x16xf32>
    %444 = tpu.matmul %443, %23, %cst_97 {dimension_numbers = #tpu.dot_dimension_numbers<[1], [0], [0], [1], [0, 0, 1, 1], [], []>} : vector<2x24xbf16>, vector<24x16xbf16>, vector<2x16xf32> -> vector<2x16xf32>
    %c1 = arith.constant 1 : index
    %445 = memref.load %arg2[%c1] : memref<6xi32, #tpu.memory_space<smem>>
    %c0_i32 = arith.constant 0 : i32
    %446 = arith.cmpi sgt, %445, %c0_i32 : i32
    %447 = vector.extract_strided_slice %25 {offsets = [0, 1, 0], sizes = [2, 1, 16], strides = [1, 1, 1]} : vector<2x6x16xf32> to vector<2x1x16xf32>
    %448 = vector.shape_cast %447 : vector<2x1x16xf32> to vector<2x16xf32>
    %449 = arith.select %446, %448, %444 : vector<2x16xf32>
    %450 = arith.truncf %425 : vector<2x32xf32> to vector<2x32xbf16>
    %cst_98 = arith.constant dense<0.000000e+00> : vector<2x32xf32>
    %451 = tpu.matmul %450, %7, %cst_98 {dimension_numbers = #tpu.dot_dimension_numbers<[1], [0], [0], [1], [0, 0, 1, 1], [], []>} : vector<2x32xbf16>, vector<32x32xbf16>, vector<2x32xf32> -> vector<2x32xf32>
    %452 = vector.shape_cast %451 : vector<2x32xf32> to vector<2x1x32xf32>
    %453 = vector.broadcast %452 : vector<2x1x32xf32> to vector<2x8x32xf32>
    %454 = arith.addf %364, %453 : vector<2x8x32xf32>
    %455 = math.tanh %454 : vector<2x8x32xf32>
    %456 = vector.broadcast %12 : vector<1x1x32xf32> to vector<2x8x32xf32>
    %457 = arith.mulf %455, %456 : vector<2x8x32xf32>
    %cst_99 = arith.constant dense<0.000000e+00> : vector<2x8xf32>
    %458 = vector.multi_reduction <add>, %457, %cst_99 [2] : vector<2x8x32xf32> to vector<2x8xf32>
    %cst_100 = arith.constant dense<0xFF800000> : vector<2xf32>
    %459 = vector.multi_reduction <maximumf>, %458, %cst_100 [1] : vector<2x8xf32> to vector<2xf32>
    %460 = vector.shape_cast %459 : vector<2xf32> to vector<2x1xf32>
    %461 = vector.broadcast %460 : vector<2x1xf32> to vector<2x8xf32>
    %462 = arith.subf %458, %461 : vector<2x8xf32>
    %463 = math.exp %462 : vector<2x8xf32>
    %cst_101 = arith.constant dense<0.000000e+00> : vector<2xf32>
    %464 = vector.multi_reduction <add>, %463, %cst_101 [1] : vector<2x8xf32> to vector<2xf32>
    %465 = vector.shape_cast %464 : vector<2xf32> to vector<2x1xf32>
    %466 = vector.broadcast %465 : vector<2x1xf32> to vector<2x8xf32>
    %467 = arith.divf %463, %466 : vector<2x8xf32>
    %468 = vector.shape_cast %467 : vector<2x8xf32> to vector<2x8x1xf32>
    %469 = vector.broadcast %468 : vector<2x8x1xf32> to vector<2x8x32xf32>
    %470 = arith.mulf %469, %355 : vector<2x8x32xf32>
    %cst_102 = arith.constant dense<0.000000e+00> : vector<2x32xf32>
    %471 = vector.multi_reduction <add>, %470, %cst_102 [1] : vector<2x8x32xf32> to vector<2x32xf32>
    %472 = tpu.concatenate %449, %471 in 1 : vector<2x16xf32>, vector<2x32xf32> -> vector<2x48xf32>
    %473 = arith.truncf %472 : vector<2x48xf32> to vector<2x48xbf16>
    %cst_103 = arith.constant dense<0.000000e+00> : vector<2x96xf32>
    %474 = tpu.matmul %473, %14, %cst_103 {dimension_numbers = #tpu.dot_dimension_numbers<[1], [0], [0], [1], [0, 0, 1, 1], [], []>} : vector<2x48xbf16>, vector<48x96xbf16>, vector<2x96xf32> -> vector<2x96xf32>
    %475 = vector.broadcast %17 : vector<1x96xf32> to vector<2x96xf32>
    %476 = arith.addf %474, %475 : vector<2x96xf32>
    %477 = arith.truncf %425 : vector<2x32xf32> to vector<2x32xbf16>
    %cst_104 = arith.constant dense<0.000000e+00> : vector<2x96xf32>
    %478 = tpu.matmul %477, %16, %cst_104 {dimension_numbers = #tpu.dot_dimension_numbers<[1], [0], [0], [1], [0, 0, 1, 1], [], []>} : vector<2x32xbf16>, vector<32x96xbf16>, vector<2x96xf32> -> vector<2x96xf32>
    %479 = vector.broadcast %18 : vector<1x96xf32> to vector<2x96xf32>
    %480 = arith.addf %478, %479 : vector<2x96xf32>
    %481 = vector.extract_strided_slice %476 {offsets = [0, 0], sizes = [2, 32], strides = [1, 1]} : vector<2x96xf32> to vector<2x32xf32>
    %482 = vector.extract_strided_slice %480 {offsets = [0, 0], sizes = [2, 32], strides = [1, 1]} : vector<2x96xf32> to vector<2x32xf32>
    %483 = arith.addf %481, %482 : vector<2x32xf32>
    %484 = arith.negf %483 : vector<2x32xf32>
    %485 = math.exp %484 : vector<2x32xf32>
    %cst_105 = arith.constant 1.000000e+00 : f32
    %486 = vector.broadcast %cst_105 : f32 to vector<2x32xf32>
    %487 = arith.addf %486, %485 : vector<2x32xf32>
    %488 = arith.divf %486, %487 : vector<2x32xf32>
    %489 = vector.extract_strided_slice %476 {offsets = [0, 32], sizes = [2, 32], strides = [1, 1]} : vector<2x96xf32> to vector<2x32xf32>
    %490 = vector.extract_strided_slice %480 {offsets = [0, 32], sizes = [2, 32], strides = [1, 1]} : vector<2x96xf32> to vector<2x32xf32>
    %491 = arith.addf %489, %490 : vector<2x32xf32>
    %492 = arith.negf %491 : vector<2x32xf32>
    %493 = math.exp %492 : vector<2x32xf32>
    %cst_106 = arith.constant 1.000000e+00 : f32
    %494 = vector.broadcast %cst_106 : f32 to vector<2x32xf32>
    %495 = arith.addf %494, %493 : vector<2x32xf32>
    %496 = arith.divf %494, %495 : vector<2x32xf32>
    %497 = vector.extract_strided_slice %476 {offsets = [0, 64], sizes = [2, 32], strides = [1, 1]} : vector<2x96xf32> to vector<2x32xf32>
    %498 = vector.extract_strided_slice %480 {offsets = [0, 64], sizes = [2, 32], strides = [1, 1]} : vector<2x96xf32> to vector<2x32xf32>
    %499 = arith.mulf %488, %498 : vector<2x32xf32>
    %500 = arith.addf %497, %499 : vector<2x32xf32>
    %501 = math.tanh %500 : vector<2x32xf32>
    %cst_107 = arith.constant 1.000000e+00 : f32
    %502 = vector.broadcast %cst_107 : f32 to vector<2x32xf32>
    %503 = arith.subf %502, %496 : vector<2x32xf32>
    %504 = arith.mulf %503, %501 : vector<2x32xf32>
    %505 = arith.mulf %496, %425 : vector<2x32xf32>
    %506 = arith.addf %504, %505 : vector<2x32xf32>
    %507 = tpu.concatenate %506, %471, %449 in 1 : vector<2x32xf32>, vector<2x32xf32>, vector<2x16xf32> -> vector<2x80xf32>
    %508 = arith.truncf %507 : vector<2x80xf32> to vector<2x80xbf16>
    %cst_108 = arith.constant dense<0.000000e+00> : vector<2x24xf32>
    %509 = tpu.matmul %508, %20, %cst_108 {dimension_numbers = #tpu.dot_dimension_numbers<[1], [0], [0], [1], [0, 0, 1, 1], [], []>} : vector<2x80xbf16>, vector<80x24xbf16>, vector<2x24xf32> -> vector<2x24xf32>
    %510 = vector.broadcast %21 : vector<1x24xf32> to vector<2x24xf32>
    %511 = arith.addf %509, %510 : vector<2x24xf32>
    %cst_109 = arith.constant dense<0xFF800000> : vector<2xf32>
    %512 = vector.multi_reduction <maximumf>, %511, %cst_109 [1] : vector<2x24xf32> to vector<2xf32>
    %513 = vector.shape_cast %512 : vector<2xf32> to vector<2x1xf32>
    %514 = vector.broadcast %513 : vector<2x1xf32> to vector<2x24xf32>
    %515 = arith.cmpf oge, %511, %514 : vector<2x24xf32>
    %c24_i32_110 = arith.constant 24 : i32
    %516 = vector.broadcast %c24_i32_110 : i32 to vector<2x24xi32>
    %517 = arith.select %515, %365, %516 : vector<2x24xi1>, vector<2x24xi32>
    %cst_111 = arith.constant dense<2147483647> : vector<2xi32>
    %518 = vector.multi_reduction <minsi>, %517, %cst_111 [1] : vector<2x24xi32> to vector<2xi32>
    %519 = vector.shape_cast %518 : vector<2xi32> to vector<2x1xi32>
    %520 = vector.broadcast %519 : vector<2x1xi32> to vector<2x24xi32>
    %521 = arith.cmpi eq, %365, %520 : vector<2x24xi32>
    %522 = arith.extui %521 : vector<2x24xi1> to vector<2x24xi32>
    %523 = arith.sitofp %522 : vector<2x24xi32> to vector<2x24xf32>
    %524 = arith.truncf %523 : vector<2x24xf32> to vector<2x24xbf16>
    %cst_112 = arith.constant dense<0.000000e+00> : vector<2x16xf32>
    %525 = tpu.matmul %524, %23, %cst_112 {dimension_numbers = #tpu.dot_dimension_numbers<[1], [0], [0], [1], [0, 0, 1, 1], [], []>} : vector<2x24xbf16>, vector<24x16xbf16>, vector<2x16xf32> -> vector<2x16xf32>
    %c2 = arith.constant 2 : index
    %526 = memref.load %arg2[%c2] : memref<6xi32, #tpu.memory_space<smem>>
    %c0_i32_113 = arith.constant 0 : i32
    %527 = arith.cmpi sgt, %526, %c0_i32_113 : i32
    %528 = vector.extract_strided_slice %25 {offsets = [0, 2, 0], sizes = [2, 1, 16], strides = [1, 1, 1]} : vector<2x6x16xf32> to vector<2x1x16xf32>
    %529 = vector.shape_cast %528 : vector<2x1x16xf32> to vector<2x16xf32>
    %530 = arith.select %527, %529, %525 : vector<2x16xf32>
    %531 = arith.truncf %506 : vector<2x32xf32> to vector<2x32xbf16>
    %cst_114 = arith.constant dense<0.000000e+00> : vector<2x32xf32>
    %532 = tpu.matmul %531, %7, %cst_114 {dimension_numbers = #tpu.dot_dimension_numbers<[1], [0], [0], [1], [0, 0, 1, 1], [], []>} : vector<2x32xbf16>, vector<32x32xbf16>, vector<2x32xf32> -> vector<2x32xf32>
    %533 = vector.shape_cast %532 : vector<2x32xf32> to vector<2x1x32xf32>
    %534 = vector.broadcast %533 : vector<2x1x32xf32> to vector<2x8x32xf32>
    %535 = arith.addf %364, %534 : vector<2x8x32xf32>
    %536 = math.tanh %535 : vector<2x8x32xf32>
    %537 = vector.broadcast %12 : vector<1x1x32xf32> to vector<2x8x32xf32>
    %538 = arith.mulf %536, %537 : vector<2x8x32xf32>
    %cst_115 = arith.constant dense<0.000000e+00> : vector<2x8xf32>
    %539 = vector.multi_reduction <add>, %538, %cst_115 [2] : vector<2x8x32xf32> to vector<2x8xf32>
    %cst_116 = arith.constant dense<0xFF800000> : vector<2xf32>
    %540 = vector.multi_reduction <maximumf>, %539, %cst_116 [1] : vector<2x8xf32> to vector<2xf32>
    %541 = vector.shape_cast %540 : vector<2xf32> to vector<2x1xf32>
    %542 = vector.broadcast %541 : vector<2x1xf32> to vector<2x8xf32>
    %543 = arith.subf %539, %542 : vector<2x8xf32>
    %544 = math.exp %543 : vector<2x8xf32>
    %cst_117 = arith.constant dense<0.000000e+00> : vector<2xf32>
    %545 = vector.multi_reduction <add>, %544, %cst_117 [1] : vector<2x8xf32> to vector<2xf32>
    %546 = vector.shape_cast %545 : vector<2xf32> to vector<2x1xf32>
    %547 = vector.broadcast %546 : vector<2x1xf32> to vector<2x8xf32>
    %548 = arith.divf %544, %547 : vector<2x8xf32>
    %549 = vector.shape_cast %548 : vector<2x8xf32> to vector<2x8x1xf32>
    %550 = vector.broadcast %549 : vector<2x8x1xf32> to vector<2x8x32xf32>
    %551 = arith.mulf %550, %355 : vector<2x8x32xf32>
    %cst_118 = arith.constant dense<0.000000e+00> : vector<2x32xf32>
    %552 = vector.multi_reduction <add>, %551, %cst_118 [1] : vector<2x8x32xf32> to vector<2x32xf32>
    %553 = tpu.concatenate %530, %552 in 1 : vector<2x16xf32>, vector<2x32xf32> -> vector<2x48xf32>
    %554 = arith.truncf %553 : vector<2x48xf32> to vector<2x48xbf16>
    %cst_119 = arith.constant dense<0.000000e+00> : vector<2x96xf32>
    %555 = tpu.matmul %554, %14, %cst_119 {dimension_numbers = #tpu.dot_dimension_numbers<[1], [0], [0], [1], [0, 0, 1, 1], [], []>} : vector<2x48xbf16>, vector<48x96xbf16>, vector<2x96xf32> -> vector<2x96xf32>
    %556 = vector.broadcast %17 : vector<1x96xf32> to vector<2x96xf32>
    %557 = arith.addf %555, %556 : vector<2x96xf32>
    %558 = arith.truncf %506 : vector<2x32xf32> to vector<2x32xbf16>
    %cst_120 = arith.constant dense<0.000000e+00> : vector<2x96xf32>
    %559 = tpu.matmul %558, %16, %cst_120 {dimension_numbers = #tpu.dot_dimension_numbers<[1], [0], [0], [1], [0, 0, 1, 1], [], []>} : vector<2x32xbf16>, vector<32x96xbf16>, vector<2x96xf32> -> vector<2x96xf32>
    %560 = vector.broadcast %18 : vector<1x96xf32> to vector<2x96xf32>
    %561 = arith.addf %559, %560 : vector<2x96xf32>
    %562 = vector.extract_strided_slice %557 {offsets = [0, 0], sizes = [2, 32], strides = [1, 1]} : vector<2x96xf32> to vector<2x32xf32>
    %563 = vector.extract_strided_slice %561 {offsets = [0, 0], sizes = [2, 32], strides = [1, 1]} : vector<2x96xf32> to vector<2x32xf32>
    %564 = arith.addf %562, %563 : vector<2x32xf32>
    %565 = arith.negf %564 : vector<2x32xf32>
    %566 = math.exp %565 : vector<2x32xf32>
    %cst_121 = arith.constant 1.000000e+00 : f32
    %567 = vector.broadcast %cst_121 : f32 to vector<2x32xf32>
    %568 = arith.addf %567, %566 : vector<2x32xf32>
    %569 = arith.divf %567, %568 : vector<2x32xf32>
    %570 = vector.extract_strided_slice %557 {offsets = [0, 32], sizes = [2, 32], strides = [1, 1]} : vector<2x96xf32> to vector<2x32xf32>
    %571 = vector.extract_strided_slice %561 {offsets = [0, 32], sizes = [2, 32], strides = [1, 1]} : vector<2x96xf32> to vector<2x32xf32>
    %572 = arith.addf %570, %571 : vector<2x32xf32>
    %573 = arith.negf %572 : vector<2x32xf32>
    %574 = math.exp %573 : vector<2x32xf32>
    %cst_122 = arith.constant 1.000000e+00 : f32
    %575 = vector.broadcast %cst_122 : f32 to vector<2x32xf32>
    %576 = arith.addf %575, %574 : vector<2x32xf32>
    %577 = arith.divf %575, %576 : vector<2x32xf32>
    %578 = vector.extract_strided_slice %557 {offsets = [0, 64], sizes = [2, 32], strides = [1, 1]} : vector<2x96xf32> to vector<2x32xf32>
    %579 = vector.extract_strided_slice %561 {offsets = [0, 64], sizes = [2, 32], strides = [1, 1]} : vector<2x96xf32> to vector<2x32xf32>
    %580 = arith.mulf %569, %579 : vector<2x32xf32>
    %581 = arith.addf %578, %580 : vector<2x32xf32>
    %582 = math.tanh %581 : vector<2x32xf32>
    %cst_123 = arith.constant 1.000000e+00 : f32
    %583 = vector.broadcast %cst_123 : f32 to vector<2x32xf32>
    %584 = arith.subf %583, %577 : vector<2x32xf32>
    %585 = arith.mulf %584, %582 : vector<2x32xf32>
    %586 = arith.mulf %577, %506 : vector<2x32xf32>
    %587 = arith.addf %585, %586 : vector<2x32xf32>
    %588 = tpu.concatenate %587, %552, %530 in 1 : vector<2x32xf32>, vector<2x32xf32>, vector<2x16xf32> -> vector<2x80xf32>
    %589 = arith.truncf %588 : vector<2x80xf32> to vector<2x80xbf16>
    %cst_124 = arith.constant dense<0.000000e+00> : vector<2x24xf32>
    %590 = tpu.matmul %589, %20, %cst_124 {dimension_numbers = #tpu.dot_dimension_numbers<[1], [0], [0], [1], [0, 0, 1, 1], [], []>} : vector<2x80xbf16>, vector<80x24xbf16>, vector<2x24xf32> -> vector<2x24xf32>
    %591 = vector.broadcast %21 : vector<1x24xf32> to vector<2x24xf32>
    %592 = arith.addf %590, %591 : vector<2x24xf32>
    %cst_125 = arith.constant dense<0xFF800000> : vector<2xf32>
    %593 = vector.multi_reduction <maximumf>, %592, %cst_125 [1] : vector<2x24xf32> to vector<2xf32>
    %594 = vector.shape_cast %593 : vector<2xf32> to vector<2x1xf32>
    %595 = vector.broadcast %594 : vector<2x1xf32> to vector<2x24xf32>
    %596 = arith.cmpf oge, %592, %595 : vector<2x24xf32>
    %c24_i32_126 = arith.constant 24 : i32
    %597 = vector.broadcast %c24_i32_126 : i32 to vector<2x24xi32>
    %598 = arith.select %596, %365, %597 : vector<2x24xi1>, vector<2x24xi32>
    %cst_127 = arith.constant dense<2147483647> : vector<2xi32>
    %599 = vector.multi_reduction <minsi>, %598, %cst_127 [1] : vector<2x24xi32> to vector<2xi32>
    %600 = vector.shape_cast %599 : vector<2xi32> to vector<2x1xi32>
    %601 = vector.broadcast %600 : vector<2x1xi32> to vector<2x24xi32>
    %602 = arith.cmpi eq, %365, %601 : vector<2x24xi32>
    %603 = arith.extui %602 : vector<2x24xi1> to vector<2x24xi32>
    %604 = arith.sitofp %603 : vector<2x24xi32> to vector<2x24xf32>
    %605 = arith.truncf %604 : vector<2x24xf32> to vector<2x24xbf16>
    %cst_128 = arith.constant dense<0.000000e+00> : vector<2x16xf32>
    %606 = tpu.matmul %605, %23, %cst_128 {dimension_numbers = #tpu.dot_dimension_numbers<[1], [0], [0], [1], [0, 0, 1, 1], [], []>} : vector<2x24xbf16>, vector<24x16xbf16>, vector<2x16xf32> -> vector<2x16xf32>
    %c3 = arith.constant 3 : index
    %607 = memref.load %arg2[%c3] : memref<6xi32, #tpu.memory_space<smem>>
    %c0_i32_129 = arith.constant 0 : i32
    %608 = arith.cmpi sgt, %607, %c0_i32_129 : i32
    %609 = vector.extract_strided_slice %25 {offsets = [0, 3, 0], sizes = [2, 1, 16], strides = [1, 1, 1]} : vector<2x6x16xf32> to vector<2x1x16xf32>
    %610 = vector.shape_cast %609 : vector<2x1x16xf32> to vector<2x16xf32>
    %611 = arith.select %608, %610, %606 : vector<2x16xf32>
    %612 = arith.truncf %587 : vector<2x32xf32> to vector<2x32xbf16>
    %cst_130 = arith.constant dense<0.000000e+00> : vector<2x32xf32>
    %613 = tpu.matmul %612, %7, %cst_130 {dimension_numbers = #tpu.dot_dimension_numbers<[1], [0], [0], [1], [0, 0, 1, 1], [], []>} : vector<2x32xbf16>, vector<32x32xbf16>, vector<2x32xf32> -> vector<2x32xf32>
    %614 = vector.shape_cast %613 : vector<2x32xf32> to vector<2x1x32xf32>
    %615 = vector.broadcast %614 : vector<2x1x32xf32> to vector<2x8x32xf32>
    %616 = arith.addf %364, %615 : vector<2x8x32xf32>
    %617 = math.tanh %616 : vector<2x8x32xf32>
    %618 = vector.broadcast %12 : vector<1x1x32xf32> to vector<2x8x32xf32>
    %619 = arith.mulf %617, %618 : vector<2x8x32xf32>
    %cst_131 = arith.constant dense<0.000000e+00> : vector<2x8xf32>
    %620 = vector.multi_reduction <add>, %619, %cst_131 [2] : vector<2x8x32xf32> to vector<2x8xf32>
    %cst_132 = arith.constant dense<0xFF800000> : vector<2xf32>
    %621 = vector.multi_reduction <maximumf>, %620, %cst_132 [1] : vector<2x8xf32> to vector<2xf32>
    %622 = vector.shape_cast %621 : vector<2xf32> to vector<2x1xf32>
    %623 = vector.broadcast %622 : vector<2x1xf32> to vector<2x8xf32>
    %624 = arith.subf %620, %623 : vector<2x8xf32>
    %625 = math.exp %624 : vector<2x8xf32>
    %cst_133 = arith.constant dense<0.000000e+00> : vector<2xf32>
    %626 = vector.multi_reduction <add>, %625, %cst_133 [1] : vector<2x8xf32> to vector<2xf32>
    %627 = vector.shape_cast %626 : vector<2xf32> to vector<2x1xf32>
    %628 = vector.broadcast %627 : vector<2x1xf32> to vector<2x8xf32>
    %629 = arith.divf %625, %628 : vector<2x8xf32>
    %630 = vector.shape_cast %629 : vector<2x8xf32> to vector<2x8x1xf32>
    %631 = vector.broadcast %630 : vector<2x8x1xf32> to vector<2x8x32xf32>
    %632 = arith.mulf %631, %355 : vector<2x8x32xf32>
    %cst_134 = arith.constant dense<0.000000e+00> : vector<2x32xf32>
    %633 = vector.multi_reduction <add>, %632, %cst_134 [1] : vector<2x8x32xf32> to vector<2x32xf32>
    %634 = tpu.concatenate %611, %633 in 1 : vector<2x16xf32>, vector<2x32xf32> -> vector<2x48xf32>
    %635 = arith.truncf %634 : vector<2x48xf32> to vector<2x48xbf16>
    %cst_135 = arith.constant dense<0.000000e+00> : vector<2x96xf32>
    %636 = tpu.matmul %635, %14, %cst_135 {dimension_numbers = #tpu.dot_dimension_numbers<[1], [0], [0], [1], [0, 0, 1, 1], [], []>} : vector<2x48xbf16>, vector<48x96xbf16>, vector<2x96xf32> -> vector<2x96xf32>
    %637 = vector.broadcast %17 : vector<1x96xf32> to vector<2x96xf32>
    %638 = arith.addf %636, %637 : vector<2x96xf32>
    %639 = arith.truncf %587 : vector<2x32xf32> to vector<2x32xbf16>
    %cst_136 = arith.constant dense<0.000000e+00> : vector<2x96xf32>
    %640 = tpu.matmul %639, %16, %cst_136 {dimension_numbers = #tpu.dot_dimension_numbers<[1], [0], [0], [1], [0, 0, 1, 1], [], []>} : vector<2x32xbf16>, vector<32x96xbf16>, vector<2x96xf32> -> vector<2x96xf32>
    %641 = vector.broadcast %18 : vector<1x96xf32> to vector<2x96xf32>
    %642 = arith.addf %640, %641 : vector<2x96xf32>
    %643 = vector.extract_strided_slice %638 {offsets = [0, 0], sizes = [2, 32], strides = [1, 1]} : vector<2x96xf32> to vector<2x32xf32>
    %644 = vector.extract_strided_slice %642 {offsets = [0, 0], sizes = [2, 32], strides = [1, 1]} : vector<2x96xf32> to vector<2x32xf32>
    %645 = arith.addf %643, %644 : vector<2x32xf32>
    %646 = arith.negf %645 : vector<2x32xf32>
    %647 = math.exp %646 : vector<2x32xf32>
    %cst_137 = arith.constant 1.000000e+00 : f32
    %648 = vector.broadcast %cst_137 : f32 to vector<2x32xf32>
    %649 = arith.addf %648, %647 : vector<2x32xf32>
    %650 = arith.divf %648, %649 : vector<2x32xf32>
    %651 = vector.extract_strided_slice %638 {offsets = [0, 32], sizes = [2, 32], strides = [1, 1]} : vector<2x96xf32> to vector<2x32xf32>
    %652 = vector.extract_strided_slice %642 {offsets = [0, 32], sizes = [2, 32], strides = [1, 1]} : vector<2x96xf32> to vector<2x32xf32>
    %653 = arith.addf %651, %652 : vector<2x32xf32>
    %654 = arith.negf %653 : vector<2x32xf32>
    %655 = math.exp %654 : vector<2x32xf32>
    %cst_138 = arith.constant 1.000000e+00 : f32
    %656 = vector.broadcast %cst_138 : f32 to vector<2x32xf32>
    %657 = arith.addf %656, %655 : vector<2x32xf32>
    %658 = arith.divf %656, %657 : vector<2x32xf32>
    %659 = vector.extract_strided_slice %638 {offsets = [0, 64], sizes = [2, 32], strides = [1, 1]} : vector<2x96xf32> to vector<2x32xf32>
    %660 = vector.extract_strided_slice %642 {offsets = [0, 64], sizes = [2, 32], strides = [1, 1]} : vector<2x96xf32> to vector<2x32xf32>
    %661 = arith.mulf %650, %660 : vector<2x32xf32>
    %662 = arith.addf %659, %661 : vector<2x32xf32>
    %663 = math.tanh %662 : vector<2x32xf32>
    %cst_139 = arith.constant 1.000000e+00 : f32
    %664 = vector.broadcast %cst_139 : f32 to vector<2x32xf32>
    %665 = arith.subf %664, %658 : vector<2x32xf32>
    %666 = arith.mulf %665, %663 : vector<2x32xf32>
    %667 = arith.mulf %658, %587 : vector<2x32xf32>
    %668 = arith.addf %666, %667 : vector<2x32xf32>
    %669 = tpu.concatenate %668, %633, %611 in 1 : vector<2x32xf32>, vector<2x32xf32>, vector<2x16xf32> -> vector<2x80xf32>
    %670 = arith.truncf %669 : vector<2x80xf32> to vector<2x80xbf16>
    %cst_140 = arith.constant dense<0.000000e+00> : vector<2x24xf32>
    %671 = tpu.matmul %670, %20, %cst_140 {dimension_numbers = #tpu.dot_dimension_numbers<[1], [0], [0], [1], [0, 0, 1, 1], [], []>} : vector<2x80xbf16>, vector<80x24xbf16>, vector<2x24xf32> -> vector<2x24xf32>
    %672 = vector.broadcast %21 : vector<1x24xf32> to vector<2x24xf32>
    %673 = arith.addf %671, %672 : vector<2x24xf32>
    %cst_141 = arith.constant dense<0xFF800000> : vector<2xf32>
    %674 = vector.multi_reduction <maximumf>, %673, %cst_141 [1] : vector<2x24xf32> to vector<2xf32>
    %675 = vector.shape_cast %674 : vector<2xf32> to vector<2x1xf32>
    %676 = vector.broadcast %675 : vector<2x1xf32> to vector<2x24xf32>
    %677 = arith.cmpf oge, %673, %676 : vector<2x24xf32>
    %c24_i32_142 = arith.constant 24 : i32
    %678 = vector.broadcast %c24_i32_142 : i32 to vector<2x24xi32>
    %679 = arith.select %677, %365, %678 : vector<2x24xi1>, vector<2x24xi32>
    %cst_143 = arith.constant dense<2147483647> : vector<2xi32>
    %680 = vector.multi_reduction <minsi>, %679, %cst_143 [1] : vector<2x24xi32> to vector<2xi32>
    %681 = vector.shape_cast %680 : vector<2xi32> to vector<2x1xi32>
    %682 = vector.broadcast %681 : vector<2x1xi32> to vector<2x24xi32>
    %683 = arith.cmpi eq, %365, %682 : vector<2x24xi32>
    %684 = arith.extui %683 : vector<2x24xi1> to vector<2x24xi32>
    %685 = arith.sitofp %684 : vector<2x24xi32> to vector<2x24xf32>
    %686 = arith.truncf %685 : vector<2x24xf32> to vector<2x24xbf16>
    %cst_144 = arith.constant dense<0.000000e+00> : vector<2x16xf32>
    %687 = tpu.matmul %686, %23, %cst_144 {dimension_numbers = #tpu.dot_dimension_numbers<[1], [0], [0], [1], [0, 0, 1, 1], [], []>} : vector<2x24xbf16>, vector<24x16xbf16>, vector<2x16xf32> -> vector<2x16xf32>
    %c4 = arith.constant 4 : index
    %688 = memref.load %arg2[%c4] : memref<6xi32, #tpu.memory_space<smem>>
    %c0_i32_145 = arith.constant 0 : i32
    %689 = arith.cmpi sgt, %688, %c0_i32_145 : i32
    %690 = vector.extract_strided_slice %25 {offsets = [0, 4, 0], sizes = [2, 1, 16], strides = [1, 1, 1]} : vector<2x6x16xf32> to vector<2x1x16xf32>
    %691 = vector.shape_cast %690 : vector<2x1x16xf32> to vector<2x16xf32>
    %692 = arith.select %689, %691, %687 : vector<2x16xf32>
    %693 = arith.truncf %668 : vector<2x32xf32> to vector<2x32xbf16>
    %cst_146 = arith.constant dense<0.000000e+00> : vector<2x32xf32>
    %694 = tpu.matmul %693, %7, %cst_146 {dimension_numbers = #tpu.dot_dimension_numbers<[1], [0], [0], [1], [0, 0, 1, 1], [], []>} : vector<2x32xbf16>, vector<32x32xbf16>, vector<2x32xf32> -> vector<2x32xf32>
    %695 = vector.shape_cast %694 : vector<2x32xf32> to vector<2x1x32xf32>
    %696 = vector.broadcast %695 : vector<2x1x32xf32> to vector<2x8x32xf32>
    %697 = arith.addf %364, %696 : vector<2x8x32xf32>
    %698 = math.tanh %697 : vector<2x8x32xf32>
    %699 = vector.broadcast %12 : vector<1x1x32xf32> to vector<2x8x32xf32>
    %700 = arith.mulf %698, %699 : vector<2x8x32xf32>
    %cst_147 = arith.constant dense<0.000000e+00> : vector<2x8xf32>
    %701 = vector.multi_reduction <add>, %700, %cst_147 [2] : vector<2x8x32xf32> to vector<2x8xf32>
    %cst_148 = arith.constant dense<0xFF800000> : vector<2xf32>
    %702 = vector.multi_reduction <maximumf>, %701, %cst_148 [1] : vector<2x8xf32> to vector<2xf32>
    %703 = vector.shape_cast %702 : vector<2xf32> to vector<2x1xf32>
    %704 = vector.broadcast %703 : vector<2x1xf32> to vector<2x8xf32>
    %705 = arith.subf %701, %704 : vector<2x8xf32>
    %706 = math.exp %705 : vector<2x8xf32>
    %cst_149 = arith.constant dense<0.000000e+00> : vector<2xf32>
    %707 = vector.multi_reduction <add>, %706, %cst_149 [1] : vector<2x8xf32> to vector<2xf32>
    %708 = vector.shape_cast %707 : vector<2xf32> to vector<2x1xf32>
    %709 = vector.broadcast %708 : vector<2x1xf32> to vector<2x8xf32>
    %710 = arith.divf %706, %709 : vector<2x8xf32>
    %711 = vector.shape_cast %710 : vector<2x8xf32> to vector<2x8x1xf32>
    %712 = vector.broadcast %711 : vector<2x8x1xf32> to vector<2x8x32xf32>
    %713 = arith.mulf %712, %355 : vector<2x8x32xf32>
    %cst_150 = arith.constant dense<0.000000e+00> : vector<2x32xf32>
    %714 = vector.multi_reduction <add>, %713, %cst_150 [1] : vector<2x8x32xf32> to vector<2x32xf32>
    %715 = tpu.concatenate %692, %714 in 1 : vector<2x16xf32>, vector<2x32xf32> -> vector<2x48xf32>
    %716 = arith.truncf %715 : vector<2x48xf32> to vector<2x48xbf16>
    %cst_151 = arith.constant dense<0.000000e+00> : vector<2x96xf32>
    %717 = tpu.matmul %716, %14, %cst_151 {dimension_numbers = #tpu.dot_dimension_numbers<[1], [0], [0], [1], [0, 0, 1, 1], [], []>} : vector<2x48xbf16>, vector<48x96xbf16>, vector<2x96xf32> -> vector<2x96xf32>
    %718 = vector.broadcast %17 : vector<1x96xf32> to vector<2x96xf32>
    %719 = arith.addf %717, %718 : vector<2x96xf32>
    %720 = arith.truncf %668 : vector<2x32xf32> to vector<2x32xbf16>
    %cst_152 = arith.constant dense<0.000000e+00> : vector<2x96xf32>
    %721 = tpu.matmul %720, %16, %cst_152 {dimension_numbers = #tpu.dot_dimension_numbers<[1], [0], [0], [1], [0, 0, 1, 1], [], []>} : vector<2x32xbf16>, vector<32x96xbf16>, vector<2x96xf32> -> vector<2x96xf32>
    %722 = vector.broadcast %18 : vector<1x96xf32> to vector<2x96xf32>
    %723 = arith.addf %721, %722 : vector<2x96xf32>
    %724 = vector.extract_strided_slice %719 {offsets = [0, 0], sizes = [2, 32], strides = [1, 1]} : vector<2x96xf32> to vector<2x32xf32>
    %725 = vector.extract_strided_slice %723 {offsets = [0, 0], sizes = [2, 32], strides = [1, 1]} : vector<2x96xf32> to vector<2x32xf32>
    %726 = arith.addf %724, %725 : vector<2x32xf32>
    %727 = arith.negf %726 : vector<2x32xf32>
    %728 = math.exp %727 : vector<2x32xf32>
    %cst_153 = arith.constant 1.000000e+00 : f32
    %729 = vector.broadcast %cst_153 : f32 to vector<2x32xf32>
    %730 = arith.addf %729, %728 : vector<2x32xf32>
    %731 = arith.divf %729, %730 : vector<2x32xf32>
    %732 = vector.extract_strided_slice %719 {offsets = [0, 32], sizes = [2, 32], strides = [1, 1]} : vector<2x96xf32> to vector<2x32xf32>
    %733 = vector.extract_strided_slice %723 {offsets = [0, 32], sizes = [2, 32], strides = [1, 1]} : vector<2x96xf32> to vector<2x32xf32>
    %734 = arith.addf %732, %733 : vector<2x32xf32>
    %735 = arith.negf %734 : vector<2x32xf32>
    %736 = math.exp %735 : vector<2x32xf32>
    %cst_154 = arith.constant 1.000000e+00 : f32
    %737 = vector.broadcast %cst_154 : f32 to vector<2x32xf32>
    %738 = arith.addf %737, %736 : vector<2x32xf32>
    %739 = arith.divf %737, %738 : vector<2x32xf32>
    %740 = vector.extract_strided_slice %719 {offsets = [0, 64], sizes = [2, 32], strides = [1, 1]} : vector<2x96xf32> to vector<2x32xf32>
    %741 = vector.extract_strided_slice %723 {offsets = [0, 64], sizes = [2, 32], strides = [1, 1]} : vector<2x96xf32> to vector<2x32xf32>
    %742 = arith.mulf %731, %741 : vector<2x32xf32>
    %743 = arith.addf %740, %742 : vector<2x32xf32>
    %744 = math.tanh %743 : vector<2x32xf32>
    %cst_155 = arith.constant 1.000000e+00 : f32
    %745 = vector.broadcast %cst_155 : f32 to vector<2x32xf32>
    %746 = arith.subf %745, %739 : vector<2x32xf32>
    %747 = arith.mulf %746, %744 : vector<2x32xf32>
    %748 = arith.mulf %739, %668 : vector<2x32xf32>
    %749 = arith.addf %747, %748 : vector<2x32xf32>
    %750 = tpu.concatenate %749, %714, %692 in 1 : vector<2x32xf32>, vector<2x32xf32>, vector<2x16xf32> -> vector<2x80xf32>
    %751 = arith.truncf %750 : vector<2x80xf32> to vector<2x80xbf16>
    %cst_156 = arith.constant dense<0.000000e+00> : vector<2x24xf32>
    %752 = tpu.matmul %751, %20, %cst_156 {dimension_numbers = #tpu.dot_dimension_numbers<[1], [0], [0], [1], [0, 0, 1, 1], [], []>} : vector<2x80xbf16>, vector<80x24xbf16>, vector<2x24xf32> -> vector<2x24xf32>
    %753 = vector.broadcast %21 : vector<1x24xf32> to vector<2x24xf32>
    %754 = arith.addf %752, %753 : vector<2x24xf32>
    %755 = vector.shape_cast %368 : vector<2x24xf32> to vector<2x1x24xf32>
    %756 = vector.shape_cast %430 : vector<2x24xf32> to vector<2x1x24xf32>
    %757 = vector.shape_cast %511 : vector<2x24xf32> to vector<2x1x24xf32>
    %758 = vector.shape_cast %592 : vector<2x24xf32> to vector<2x1x24xf32>
    %759 = vector.shape_cast %673 : vector<2x24xf32> to vector<2x1x24xf32>
    %760 = vector.shape_cast %754 : vector<2x24xf32> to vector<2x1x24xf32>
    %761 = tpu.concatenate %755, %756, %757, %758, %759, %760 in 1 : vector<2x1x24xf32>, vector<2x1x24xf32>, vector<2x1x24xf32>, vector<2x1x24xf32>, vector<2x1x24xf32>, vector<2x1x24xf32> -> vector<2x6x24xf32>
    %c0_157 = arith.constant 0 : index
    %c0_158 = arith.constant 0 : index
    %c0_159 = arith.constant 0 : index
    %762 = vector.load %arg18[%c0_157, %c0_158, %c0_159] : memref<2x6x24xf32, #tpu.memory_space<vmem>>, vector<2x6x24xf32>
    tpu.vector_store %arg18[%c0_157, %c0_158, %c0_159], %761 {strides = array<i32>} : memref<2x6x24xf32, #tpu.memory_space<vmem>>, vector<2x6x24xf32>,
    return
  }
}

</mosaic_0001>

<llo_original>
// kernel: seq2seq_forward.1
$region0: #{seq2seq_forward.1}
  #allocation0 [shape = 'u32[]', space=smem, size = 0x4, offset = 0x4, fixed_abs, tag = 'smem constant byte address 0x4 - core index']
  #allocation1 [shape = 'u32[144,128]{1,0:T(1,128)}', space=vmem, size = 0x12000, scoped, tag = 'internal scratch']
  %s0 = inlined_call_operand.vmem [shape: f32[2,8,16], index: 0, kind: input, shape index: {}]
  %s1 = inlined_call_operand.vmem [shape: f32[2,6,16], index: 1, kind: input, shape index: {}]
  %s2 = inlined_call_operand.vmem [shape: s32[6], index: 2, kind: input, shape index: {}]
  %s3 = inlined_call_operand.vmem [shape: f32[24,16], index: 3, kind: input, shape index: {}]
  %s4 = inlined_call_operand.vmem [shape: f32[16,96], index: 4, kind: input, shape index: {}]
  %s5 = inlined_call_operand.vmem [shape: f32[32,96], index: 5, kind: input, shape index: {}]
  %s6 = inlined_call_operand.vmem [shape: f32[1,96], index: 6, kind: input, shape index: {}]
  %s7 = inlined_call_operand.vmem [shape: f32[1,96], index: 7, kind: input, shape index: {}]
  %s8 = inlined_call_operand.vmem [shape: f32[32,32], index: 8, kind: input, shape index: {}]
  %s9 = inlined_call_operand.vmem [shape: f32[32,32], index: 9, kind: input, shape index: {}]
  %s10 = inlined_call_operand.vmem [shape: f32[1,32], index: 10, kind: input, shape index: {}]
  %s11 = inlined_call_operand.vmem [shape: f32[1,32], index: 11, kind: input, shape index: {}]
  %s12 = inlined_call_operand.vmem [shape: f32[48,96], index: 12, kind: input, shape index: {}]
  %s13 = inlined_call_operand.vmem [shape: f32[32,96], index: 13, kind: input, shape index: {}]
  %s14 = inlined_call_operand.vmem [shape: f32[1,96], index: 14, kind: input, shape index: {}]
  %s15 = inlined_call_operand.vmem [shape: f32[1,96], index: 15, kind: input, shape index: {}]
  %s16 = inlined_call_operand.vmem [shape: f32[80,24], index: 16, kind: input, shape index: {}]
  %s17 = inlined_call_operand.vmem [shape: f32[1,24], index: 17, kind: input, shape index: {}]
  %s18 = inlined_call_operand.vmem [shape: f32[2,6,24], index: 18, kind: output, shape index: {}]
  %s19 = sld [smem:[#allocation0]]
  $region86: #{seq2seq_forward.1} parent=0
    _
  %s21 = ssub.s32 1, %s19
  %s22 = scalar_select 0, %s21, %s19
  $region1: #{seq2seq_forward.1} parent=0
    #allocation2 [shape = 'u8[512]{0}', space=smem, size = 0x200, scoped, tag = 'input window, operand 2, single buffered']
    #allocation3 [shape = 's32[1]{0}', space=sflag, size = 0x4, scoped, tag = 'scoped memory for seq2seq_forward.1']
    %23 = vsyncpa [#allocation3], 0
    // Predicated region
    $region2: #{seq2seq_forward.1} parent=1 // pred_check
      _
    $region3: #{seq2seq_forward.1} parent=1 // pred_check_branch
      %25 = sbr.rel (0) target = $region5
    $region4: #{seq2seq_forward.1} parent=1 // pred_region
      _
    $region5: #{seq2seq_forward.1} parent=1 // pred_fallthru
      _
    // Predicated region
    $region6: #{seq2seq_forward.1} parent=1 // pred_check
      _
    $region7: #{seq2seq_forward.1} parent=1 // pred_check_branch
      %27 = sbr.rel (0) target = $region9
    $region8: #{seq2seq_forward.1} parent=1 // pred_region
      _
    $region9: #{seq2seq_forward.1} parent=1 // pred_fallthru
      _
    // Predicated region
    $region10: #{seq2seq_forward.1} parent=1 // pred_check
      _
    $region11: #{seq2seq_forward.1} parent=1 // pred_check_branch
      %29 = sbr.rel (0) target = $region13
    $region12: #{seq2seq_forward.1} parent=1 // pred_region
      %s31 = ssub.s32 16, 16
      %32 = vsyncadd [#allocation3], %s31
      %s34 = sshll.u32 %s2, 4
      %s35 = int_to_ptr.vmem [resolvable:$true] %s34
      %37 = dma.vmem_to_smem %s35, 16, [#allocation2], [#allocation3]
    $region13: #{seq2seq_forward.1} parent=1 // pred_fallthru
      _
    // Predicated region
    $region14: #{seq2seq_forward.1} parent=1 // pred_check
      _
    $region15: #{seq2seq_forward.1} parent=1 // pred_check_branch
      %39 = sbr.rel (0) target = $region17
    $region16: #{seq2seq_forward.1} parent=1 // pred_region
      _
    $region17: #{seq2seq_forward.1} parent=1 // pred_fallthru
      _
    // Predicated region
    $region18: #{seq2seq_forward.1} parent=1 // pred_check
      _
    $region19: #{seq2seq_forward.1} parent=1 // pred_check_branch
      %41 = sbr.rel (0) target = $region21
    $region20: #{seq2seq_forward.1} parent=1 // pred_region
      _
    $region21: #{seq2seq_forward.1} parent=1 // pred_fallthru
      _
    // Predicated region
    $region22: #{seq2seq_forward.1} parent=1 // pred_check
      _
    $region23: #{seq2seq_forward.1} parent=1 // pred_check_branch
      %43 = sbr.rel (0) target = $region25
    $region24: #{seq2seq_forward.1} parent=1 // pred_region
      _
    $region25: #{seq2seq_forward.1} parent=1 // pred_fallthru
      _
    // Predicated region
    $region26: #{seq2seq_forward.1} parent=1 // pred_check
      _
    $region27: #{seq2seq_forward.1} parent=1 // pred_check_branch
      %45 = sbr.rel (0) target = $region29
    $region28: #{seq2seq_forward.1} parent=1 // pred_region
      _
    $region29: #{seq2seq_forward.1} parent=1 // pred_fallthru
      _
    // Predicated region
    $region30: #{seq2seq_forward.1} parent=1 // pred_check
      _
    $region31: #{seq2seq_forward.1} parent=1 // pred_check_branch
      %47 = sbr.rel (0) target = $region33
    $region32: #{seq2seq_forward.1} parent=1 // pred_region
      _
    $region33: #{seq2seq_forward.1} parent=1 // pred_fallthru
      _
    // Predicated region
    $region34: #{seq2seq_forward.1} parent=1 // pred_check
      _
    $region35: #{seq2seq_forward.1} parent=1 // pred_check_branch
      %49 = sbr.rel (0) target = $region37
    $region36: #{seq2seq_forward.1} parent=1 // pred_region
      _
    $region37: #{seq2seq_forward.1} parent=1 // pred_fallthru
      _
    // Predicated region
    $region38: #{seq2seq_forward.1} parent=1 // pred_check
      _
    $region39: #{seq2seq_forward.1} parent=1 // pred_check_branch
      %51 = sbr.rel (0) target = $region41
    $region40: #{seq2seq_forward.1} parent=1 // pred_region
      _
    $region41: #{seq2seq_forward.1} parent=1 // pred_fallthru
      _
    // Predicated region
    $region42: #{seq2seq_forward.1} parent=1 // pred_check
      _
    $region43: #{seq2seq_forward.1} parent=1 // pred_check_branch
      %53 = sbr.rel (0) target = $region45
    $region44: #{seq2seq_forward.1} parent=1 // pred_region
      _
    $region45: #{seq2seq_forward.1} parent=1 // pred_fallthru
      _
    // Predicated region
    $region46: #{seq2seq_forward.1} parent=1 // pred_check
      _
    $region47: #{seq2seq_forward.1} parent=1 // pred_check_branch
      %55 = sbr.rel (0) target = $region49
    $region48: #{seq2seq_forward.1} parent=1 // pred_region
      _
    $region49: #{seq2seq_forward.1} parent=1 // pred_fallthru
      _
    // Predicated region
    $region50: #{seq2seq_forward.1} parent=1 // pred_check
      _
    $region51: #{seq2seq_forward.1} parent=1 // pred_check_branch
      %57 = sbr.rel (0) target = $region53
    $region52: #{seq2seq_forward.1} parent=1 // pred_region
      _
    $region53: #{seq2seq_forward.1} parent=1 // pred_fallthru
      _
    // Predicated region
    $region54: #{seq2seq_forward.1} parent=1 // pred_check
      _
    $region55: #{seq2seq_forward.1} parent=1 // pred_check_branch
      %59 = sbr.rel (0) target = $region57
    $region56: #{seq2seq_forward.1} parent=1 // pred_region
      _
    $region57: #{seq2seq_forward.1} parent=1 // pred_fallthru
      _
    // Predicated region
    $region58: #{seq2seq_forward.1} parent=1 // pred_check
      _
    $region59: #{seq2seq_forward.1} parent=1 // pred_check_branch
      %61 = sbr.rel (0) target = $region61
    $region60: #{seq2seq_forward.1} parent=1 // pred_region
      _
    $region61: #{seq2seq_forward.1} parent=1 // pred_fallthru
      _
    // Predicated region
    $region62: #{seq2seq_forward.1} parent=1 // pred_check
      _
    $region63: #{seq2seq_forward.1} parent=1 // pred_check_branch
      %63 = sbr.rel (0) target = $region65
    $region64: #{seq2seq_forward.1} parent=1 // pred_region
      _
    $region65: #{seq2seq_forward.1} parent=1 // pred_fallthru
      _
    // Predicated region
    $region66: #{seq2seq_forward.1} parent=1 // pred_check
      _
    $region67: #{seq2seq_forward.1} parent=1 // pred_check_branch
      %65 = sbr.rel (0) target = $region69
    $region68: #{seq2seq_forward.1} parent=1 // pred_region
      _
    $region69: #{seq2seq_forward.1} parent=1 // pred_fallthru
      _
    // Predicated region
    $region70: #{seq2seq_forward.1} parent=1 // pred_check
      _
    $region71: #{seq2seq_forward.1} parent=1 // pred_check_branch
      %67 = sbr.rel (0) target = $region73
    $region72: #{seq2seq_forward.1} parent=1 // pred_region
      _
    $region73: #{seq2seq_forward.1} parent=1 // pred_fallthru
      _
    // Predicated region
    $region74: #{seq2seq_forward.1} parent=1 // pred_check
      _
    $region75: #{seq2seq_forward.1} parent=1 // pred_check_branch
      %69 = sbr.rel (0) target = $region77
    $region76: #{seq2seq_forward.1} parent=1 // pred_region
      %70 = dma.done [#allocation3], 16
    $region77: #{seq2seq_forward.1} parent=1 // pred_fallthru
      _
    %71 = sfence
    %v73 = vld [vmem:[%s4] sm:$0xff]
    %v74 = vld [vmem:[%s4 + $0x8] sm:$0xff]
    %v75 = vpack.c.bf16 %v74, %v73
    %v76 = vld [vmem:[%s5] sm:$0xff]
    %v77 = vld [vmem:[%s5 + $0x8] sm:$0xff]
    %v78 = vld [vmem:[%s5 + $0x10] sm:$0xff]
    %v79 = vld [vmem:[%s5 + $0x18] sm:$0xff]
    %v80 = vpack.c.bf16 %v77, %v76
    %v81 = vpack.c.bf16 %v79, %v78
    %v82 = vld [vmem:[%s6] sm:$0x1]
    %v83 = vld [vmem:[%s7] sm:$0x1]
    %v84 = vld [vmem:[%s8] sm:$0xff]
    %v85 = vld [vmem:[%s8 + $0x8] sm:$0xff]
    %v86 = vld [vmem:[%s8 + $0x10] sm:$0xff]
    %v87 = vld [vmem:[%s8 + $0x18] sm:$0xff]
    %v88 = vpack.c.bf16 %v85, %v84
    %v89 = vpack.c.bf16 %v87, %v86
    %v90 = vld [vmem:[%s9] sm:$0xff]
    %v91 = vld [vmem:[%s9 + $0x8] sm:$0xff]
    %v92 = vld [vmem:[%s9 + $0x10] sm:$0xff]
    %v93 = vld [vmem:[%s9 + $0x18] sm:$0xff]
    %v94 = vpack.c.bf16 %v91, %v90
    %v95 = vpack.c.bf16 %v93, %v92
    %v96 = vld [vmem:[%s10] sm:$0x1]
    %v97 = vld [vmem:[%s11] sm:$0x1]
    %v98 = vld [vmem:[%s12] sm:$0xff]
    %v99 = vld [vmem:[%s12 + $0x8] sm:$0xff]
    %v100 = vld [vmem:[%s12 + $0x10] sm:$0xff]
    %v101 = vld [vmem:[%s12 + $0x18] sm:$0xff]
    %v102 = vld [vmem:[%s12 + $0x20] sm:$0xff]
    %v103 = vld [vmem:[%s12 + $0x28] sm:$0xff]
    %v104 = vpack.c.bf16 %v99, %v98
    %v105 = vpack.c.bf16 %v101, %v100
    %v106 = vpack.c.bf16 %v103, %v102
    %v107 = vld [vmem:[%s13] sm:$0xff]
    %v108 = vld [vmem:[%s13 + $0x8] sm:$0xff]
    %v109 = vld [vmem:[%s13 + $0x10] sm:$0xff]
    %v110 = vld [vmem:[%s13 + $0x18] sm:$0xff]
    %v111 = vpack.c.bf16 %v108, %v107
    %v112 = vpack.c.bf16 %v110, %v109
    %v113 = vld [vmem:[%s14] sm:$0x1]
    %v114 = vld [vmem:[%s15] sm:$0x1]
    %v115 = vld [vmem:[%s16] sm:$0xff]
    %v116 = vld [vmem:[%s16 + $0x8] sm:$0xff]
    %v117 = vld [vmem:[%s16 + $0x10] sm:$0xff]
    %v118 = vld [vmem:[%s16 + $0x18] sm:$0xff]
    %v119 = vld [vmem:[%s16 + $0x20] sm:$0xff]
    %v120 = vld [vmem:[%s16 + $0x28] sm:$0xff]
    %v121 = vld [vmem:[%s16 + $0x30] sm:$0xff]
    %v122 = vld [vmem:[%s16 + $0x38] sm:$0xff]
    %v123 = vld [vmem:[%s16 + $0x40] sm:$0xff]
    %v124 = vld [vmem:[%s16 + $0x48] sm:$0xff]
    %v125 = vpack.c.bf16 %v116, %v115
    %v126 = vpack.c.bf16 %v118, %v117
    %v127 = vpack.c.bf16 %v120, %v119
    %v128 = vpack.c.bf16 %v122, %v121
    %v129 = vpack.c.bf16 %v124, %v123
    %v130 = vld [vmem:[%s17] sm:$0x1]
    %v131 = vld [vmem:[%s3] sm:$0xff]
    %v132 = vld [vmem:[%s3 + $0x8] sm:$0xff]
    %v133 = vld [vmem:[%s3 + $0x10] sm:$0xff]
    %v134 = vpack.c.bf16 %v132, %v131
    %v135 = vpack.c.bf16 %v133, %v133
    %v136 = vld [vmem:[%s0] sm:$0xff]
    %v137 = vld [vmem:[%s0 + $0x8] sm:$0xff]
    %v138 = vld [vmem:[%s1] sm:$0x3f]
    %v139 = vld [vmem:[%s1 + $0x8] sm:$0x3f]
    %v140 = vpack.c.bf16 %v136, %v136
    %v141 = vpack.c.bf16 %v137, %v137
    %v143 = vlaneseq
    %v144 = vshrl.u32 %v143, 7
    %v145 = vsub.s32 0, %v144
    %v146 = vrot.slane %v82, %v145
    %v150 = vunpack.c.l.b16 %v140
    %v151 = vunpack.c.l.b16 %v141
    %v152 = vrot.slane %v151, 7
    %vm153 = vcmask 1041409
    %v154 = vsel %vm153, %v152, %v150
    %v155 = vpack.c.b16 %v154, %v154
    %vm156 = vcmask 130048
    %v158 = vsel %vm156, %v155, 0
    %160 = vmatprep.subr.bf16.mxu0 0
    %161 = vmatpush1.bf16.msra.mxu0 %v75
    %162 = vmatprep.subr.bf16.mxu0 0
    %163 = vmatpush1.bf16.msra.mxu0 0
    %164 = vmatprep.subr.bf16.mxu0 0
    %165 = vmatpush1.bf16.msra.mxu0 0
    %166 = vmatprep.subr.bf16.mxu0 0
    %167 = vmatpush1.bf16.msra.mxu0 0
    %168 = vmatprep.subr.bf16.mxu0 0
    %169 = vmatpush1.bf16.msra.mxu0 0
    %170 = vmatprep.subr.bf16.mxu0 0
    %171 = vmatpush1.bf16.msra.mxu0 0
    %172 = vmatprep.subr.bf16.mxu0 0
    %173 = vmatpush1.bf16.msra.mxu0 0
    %174 = vmatprep.subr.bf16.mxu0 0
    %175 = vmatpush1.bf16.msra.mxu0 0
    %176 = vmatprep.subr.bf16.mxu0 0
    %177 = vmatpush1.bf16.msra.mxu0 0
    %178 = vmatprep.subr.bf16.mxu0 0
    %179 = vmatpush1.bf16.msra.mxu0 0
    %180 = vmatprep.subr.bf16.mxu0 0
    %181 = vmatpush1.bf16.msra.mxu0 0
    %182 = vmatprep.subr.bf16.mxu0 0
    %183 = vmatpush1.bf16.msra.mxu0 0
    %184 = vmatprep.subr.bf16.mxu0 0
    %185 = vmatpush1.bf16.msra.mxu0 0
    %186 = vmatprep.subr.bf16.mxu0 0
    %187 = vmatpush1.bf16.msra.mxu0 0
    %188 = vmatprep.subr.bf16.mxu0 0
    %189 = vmatpush1.bf16.msra.mxu0 0
    %190 = vmatprep.subr.bf16.mxu0 0
    %191 = vmatpush1.bf16.msra.mxu0 0
    %192 = vmatprep.mubr.bf16.mxu0 0
    %193 = vmatmul.mubr.bf16.gmra.mrb[0].mxu0 %v158
    %v194 = vpop.f32.mrb[0].mxu0
    %v195 = vadd.f32 %v146, %v194
    %v196 = vpop.f32.mrb[0].mxu0
    %v197 = vpop.f32.mrb[0].mxu0
    %v198 = vpop.f32.mrb[0].mxu0
    %199 = vdwg.mxu0
    %v201 = vlaneseq
    %v202 = vshrl.u32 %v201, 7
    %v203 = vsub.s32 0, %v202
    %v204 = vrot.slane %v83, %v203
    %vm206 = vcmask 261120
    %v208 = vsel %vm206, 0, 0
    %210 = vmatprep.subr.bf16.mxu0 0
    %211 = vmatpush1.bf16.msra.mxu0 %v80
    %212 = vmatprep.subr.bf16.mxu0 0
    %213 = vmatpush1.bf16.msra.mxu0 %v81
    %214 = vmatprep.subr.bf16.mxu0 0
    %215 = vmatpush1.bf16.msra.mxu0 0
    %216 = vmatprep.subr.bf16.mxu0 0
    %217 = vmatpush1.bf16.msra.mxu0 0
    %218 = vmatprep.subr.bf16.mxu0 0
    %219 = vmatpush1.bf16.msra.mxu0 0
    %220 = vmatprep.subr.bf16.mxu0 0
    %221 = vmatpush1.bf16.msra.mxu0 0
    %222 = vmatprep.subr.bf16.mxu0 0
    %223 = vmatpush1.bf16.msra.mxu0 0
    %224 = vmatprep.subr.bf16.mxu0 0
    %225 = vmatpush1.bf16.msra.mxu0 0
    %226 = vmatprep.subr.bf16.mxu0 0
    %227 = vmatpush1.bf16.msra.mxu0 0
    %228 = vmatprep.subr.bf16.mxu0 0
    %229 = vmatpush1.bf16.msra.mxu0 0
    %230 = vmatprep.subr.bf16.mxu0 0
    %231 = vmatpush1.bf16.msra.mxu0 0
    %232 = vmatprep.subr.bf16.mxu0 0
    %233 = vmatpush1.bf16.msra.mxu0 0
    %234 = vmatprep.subr.bf16.mxu0 0
    %235 = vmatpush1.bf16.msra.mxu0 0
    %236 = vmatprep.subr.bf16.mxu0 0
    %237 = vmatpush1.bf16.msra.mxu0 0
    %238 = vmatprep.subr.bf16.mxu0 0
    %239 = vmatpush1.bf16.msra.mxu0 0
    %240 = vmatprep.subr.bf16.mxu0 0
    %241 = vmatpush1.bf16.msra.mxu0 0
    %242 = vmatprep.mubr.bf16.mxu0 0
    %243 = vmatmul.mubr.bf16.gmra.mrb[0].mxu0 %v208
    %v244 = vpop.f32.mrb[0].mxu0
    %v245 = vadd.f32 %v204, %v244
    %v246 = vpop.f32.mrb[0].mxu0
    %v247 = vpop.f32.mrb[0].mxu0
    %v248 = vpop.f32.mrb[0].mxu0
    %249 = vdwg.mxu0
    %v250 = vadd.f32 %v195, %v245
    %v251 = vxor.u32 %v250, 2147483648
    %v252 = vmul.f32 %v251, 1.442695
    %v253 = vpow.pop %v252
    %v254 = vadd.f32 %v253, 1.0
    %v255 = vrcp.pop %v254
    %v256 = vmul.f32 1.0, %v255
    %258 = vrot.lane.b32.xlu0 %v245, 64
    %v259 = vpop.permute.xlu0 %258
    %v261 = vmul.f32 %v256, %v259
    %263 = vrot.lane.b32.xlu0 %v261, 64
    %v264 = vpop.permute.xlu0 %263
    %v266 = vadd.f32 %v195, %v264
    %v267 = vtanh.pop %v266
    %v268 = vsub.f32 1.0, %v256
    %270 = vrot.lane.b32.xlu0 %v267, 96
    %v271 = vpop.permute.xlu0 %270
    %v273 = vmul.f32 %v268, %v271
    %v274 = vmul.f32 %v256, 0.0
    %v275 = vadd.f32 %v273, %v274
    %v276 = vpack.c.bf16 %v275, %v275
    %v278 = vlaneseq
    %v279 = vshrl.u32 %v278, 7
    %v280 = vsub.s32 0, %v279
    %v281 = vrot.slane %v96, %v280
    %284 = vrot.lane.b32.xlu0 %v276, 96
    %v285 = vpop.permute.xlu0 %284
    %v287 = vsel %vm206, %v285, 0
    %289 = vmatprep.subr.bf16.mxu0 0
    %290 = vmatpush1.bf16.msra.mxu0 %v94
    %291 = vmatprep.subr.bf16.mxu0 0
    %292 = vmatpush1.bf16.msra.mxu0 %v95
    %293 = vmatprep.subr.bf16.mxu0 0
    %294 = vmatpush1.bf16.msra.mxu0 0
    %295 = vmatprep.subr.bf16.mxu0 0
    %296 = vmatpush1.bf16.msra.mxu0 0
    %297 = vmatprep.subr.bf16.mxu0 0
    %298 = vmatpush1.bf16.msra.mxu0 0
    %299 = vmatprep.subr.bf16.mxu0 0
    %300 = vmatpush1.bf16.msra.mxu0 0
    %301 = vmatprep.subr.bf16.mxu0 0
    %302 = vmatpush1.bf16.msra.mxu0 0
    %303 = vmatprep.subr.bf16.mxu0 0
    %304 = vmatpush1.bf16.msra.mxu0 0
    %305 = vmatprep.subr.bf16.mxu0 0
    %306 = vmatpush1.bf16.msra.mxu0 0
    %307 = vmatprep.subr.bf16.mxu0 0
    %308 = vmatpush1.bf16.msra.mxu0 0
    %309 = vmatprep.subr.bf16.mxu0 0
    %310 = vmatpush1.bf16.msra.mxu0 0
    %311 = vmatprep.subr.bf16.mxu0 0
    %312 = vmatpush1.bf16.msra.mxu0 0
    %313 = vmatprep.subr.bf16.mxu0 0
    %314 = vmatpush1.bf16.msra.mxu0 0
    %315 = vmatprep.subr.bf16.mxu0 0
    %316 = vmatpush1.bf16.msra.mxu0 0
    %317 = vmatprep.subr.bf16.mxu0 0
    %318 = vmatpush1.bf16.msra.mxu0 0
    %319 = vmatprep.subr.bf16.mxu0 0
    %320 = vmatpush1.bf16.msra.mxu0 0
    %321 = vmatprep.mubr.bf16.mxu0 0
    %322 = vmatmul.mubr.bf16.gmra.mrb[0].mxu0 %v287
    %v323 = vpop.f32.mrb[0].mxu0
    %v324 = vadd.f32 %v281, %v323
    %v325 = vpop.f32.mrb[0].mxu0
    %v326 = vpop.f32.mrb[0].mxu0
    %v327 = vpop.f32.mrb[0].mxu0
    %328 = vdwg.mxu0
    %v329 = vrot.slane %v150, 1
    %v330 = vsel %vm153, %v151, %v329
    %v331 = vpack.c.b16 %v330, %v330
    %v333 = vsel %vm156, %v331, 0
    %335 = vmatprep.subr.bf16.mxu0 0
    %336 = vmatpush1.bf16.msra.mxu0 %v75
    %337 = vmatprep.subr.bf16.mxu0 0
    %338 = vmatpush1.bf16.msra.mxu0 0
    %339 = vmatprep.subr.bf16.mxu0 0
    %340 = vmatpush1.bf16.msra.mxu0 0
    %341 = vmatprep.subr.bf16.mxu0 0
    %342 = vmatpush1.bf16.msra.mxu0 0
    %343 = vmatprep.subr.bf16.mxu0 0
    %344 = vmatpush1.bf16.msra.mxu0 0
    %345 = vmatprep.subr.bf16.mxu0 0
    %346 = vmatpush1.bf16.msra.mxu0 0
    %347 = vmatprep.subr.bf16.mxu0 0
    %348 = vmatpush1.bf16.msra.mxu0 0
    %349 = vmatprep.subr.bf16.mxu0 0
    %350 = vmatpush1.bf16.msra.mxu0 0
    %351 = vmatprep.subr.bf16.mxu0 0
    %352 = vmatpush1.bf16.msra.mxu0 0
    %353 = vmatprep.subr.bf16.mxu0 0
    %354 = vmatpush1.bf16.msra.mxu0 0
    %355 = vmatprep.subr.bf16.mxu0 0
    %356 = vmatpush1.bf16.msra.mxu0 0
    %357 = vmatprep.subr.bf16.mxu0 0
    %358 = vmatpush1.bf16.msra.mxu0 0
    %359 = vmatprep.subr.bf16.mxu0 0
    %360 = vmatpush1.bf16.msra.mxu0 0
    %361 = vmatprep.subr.bf16.mxu0 0
    %362 = vmatpush1.bf16.msra.mxu0 0
    %363 = vmatprep.subr.bf16.mxu0 0
    %364 = vmatpush1.bf16.msra.mxu0 0
    %365 = vmatprep.subr.bf16.mxu0 0
    %366 = vmatpush1.bf16.msra.mxu0 0
    %367 = vmatprep.mubr.bf16.mxu0 0
    %368 = vmatmul.mubr.bf16.gmra.mrb[0].mxu0 %v333
    %v369 = vpop.f32.mrb[0].mxu0
    %v370 = vadd.f32 %v146, %v369
    %v371 = vpop.f32.mrb[0].mxu0
    %v372 = vpop.f32.mrb[0].mxu0
    %v373 = vpop.f32.mrb[0].mxu0
    %374 = vdwg.mxu0
    %375 = vmatprep.subr.bf16.mxu0 0
    %376 = vmatpush1.bf16.msra.mxu0 %v80
    %377 = vmatprep.subr.bf16.mxu0 0
    %378 = vmatpush1.bf16.msra.mxu0 %v81
    %379 = vmatprep.subr.bf16.mxu0 0
    %380 = vmatpush1.bf16.msra.mxu0 0
    %381 = vmatprep.subr.bf16.mxu0 0
    %382 = vmatpush1.bf16.msra.mxu0 0
    %383 = vmatprep.subr.bf16.mxu0 0
    %384 = vmatpush1.bf16.msra.mxu0 0
    %385 = vmatprep.subr.bf16.mxu0 0
    %386 = vmatpush1.bf16.msra.mxu0 0
    %387 = vmatprep.subr.bf16.mxu0 0
    %388 = vmatpush1.bf16.msra.mxu0 0
    %389 = vmatprep.subr.bf16.mxu0 0
    %390 = vmatpush1.bf16.msra.mxu0 0
    %391 = vmatprep.subr.bf16.mxu0 0
    %392 = vmatpush1.bf16.msra.mxu0 0
    %393 = vmatprep.subr.bf16.mxu0 0
    %394 = vmatpush1.bf16.msra.mxu0 0
    %395 = vmatprep.subr.bf16.mxu0 0
    %396 = vmatpush1.bf16.msra.mxu0 0
    %397 = vmatprep.subr.bf16.mxu0 0
    %398 = vmatpush1.bf16.msra.mxu0 0
    %399 = vmatprep.subr.bf16.mxu0 0
    %400 = vmatpush1.bf16.msra.mxu0 0
    %401 = vmatprep.subr.bf16.mxu0 0
    %402 = vmatpush1.bf16.msra.mxu0 0
    %403 = vmatprep.subr.bf16.mxu0 0
    %404 = vmatpush1.bf16.msra.mxu0 0
    %405 = vmatprep.subr.bf16.mxu0 0
    %406 = vmatpush1.bf16.msra.mxu0 0
    %407 = vmatprep.mubr.bf16.mxu0 0
    %408 = vmatmul.mubr.bf16.gmra.mrb[0].mxu0 %v287
    %v409 = vpop.f32.mrb[0].mxu0
    %v410 = vadd.f32 %v204, %v409
    %v411 = vpop.f32.mrb[0].mxu0
    %v412 = vpop.f32.mrb[0].mxu0
    %v413 = vpop.f32.mrb[0].mxu0
    %414 = vdwg.mxu0
    %v415 = vadd.f32 %v370, %v410
    %v416 = vxor.u32 %v415, 2147483648
    %v417 = vmul.f32 %v416, 1.442695
    %v418 = vpow.pop %v417
    %v419 = vadd.f32 %v418, 1.0
    %v420 = vrcp.pop %v419
    %v421 = vmul.f32 1.0, %v420
    %423 = vrot.lane.b32.xlu0 %v410, 64
    %v424 = vpop.permute.xlu0 %423
    %v426 = vmul.f32 %v421, %v424
    %428 = vrot.lane.b32.xlu0 %v426, 64
    %v429 = vpop.permute.xlu0 %428
    %v431 = vadd.f32 %v370, %v429
    %v432 = vtanh.pop %v431
    %v433 = vsub.f32 1.0, %v421
    %435 = vrot.lane.b32.xlu0 %v432, 96
    %v436 = vpop.permute.xlu0 %435
    %v438 = vmul.f32 %v433, %v436
    %v439 = vmul.f32 %v421, %v275
    %v440 = vadd.f32 %v438, %v439
    %v441 = vpack.c.bf16 %v440, %v440
    %443 = vrot.lane.b32.xlu0 %v441, 96
    %v444 = vpop.permute.xlu0 %443
    %v446 = vsel %vm206, %v444, 0
    %448 = vmatprep.subr.bf16.mxu0 0
    %449 = vmatpush1.bf16.msra.mxu0 %v94
    %450 = vmatprep.subr.bf16.mxu0 0
    %451 = vmatpush1.bf16.msra.mxu0 %v95
    %452 = vmatprep.subr.bf16.mxu0 0
    %453 = vmatpush1.bf16.msra.mxu0 0
    %454 = vmatprep.subr.bf16.mxu0 0
    %455 = vmatpush1.bf16.msra.mxu0 0
    %456 = vmatprep.subr.bf16.mxu0 0
    %457 = vmatpush1.bf16.msra.mxu0 0
    %458 = vmatprep.subr.bf16.mxu0 0
    %459 = vmatpush1.bf16.msra.mxu0 0
    %460 = vmatprep.subr.bf16.mxu0 0
    %461 = vmatpush1.bf16.msra.mxu0 0
    %462 = vmatprep.subr.bf16.mxu0 0
    %463 = vmatpush1.bf16.msra.mxu0 0
    %464 = vmatprep.subr.bf16.mxu0 0
    %465 = vmatpush1.bf16.msra.mxu0 0
    %466 = vmatprep.subr.bf16.mxu0 0
    %467 = vmatpush1.bf16.msra.mxu0 0
    %468 = vmatprep.subr.bf16.mxu0 0
    %469 = vmatpush1.bf16.msra.mxu0 0
    %470 = vmatprep.subr.bf16.mxu0 0
    %471 = vmatpush1.bf16.msra.mxu0 0
    %472 = vmatprep.subr.bf16.mxu0 0
    %473 = vmatpush1.bf16.msra.mxu0 0
    %474 = vmatprep.subr.bf16.mxu0 0
    %475 = vmatpush1.bf16.msra.mxu0 0
    %476 = vmatprep.subr.bf16.mxu0 0
    %477 = vmatpush1.bf16.msra.mxu0 0
    %478 = vmatprep.subr.bf16.mxu0 0
    %479 = vmatpush1.bf16.msra.mxu0 0
    %480 = vmatprep.mubr.bf16.mxu0 0
    %481 = vmatmul.mubr.bf16.gmra.mrb[0].mxu0 %v446
    %v482 = vpop.f32.mrb[0].mxu0
    %v483 = vadd.f32 %v281, %v482
    %v484 = vpop.f32.mrb[0].mxu0
    %v485 = vpop.f32.mrb[0].mxu0
    %v486 = vpop.f32.mrb[0].mxu0
    %487 = vdwg.mxu0
    %v488 = vrot.slane %v150, 2
    %v489 = vrot.slane %v151, 1
    %v490 = vsel %vm153, %v489, %v488
    %v491 = vpack.c.b16 %v490, %v490
    %v493 = vsel %vm156, %v491, 0
    %495 = vmatprep.subr.bf16.mxu0 0
    %496 = vmatpush1.bf16.msra.mxu0 %v75
    %497 = vmatprep.subr.bf16.mxu0 0
    %498 = vmatpush1.bf16.msra.mxu0 0
    %499 = vmatprep.subr.bf16.mxu0 0
    %500 = vmatpush1.bf16.msra.mxu0 0
    %501 = vmatprep.subr.bf16.mxu0 0
    %502 = vmatpush1.bf16.msra.mxu0 0
    %503 = vmatprep.subr.bf16.mxu0 0
    %504 = vmatpush1.bf16.msra.mxu0 0
    %505 = vmatprep.subr.bf16.mxu0 0
    %506 = vmatpush1.bf16.msra.mxu0 0
    %507 = vmatprep.subr.bf16.mxu0 0
    %508 = vmatpush1.bf16.msra.mxu0 0
    %509 = vmatprep.subr.bf16.mxu0 0
    %510 = vmatpush1.bf16.msra.mxu0 0
    %511 = vmatprep.subr.bf16.mxu0 0
    %512 = vmatpush1.bf16.msra.mxu0 0
    %513 = vmatprep.subr.bf16.mxu0 0
    %514 = vmatpush1.bf16.msra.mxu0 0
    %515 = vmatprep.subr.bf16.mxu0 0
    %516 = vmatpush1.bf16.msra.mxu0 0
    %517 = vmatprep.subr.bf16.mxu0 0
    %518 = vmatpush1.bf16.msra.mxu0 0
    %519 = vmatprep.subr.bf16.mxu0 0
    %520 = vmatpush1.bf16.msra.mxu0 0
    %521 = vmatprep.subr.bf16.mxu0 0
    %522 = vmatpush1.bf16.msra.mxu0 0
    %523 = vmatprep.subr.bf16.mxu0 0
    %524 = vmatpush1.bf16.msra.mxu0 0
    %525 = vmatprep.subr.bf16.mxu0 0
    %526 = vmatpush1.bf16.msra.mxu0 0
    %527 = vmatprep.mubr.bf16.mxu0 0
    %528 = vmatmul.mubr.bf16.gmra.mrb[0].mxu0 %v493
    %v529 = vpop.f32.mrb[0].mxu0
    %v530 = vadd.f32 %v146, %v529
    %v531 = vpop.f32.mrb[0].mxu0
    %v532 = vpop.f32.mrb[0].mxu0
    %v533 = vpop.f32.mrb[0].mxu0
    %534 = vdwg.mxu0
    %535 = vmatprep.subr.bf16.mxu0 0
    %536 = vmatpush1.bf16.msra.mxu0 %v80
    %537 = vmatprep.subr.bf16.mxu0 0
    %538 = vmatpush1.bf16.msra.mxu0 %v81
    %539 = vmatprep.subr.bf16.mxu0 0
    %540 = vmatpush1.bf16.msra.mxu0 0
    %541 = vmatprep.subr.bf16.mxu0 0
    %542 = vmatpush1.bf16.msra.mxu0 0
    %543 = vmatprep.subr.bf16.mxu0 0
    %544 = vmatpush1.bf16.msra.mxu0 0
    %545 = vmatprep.subr.bf16.mxu0 0
    %546 = vmatpush1.bf16.msra.mxu0 0
    %547 = vmatprep.subr.bf16.mxu0 0
    %548 = vmatpush1.bf16.msra.mxu0 0
    %549 = vmatprep.subr.bf16.mxu0 0
    %550 = vmatpush1.bf16.msra.mxu0 0
    %551 = vmatprep.subr.bf16.mxu0 0
    %552 = vmatpush1.bf16.msra.mxu0 0
    %553 = vmatprep.subr.bf16.mxu0 0
    %554 = vmatpush1.bf16.msra.mxu0 0
    %555 = vmatprep.subr.bf16.mxu0 0
    %556 = vmatpush1.bf16.msra.mxu0 0
    %557 = vmatprep.subr.bf16.mxu0 0
    %558 = vmatpush1.bf16.msra.mxu0 0
    %559 = vmatprep.subr.bf16.mxu0 0
    %560 = vmatpush1.bf16.msra.mxu0 0
    %561 = vmatprep.subr.bf16.mxu0 0
    %562 = vmatpush1.bf16.msra.mxu0 0
    %563 = vmatprep.subr.bf16.mxu0 0
    %564 = vmatpush1.bf16.msra.mxu0 0
    %565 = vmatprep.subr.bf16.mxu0 0
    %566 = vmatpush1.bf16.msra.mxu0 0
    %567 = vmatprep.mubr.bf16.mxu0 0
    %568 = vmatmul.mubr.bf16.gmra.mrb[0].mxu0 %v446
    %v569 = vpop.f32.mrb[0].mxu0
    %v570 = vadd.f32 %v204, %v569
    %v571 = vpop.f32.mrb[0].mxu0
    %v572 = vpop.f32.mrb[0].mxu0
    %v573 = vpop.f32.mrb[0].mxu0
    %574 = vdwg.mxu0
    %v575 = vadd.f32 %v530, %v570
    %v576 = vxor.u32 %v575, 2147483648
    %v577 = vmul.f32 %v576, 1.442695
    %v578 = vpow.pop %v577
    %v579 = vadd.f32 %v578, 1.0
    %v580 = vrcp.pop %v579
    %v581 = vmul.f32 1.0, %v580
    %583 = vrot.lane.b32.xlu0 %v570, 64
    %v584 = vpop.permute.xlu0 %583
    %v586 = vmul.f32 %v581, %v584
    %588 = vrot.lane.b32.xlu0 %v586, 64
    %v589 = vpop.permute.xlu0 %588
    %v591 = vadd.f32 %v530, %v589
    %v592 = vtanh.pop %v591
    %v593 = vsub.f32 1.0, %v581
    %595 = vrot.lane.b32.xlu0 %v592, 96
    %v596 = vpop.permute.xlu0 %595
    %v598 = vmul.f32 %v593, %v596
    %v599 = vmul.f32 %v581, %v440
    %v600 = vadd.f32 %v598, %v599
    %v601 = vpack.c.bf16 %v600, %v600
    %603 = vrot.lane.b32.xlu0 %v601, 96
    %v604 = vpop.permute.xlu0 %603
    %v606 = vsel %vm206, %v604, 0
    %608 = vmatprep.subr.bf16.mxu0 0
    %609 = vmatpush1.bf16.msra.mxu0 %v94
    %610 = vmatprep.subr.bf16.mxu0 0
    %611 = vmatpush1.bf16.msra.mxu0 %v95
    %612 = vmatprep.subr.bf16.mxu0 0
    %613 = vmatpush1.bf16.msra.mxu0 0
    %614 = vmatprep.subr.bf16.mxu0 0
    %615 = vmatpush1.bf16.msra.mxu0 0
    %616 = vmatprep.subr.bf16.mxu0 0
    %617 = vmatpush1.bf16.msra.mxu0 0
    %618 = vmatprep.subr.bf16.mxu0 0
    %619 = vmatpush1.bf16.msra.mxu0 0
    %620 = vmatprep.subr.bf16.mxu0 0
    %621 = vmatpush1.bf16.msra.mxu0 0
    %622 = vmatprep.subr.bf16.mxu0 0
    %623 = vmatpush1.bf16.msra.mxu0 0
    %624 = vmatprep.subr.bf16.mxu0 0
    %625 = vmatpush1.bf16.msra.mxu0 0
    %626 = vmatprep.subr.bf16.mxu0 0
    %627 = vmatpush1.bf16.msra.mxu0 0
    %628 = vmatprep.subr.bf16.mxu0 0
    %629 = vmatpush1.bf16.msra.mxu0 0
    %630 = vmatprep.subr.bf16.mxu0 0
    %631 = vmatpush1.bf16.msra.mxu0 0
    %632 = vmatprep.subr.bf16.mxu0 0
    %633 = vmatpush1.bf16.msra.mxu0 0
    %634 = vmatprep.subr.bf16.mxu0 0
    %635 = vmatpush1.bf16.msra.mxu0 0
    %636 = vmatprep.subr.bf16.mxu0 0
    %637 = vmatpush1.bf16.msra.mxu0 0
    %638 = vmatprep.subr.bf16.mxu0 0
    %639 = vmatpush1.bf16.msra.mxu0 0
    %640 = vmatprep.mubr.bf16.mxu0 0
    %641 = vmatmul.mubr.bf16.gmra.mrb[0].mxu0 %v606
    %v642 = vpop.f32.mrb[0].mxu0
    %v643 = vadd.f32 %v281, %v642
    %v644 = vpop.f32.mrb[0].mxu0
    %v645 = vpop.f32.mrb[0].mxu0
    %v646 = vpop.f32.mrb[0].mxu0
    %647 = vdwg.mxu0
    %v648 = vrot.slane %v150, 3
    %v649 = vrot.slane %v151, 2
    %v650 = vsel %vm153, %v649, %v648
    %v651 = vpack.c.b16 %v650, %v650
    %v653 = vsel %vm156, %v651, 0
    %655 = vmatprep.subr.bf16.mxu0 0
    %656 = vmatpush1.bf16.msra.mxu0 %v75
    %657 = vmatprep.subr.bf16.mxu0 0
    %658 = vmatpush1.bf16.msra.mxu0 0
    %659 = vmatprep.subr.bf16.mxu0 0
    %660 = vmatpush1.bf16.msra.mxu0 0
    %661 = vmatprep.subr.bf16.mxu0 0
    %662 = vmatpush1.bf16.msra.mxu0 0
    %663 = vmatprep.subr.bf16.mxu0 0
    %664 = vmatpush1.bf16.msra.mxu0 0
    %665 = vmatprep.subr.bf16.mxu0 0
    %666 = vmatpush1.bf16.msra.mxu0 0
    %667 = vmatprep.subr.bf16.mxu0 0
    %668 = vmatpush1.bf16.msra.mxu0 0
    %669 = vmatprep.subr.bf16.mxu0 0
    %670 = vmatpush1.bf16.msra.mxu0 0
    %671 = vmatprep.subr.bf16.mxu0 0
    %672 = vmatpush1.bf16.msra.mxu0 0
    %673 = vmatprep.subr.bf16.mxu0 0
    %674 = vmatpush1.bf16.msra.mxu0 0
    %675 = vmatprep.subr.bf16.mxu0 0
    %676 = vmatpush1.bf16.msra.mxu0 0
    %677 = vmatprep.subr.bf16.mxu0 0
    %678 = vmatpush1.bf16.msra.mxu0 0
    %679 = vmatprep.subr.bf16.mxu0 0
    %680 = vmatpush1.bf16.msra.mxu0 0
    %681 = vmatprep.subr.bf16.mxu0 0
    %682 = vmatpush1.bf16.msra.mxu0 0
    %683 = vmatprep.subr.bf16.mxu0 0
    %684 = vmatpush1.bf16.msra.mxu0 0
    %685 = vmatprep.subr.bf16.mxu0 0
    %686 = vmatpush1.bf16.msra.mxu0 0
    %687 = vmatprep.mubr.bf16.mxu0 0
    %688 = vmatmul.mubr.bf16.gmra.mrb[0].mxu0 %v653
    %v689 = vpop.f32.mrb[0].mxu0
    %v690 = vadd.f32 %v146, %v689
    %v691 = vpop.f32.mrb[0].mxu0
    %v692 = vpop.f32.mrb[0].mxu0
    %v693 = vpop.f32.mrb[0].mxu0
    %694 = vdwg.mxu0
    %695 = vmatprep.subr.bf16.mxu0 0
    %696 = vmatpush1.bf16.msra.mxu0 %v80
    %697 = vmatprep.subr.bf16.mxu0 0
    %698 = vmatpush1.bf16.msra.mxu0 %v81
    %699 = vmatprep.subr.bf16.mxu0 0
    %700 = vmatpush1.bf16.msra.mxu0 0
    %701 = vmatprep.subr.bf16.mxu0 0
    %702 = vmatpush1.bf16.msra.mxu0 0
    %703 = vmatprep.subr.bf16.mxu0 0
    %704 = vmatpush1.bf16.msra.mxu0 0
    %705 = vmatprep.subr.bf16.mxu0 0
    %706 = vmatpush1.bf16.msra.mxu0 0
    %707 = vmatprep.subr.bf16.mxu0 0
    %708 = vmatpush1.bf16.msra.mxu0 0
    %709 = vmatprep.subr.bf16.mxu0 0
    %710 = vmatpush1.bf16.msra.mxu0 0
    %711 = vmatprep.subr.bf16.mxu0 0
    %712 = vmatpush1.bf16.msra.mxu0 0
    %713 = vmatprep.subr.bf16.mxu0 0
    %714 = vmatpush1.bf16.msra.mxu0 0
    %715 = vmatprep.subr.bf16.mxu0 0
    %716 = vmatpush1.bf16.msra.mxu0 0
    %717 = vmatprep.subr.bf16.mxu0 0
    %718 = vmatpush1.bf16.msra.mxu0 0
    %719 = vmatprep.subr.bf16.mxu0 0
    %720 = vmatpush1.bf16.msra.mxu0 0
    %721 = vmatprep.subr.bf16.mxu0 0
    %722 = vmatpush1.bf16.msra.mxu0 0
    %723 = vmatprep.subr.bf16.mxu0 0
    %724 = vmatpush1.bf16.msra.mxu0 0
    %725 = vmatprep.subr.bf16.mxu0 0
    %726 = vmatpush1.bf16.msra.mxu0 0
    %727 = vmatprep.mubr.bf16.mxu0 0
    %728 = vmatmul.mubr.bf16.gmra.mrb[0].mxu0 %v606
    %v729 = vpop.f32.mrb[0].mxu0
    %v730 = vadd.f32 %v204, %v729
    %v731 = vpop.f32.mrb[0].mxu0
    %v732 = vpop.f32.mrb[0].mxu0
    %v733 = vpop.f32.mrb[0].mxu0
    %734 = vdwg.mxu0
    %v735 = vadd.f32 %v690, %v730
    %v736 = vxor.u32 %v735, 2147483648
    %v737 = vmul.f32 %v736, 1.442695
    %v738 = vpow.pop %v737
    %v739 = vadd.f32 %v738, 1.0
    %v740 = vrcp.pop %v739
    %v741 = vmul.f32 1.0, %v740
    %743 = vrot.lane.b32.xlu0 %v730, 64
    %v744 = vpop.permute.xlu0 %743
    %v746 = vmul.f32 %v741, %v744
    %748 = vrot.lane.b32.xlu0 %v746, 64
    %v749 = vpop.permute.xlu0 %748
    %v751 = vadd.f32 %v690, %v749
    %v752 = vtanh.pop %v751
    %v753 = vsub.f32 1.0, %v741
    %755 = vrot.lane.b32.xlu0 %v752, 96
    %v756 = vpop.permute.xlu0 %755
    %v758 = vmul.f32 %v753, %v756
    %v759 = vmul.f32 %v741, %v600
    %v760 = vadd.f32 %v758, %v759
    %v761 = vpack.c.bf16 %v760, %v760
    %763 = vrot.lane.b32.xlu0 %v761, 96
    %v764 = vpop.permute.xlu0 %763
    %v766 = vsel %vm206, %v764, 0
    %768 = vmatprep.subr.bf16.mxu0 0
    %769 = vmatpush1.bf16.msra.mxu0 %v94
    %770 = vmatprep.subr.bf16.mxu0 0
    %771 = vmatpush1.bf16.msra.mxu0 %v95
    %772 = vmatprep.subr.bf16.mxu0 0
    %773 = vmatpush1.bf16.msra.mxu0 0
    %774 = vmatprep.subr.bf16.mxu0 0
    %775 = vmatpush1.bf16.msra.mxu0 0
    %776 = vmatprep.subr.bf16.mxu0 0
    %777 = vmatpush1.bf16.msra.mxu0 0
    %778 = vmatprep.subr.bf16.mxu0 0
    %779 = vmatpush1.bf16.msra.mxu0 0
    %780 = vmatprep.subr.bf16.mxu0 0
    %781 = vmatpush1.bf16.msra.mxu0 0
    %782 = vmatprep.subr.bf16.mxu0 0
    %783 = vmatpush1.bf16.msra.mxu0 0
    %784 = vmatprep.subr.bf16.mxu0 0
    %785 = vmatpush1.bf16.msra.mxu0 0
    %786 = vmatprep.subr.bf16.mxu0 0
    %787 = vmatpush1.bf16.msra.mxu0 0
    %788 = vmatprep.subr.bf16.mxu0 0
    %789 = vmatpush1.bf16.msra.mxu0 0
    %790 = vmatprep.subr.bf16.mxu0 0
    %791 = vmatpush1.bf16.msra.mxu0 0
    %792 = vmatprep.subr.bf16.mxu0 0
    %793 = vmatpush1.bf16.msra.mxu0 0
    %794 = vmatprep.subr.bf16.mxu0 0
    %795 = vmatpush1.bf16.msra.mxu0 0
    %796 = vmatprep.subr.bf16.mxu0 0
    %797 = vmatpush1.bf16.msra.mxu0 0
    %798 = vmatprep.subr.bf16.mxu0 0
    %799 = vmatpush1.bf16.msra.mxu0 0
    %800 = vmatprep.mubr.bf16.mxu0 0
    %801 = vmatmul.mubr.bf16.gmra.mrb[0].mxu0 %v766
    %v802 = vpop.f32.mrb[0].mxu0
    %v803 = vadd.f32 %v281, %v802
    %v804 = vpop.f32.mrb[0].mxu0
    %v805 = vpop.f32.mrb[0].mxu0
    %v806 = vpop.f32.mrb[0].mxu0
    %807 = vdwg.mxu0
    %v808 = vrot.slane %v150, 4
    %v809 = vrot.slane %v151, 3
    %v810 = vsel %vm153, %v809, %v808
    %v811 = vpack.c.b16 %v810, %v810
    %v813 = vsel %vm156, %v811, 0
    %815 = vmatprep.subr.bf16.mxu0 0
    %816 = vmatpush1.bf16.msra.mxu0 %v75
    %817 = vmatprep.subr.bf16.mxu0 0
    %818 = vmatpush1.bf16.msra.mxu0 0
    %819 = vmatprep.subr.bf16.mxu0 0
    %820 = vmatpush1.bf16.msra.mxu0 0
    %821 = vmatprep.subr.bf16.mxu0 0
    %822 = vmatpush1.bf16.msra.mxu0 0
    %823 = vmatprep.subr.bf16.mxu0 0
    %824 = vmatpush1.bf16.msra.mxu0 0
    %825 = vmatprep.subr.bf16.mxu0 0
    %826 = vmatpush1.bf16.msra.mxu0 0
    %827 = vmatprep.subr.bf16.mxu0 0
    %828 = vmatpush1.bf16.msra.mxu0 0
    %829 = vmatprep.subr.bf16.mxu0 0
    %830 = vmatpush1.bf16.msra.mxu0 0
    %831 = vmatprep.subr.bf16.mxu0 0
    %832 = vmatpush1.bf16.msra.mxu0 0
    %833 = vmatprep.subr.bf16.mxu0 0
    %834 = vmatpush1.bf16.msra.mxu0 0
    %835 = vmatprep.subr.bf16.mxu0 0
    %836 = vmatpush1.bf16.msra.mxu0 0
    %837 = vmatprep.subr.bf16.mxu0 0
    %838 = vmatpush1.bf16.msra.mxu0 0
    %839 = vmatprep.subr.bf16.mxu0 0
    %840 = vmatpush1.bf16.msra.mxu0 0
    %841 = vmatprep.subr.bf16.mxu0 0
    %842 = vmatpush1.bf16.msra.mxu0 0
    %843 = vmatprep.subr.bf16.mxu0 0
    %844 = vmatpush1.bf16.msra.mxu0 0
    %845 = vmatprep.subr.bf16.mxu0 0
    %846 = vmatpush1.bf16.msra.mxu0 0
    %847 = vmatprep.mubr.bf16.mxu0 0
    %848 = vmatmul.mubr.bf16.gmra.mrb[0].mxu0 %v813
    %v849 = vpop.f32.mrb[0].mxu0
    %v850 = vadd.f32 %v146, %v849
    %v851 = vpop.f32.mrb[0].mxu0
    %v852 = vpop.f32.mrb[0].mxu0
    %v853 = vpop.f32.mrb[0].mxu0
    %854 = vdwg.mxu0
    %855 = vmatprep.subr.bf16.mxu0 0
    %856 = vmatpush1.bf16.msra.mxu0 %v80
    %857 = vmatprep.subr.bf16.mxu0 0
    %858 = vmatpush1.bf16.msra.mxu0 %v81
    %859 = vmatprep.subr.bf16.mxu0 0
    %860 = vmatpush1.bf16.msra.mxu0 0
    %861 = vmatprep.subr.bf16.mxu0 0
    %862 = vmatpush1.bf16.msra.mxu0 0
    %863 = vmatprep.subr.bf16.mxu0 0
    %864 = vmatpush1.bf16.msra.mxu0 0
    %865 = vmatprep.subr.bf16.mxu0 0
    %866 = vmatpush1.bf16.msra.mxu0 0
    %867 = vmatprep.subr.bf16.mxu0 0
    %868 = vmatpush1.bf16.msra.mxu0 0
    %869 = vmatprep.subr.bf16.mxu0 0
    %870 = vmatpush1.bf16.msra.mxu0 0
    %871 = vmatprep.subr.bf16.mxu0 0
    %872 = vmatpush1.bf16.msra.mxu0 0
    %873 = vmatprep.subr.bf16.mxu0 0
    %874 = vmatpush1.bf16.msra.mxu0 0
    %875 = vmatprep.subr.bf16.mxu0 0
    %876 = vmatpush1.bf16.msra.mxu0 0
    %877 = vmatprep.subr.bf16.mxu0 0
    %878 = vmatpush1.bf16.msra.mxu0 0
    %879 = vmatprep.subr.bf16.mxu0 0
    %880 = vmatpush1.bf16.msra.mxu0 0
    %881 = vmatprep.subr.bf16.mxu0 0
    %882 = vmatpush1.bf16.msra.mxu0 0
    %883 = vmatprep.subr.bf16.mxu0 0
    %884 = vmatpush1.bf16.msra.mxu0 0
    %885 = vmatprep.subr.bf16.mxu0 0
    %886 = vmatpush1.bf16.msra.mxu0 0
    %887 = vmatprep.mubr.bf16.mxu0 0
    %888 = vmatmul.mubr.bf16.gmra.mrb[0].mxu0 %v766
    %v889 = vpop.f32.mrb[0].mxu0
    %v890 = vadd.f32 %v204, %v889
    %v891 = vpop.f32.mrb[0].mxu0
    %v892 = vpop.f32.mrb[0].mxu0
    %v893 = vpop.f32.mrb[0].mxu0
    %894 = vdwg.mxu0
    %v895 = vadd.f32 %v850, %v890
    %v896 = vxor.u32 %v895, 2147483648
    %v897 = vmul.f32 %v896, 1.442695
    %v898 = vpow.pop %v897
    %v899 = vadd.f32 %v898, 1.0
    %v900 = vrcp.pop %v899
    %v901 = vmul.f32 1.0, %v900
    %903 = vrot.lane.b32.xlu0 %v890, 64
    %v904 = vpop.permute.xlu0 %903
    %v906 = vmul.f32 %v901, %v904
    %908 = vrot.lane.b32.xlu0 %v906, 64
    %v909 = vpop.permute.xlu0 %908
    %v911 = vadd.f32 %v850, %v909
    %v912 = vtanh.pop %v911
    %v913 = vsub.f32 1.0, %v901
    %915 = vrot.lane.b32.xlu0 %v912, 96
    %v916 = vpop.permute.xlu0 %915
    %v918 = vmul.f32 %v913, %v916
    %v919 = vmul.f32 %v901, %v760
    %v920 = vadd.f32 %v918, %v919
    %v921 = vpack.c.bf16 %v920, %v920
    %923 = vrot.lane.b32.xlu0 %v921, 96
    %v924 = vpop.permute.xlu0 %923
    %v926 = vsel %vm206, %v924, 0
    %928 = vmatprep.subr.bf16.mxu0 0
    %929 = vmatpush1.bf16.msra.mxu0 %v94
    %930 = vmatprep.subr.bf16.mxu0 0
    %931 = vmatpush1.bf16.msra.mxu0 %v95
    %932 = vmatprep.subr.bf16.mxu0 0
    %933 = vmatpush1.bf16.msra.mxu0 0
    %934 = vmatprep.subr.bf16.mxu0 0
    %935 = vmatpush1.bf16.msra.mxu0 0
    %936 = vmatprep.subr.bf16.mxu0 0
    %937 = vmatpush1.bf16.msra.mxu0 0
    %938 = vmatprep.subr.bf16.mxu0 0
    %939 = vmatpush1.bf16.msra.mxu0 0
    %940 = vmatprep.subr.bf16.mxu0 0
    %941 = vmatpush1.bf16.msra.mxu0 0
    %942 = vmatprep.subr.bf16.mxu0 0
    %943 = vmatpush1.bf16.msra.mxu0 0
    %944 = vmatprep.subr.bf16.mxu0 0
    %945 = vmatpush1.bf16.msra.mxu0 0
    %946 = vmatprep.subr.bf16.mxu0 0
    %947 = vmatpush1.bf16.msra.mxu0 0
    %948 = vmatprep.subr.bf16.mxu0 0
    %949 = vmatpush1.bf16.msra.mxu0 0
    %950 = vmatprep.subr.bf16.mxu0 0
    %951 = vmatpush1.bf16.msra.mxu0 0
    %952 = vmatprep.subr.bf16.mxu0 0
    %953 = vmatpush1.bf16.msra.mxu0 0
    %954 = vmatprep.subr.bf16.mxu0 0
    %955 = vmatpush1.bf16.msra.mxu0 0
    %956 = vmatprep.subr.bf16.mxu0 0
    %957 = vmatpush1.bf16.msra.mxu0 0
    %958 = vmatprep.subr.bf16.mxu0 0
    %959 = vmatpush1.bf16.msra.mxu0 0
    %960 = vmatprep.mubr.bf16.mxu0 0
    %961 = vmatmul.mubr.bf16.gmra.mrb[0].mxu0 %v926
    %v962 = vpop.f32.mrb[0].mxu0
    %v963 = vadd.f32 %v281, %v962
    %v964 = vpop.f32.mrb[0].mxu0
    %v965 = vpop.f32.mrb[0].mxu0
    %v966 = vpop.f32.mrb[0].mxu0
    %967 = vdwg.mxu0
    %v968 = vrot.slane %v150, 5
    %v969 = vrot.slane %v151, 4
    %v970 = vsel %vm153, %v969, %v968
    %v971 = vpack.c.b16 %v970, %v970
    %v973 = vsel %vm156, %v971, 0
    %975 = vmatprep.subr.bf16.mxu0 0
    %976 = vmatpush1.bf16.msra.mxu0 %v75
    %977 = vmatprep.subr.bf16.mxu0 0
    %978 = vmatpush1.bf16.msra.mxu0 0
    %979 = vmatprep.subr.bf16.mxu0 0
    %980 = vmatpush1.bf16.msra.mxu0 0
    %981 = vmatprep.subr.bf16.mxu0 0
    %982 = vmatpush1.bf16.msra.mxu0 0
    %983 = vmatprep.subr.bf16.mxu0 0
    %984 = vmatpush1.bf16.msra.mxu0 0
    %985 = vmatprep.subr.bf16.mxu0 0
    %986 = vmatpush1.bf16.msra.mxu0 0
    %987 = vmatprep.subr.bf16.mxu0 0
    %988 = vmatpush1.bf16.msra.mxu0 0
    %989 = vmatprep.subr.bf16.mxu0 0
    %990 = vmatpush1.bf16.msra.mxu0 0
    %991 = vmatprep.subr.bf16.mxu0 0
    %992 = vmatpush1.bf16.msra.mxu0 0
    %993 = vmatprep.subr.bf16.mxu0 0
    %994 = vmatpush1.bf16.msra.mxu0 0
    %995 = vmatprep.subr.bf16.mxu0 0
    %996 = vmatpush1.bf16.msra.mxu0 0
    %997 = vmatprep.subr.bf16.mxu0 0
    %998 = vmatpush1.bf16.msra.mxu0 0
    %999 = vmatprep.subr.bf16.mxu0 0
    %1000 = vmatpush1.bf16.msra.mxu0 0
    %1001 = vmatprep.subr.bf16.mxu0 0
    %1002 = vmatpush1.bf16.msra.mxu0 0
    %1003 = vmatprep.subr.bf16.mxu0 0
    %1004 = vmatpush1.bf16.msra.mxu0 0
    %1005 = vmatprep.subr.bf16.mxu0 0
    %1006 = vmatpush1.bf16.msra.mxu0 0
    %1007 = vmatprep.mubr.bf16.mxu0 0
    %1008 = vmatmul.mubr.bf16.gmra.mrb[0].mxu0 %v973
    %v1009 = vpop.f32.mrb[0].mxu0
    %v1010 = vadd.f32 %v146, %v1009
    %v1011 = vpop.f32.mrb[0].mxu0
    %v1012 = vpop.f32.mrb[0].mxu0
    %v1013 = vpop.f32.mrb[0].mxu0
    %1014 = vdwg.mxu0
    %1015 = vmatprep.subr.bf16.mxu0 0
    %1016 = vmatpush1.bf16.msra.mxu0 %v80
    %1017 = vmatprep.subr.bf16.mxu0 0
    %1018 = vmatpush1.bf16.msra.mxu0 %v81
    %1019 = vmatprep.subr.bf16.mxu0 0
    %1020 = vmatpush1.bf16.msra.mxu0 0
    %1021 = vmatprep.subr.bf16.mxu0 0
    %1022 = vmatpush1.bf16.msra.mxu0 0
    %1023 = vmatprep.subr.bf16.mxu0 0
    %1024 = vmatpush1.bf16.msra.mxu0 0
    %1025 = vmatprep.subr.bf16.mxu0 0
    %1026 = vmatpush1.bf16.msra.mxu0 0
    %1027 = vmatprep.subr.bf16.mxu0 0
    %1028 = vmatpush1.bf16.msra.mxu0 0
    %1029 = vmatprep.subr.bf16.mxu0 0
    %1030 = vmatpush1.bf16.msra.mxu0 0
    %1031 = vmatprep.subr.bf16.mxu0 0
    %1032 = vmatpush1.bf16.msra.mxu0 0
    %1033 = vmatprep.subr.bf16.mxu0 0
    %1034 = vmatpush1.bf16.msra.mxu0 0
    %1035 = vmatprep.subr.bf16.mxu0 0
    %1036 = vmatpush1.bf16.msra.mxu0 0
    %1037 = vmatprep.subr.bf16.mxu0 0
    %1038 = vmatpush1.bf16.msra.mxu0 0
    %1039 = vmatprep.subr.bf16.mxu0 0
    %1040 = vmatpush1.bf16.msra.mxu0 0
    %1041 = vmatprep.subr.bf16.mxu0 0
    %1042 = vmatpush1.bf16.msra.mxu0 0
    %1043 = vmatprep.subr.bf16.mxu0 0
    %1044 = vmatpush1.bf16.msra.mxu0 0
    %1045 = vmatprep.subr.bf16.mxu0 0
    %1046 = vmatpush1.bf16.msra.mxu0 0
    %1047 = vmatprep.mubr.bf16.mxu0 0
    %1048 = vmatmul.mubr.bf16.gmra.mrb[0].mxu0 %v926
    %v1049 = vpop.f32.mrb[0].mxu0
    %v1050 = vadd.f32 %v204, %v1049
    %v1051 = vpop.f32.mrb[0].mxu0
    %v1052 = vpop.f32.mrb[0].mxu0
    %v1053 = vpop.f32.mrb[0].mxu0
    %1054 = vdwg.mxu0
    %v1055 = vadd.f32 %v1010, %v1050
    %v1056 = vxor.u32 %v1055, 2147483648
    %v1057 = vmul.f32 %v1056, 1.442695
    %v1058 = vpow.pop %v1057
    %v1059 = vadd.f32 %v1058, 1.0
    %v1060 = vrcp.pop %v1059
    %v1061 = vmul.f32 1.0, %v1060
    %1063 = vrot.lane.b32.xlu0 %v1050, 64
    %v1064 = vpop.permute.xlu0 %1063
    %v1066 = vmul.f32 %v1061, %v1064
    %1068 = vrot.lane.b32.xlu0 %v1066, 64
    %v1069 = vpop.permute.xlu0 %1068
    %v1071 = vadd.f32 %v1010, %v1069
    %v1072 = vtanh.pop %v1071
    %v1073 = vsub.f32 1.0, %v1061
    %1075 = vrot.lane.b32.xlu0 %v1072, 96
    %v1076 = vpop.permute.xlu0 %1075
    %v1078 = vmul.f32 %v1073, %v1076
    %v1079 = vmul.f32 %v1061, %v920
    %v1080 = vadd.f32 %v1078, %v1079
    %v1081 = vpack.c.bf16 %v1080, %v1080
    %1083 = vrot.lane.b32.xlu0 %v1081, 96
    %v1084 = vpop.permute.xlu0 %1083
    %v1086 = vsel %vm206, %v1084, 0
    %1088 = vmatprep.subr.bf16.mxu0 0
    %1089 = vmatpush1.bf16.msra.mxu0 %v94
    %1090 = vmatprep.subr.bf16.mxu0 0
    %1091 = vmatpush1.bf16.msra.mxu0 %v95
    %1092 = vmatprep.subr.bf16.mxu0 0
    %1093 = vmatpush1.bf16.msra.mxu0 0
    %1094 = vmatprep.subr.bf16.mxu0 0
    %1095 = vmatpush1.bf16.msra.mxu0 0
    %1096 = vmatprep.subr.bf16.mxu0 0
    %1097 = vmatpush1.bf16.msra.mxu0 0
    %1098 = vmatprep.subr.bf16.mxu0 0
    %1099 = vmatpush1.bf16.msra.mxu0 0
    %1100 = vmatprep.subr.bf16.mxu0 0
    %1101 = vmatpush1.bf16.msra.mxu0 0
    %1102 = vmatprep.subr.bf16.mxu0 0
    %1103 = vmatpush1.bf16.msra.mxu0 0
    %1104 = vmatprep.subr.bf16.mxu0 0
    %1105 = vmatpush1.bf16.msra.mxu0 0
    %1106 = vmatprep.subr.bf16.mxu0 0
    %1107 = vmatpush1.bf16.msra.mxu0 0
    %1108 = vmatprep.subr.bf16.mxu0 0
    %1109 = vmatpush1.bf16.msra.mxu0 0
    %1110 = vmatprep.subr.bf16.mxu0 0
    %1111 = vmatpush1.bf16.msra.mxu0 0
    %1112 = vmatprep.subr.bf16.mxu0 0
    %1113 = vmatpush1.bf16.msra.mxu0 0
    %1114 = vmatprep.subr.bf16.mxu0 0
    %1115 = vmatpush1.bf16.msra.mxu0 0
    %1116 = vmatprep.subr.bf16.mxu0 0
    %1117 = vmatpush1.bf16.msra.mxu0 0
    %1118 = vmatprep.subr.bf16.mxu0 0
    %1119 = vmatpush1.bf16.msra.mxu0 0
    %1120 = vmatprep.mubr.bf16.mxu0 0
    %1121 = vmatmul.mubr.bf16.gmra.mrb[0].mxu0 %v1086
    %v1122 = vpop.f32.mrb[0].mxu0
    %v1123 = vadd.f32 %v281, %v1122
    %v1124 = vpop.f32.mrb[0].mxu0
    %v1125 = vpop.f32.mrb[0].mxu0
    %v1126 = vpop.f32.mrb[0].mxu0
    %1127 = vdwg.mxu0
    %v1128 = vrot.slane %v150, 6
    %v1129 = vrot.slane %v151, 5
    %v1130 = vsel %vm153, %v1129, %v1128
    %v1131 = vpack.c.b16 %v1130, %v1130
    %v1133 = vsel %vm156, %v1131, 0
    %1135 = vmatprep.subr.bf16.mxu0 0
    %1136 = vmatpush1.bf16.msra.mxu0 %v75
    %1137 = vmatprep.subr.bf16.mxu0 0
    %1138 = vmatpush1.bf16.msra.mxu0 0
    %1139 = vmatprep.subr.bf16.mxu0 0
    %1140 = vmatpush1.bf16.msra.mxu0 0
    %1141 = vmatprep.subr.bf16.mxu0 0
    %1142 = vmatpush1.bf16.msra.mxu0 0
    %1143 = vmatprep.subr.bf16.mxu0 0
    %1144 = vmatpush1.bf16.msra.mxu0 0
    %1145 = vmatprep.subr.bf16.mxu0 0
    %1146 = vmatpush1.bf16.msra.mxu0 0
    %1147 = vmatprep.subr.bf16.mxu0 0
    %1148 = vmatpush1.bf16.msra.mxu0 0
    %1149 = vmatprep.subr.bf16.mxu0 0
    %1150 = vmatpush1.bf16.msra.mxu0 0
    %1151 = vmatprep.subr.bf16.mxu0 0
    %1152 = vmatpush1.bf16.msra.mxu0 0
    %1153 = vmatprep.subr.bf16.mxu0 0
    %1154 = vmatpush1.bf16.msra.mxu0 0
    %1155 = vmatprep.subr.bf16.mxu0 0
    %1156 = vmatpush1.bf16.msra.mxu0 0
    %1157 = vmatprep.subr.bf16.mxu0 0
    %1158 = vmatpush1.bf16.msra.mxu0 0
    %1159 = vmatprep.subr.bf16.mxu0 0
    %1160 = vmatpush1.bf16.msra.mxu0 0
    %1161 = vmatprep.subr.bf16.mxu0 0
    %1162 = vmatpush1.bf16.msra.mxu0 0
    %1163 = vmatprep.subr.bf16.mxu0 0
    %1164 = vmatpush1.bf16.msra.mxu0 0
    %1165 = vmatprep.subr.bf16.mxu0 0
    %1166 = vmatpush1.bf16.msra.mxu0 0
    %1167 = vmatprep.mubr.bf16.mxu0 0
    %1168 = vmatmul.mubr.bf16.gmra.mrb[0].mxu0 %v1133
    %v1169 = vpop.f32.mrb[0].mxu0
    %v1170 = vadd.f32 %v146, %v1169
    %v1171 = vpop.f32.mrb[0].mxu0
    %v1172 = vpop.f32.mrb[0].mxu0
    %v1173 = vpop.f32.mrb[0].mxu0
    %1174 = vdwg.mxu0
    %1175 = vmatprep.subr.bf16.mxu0 0
    %1176 = vmatpush1.bf16.msra.mxu0 %v80
    %1177 = vmatprep.subr.bf16.mxu0 0
    %1178 = vmatpush1.bf16.msra.mxu0 %v81
    %1179 = vmatprep.subr.bf16.mxu0 0
    %1180 = vmatpush1.bf16.msra.mxu0 0
    %1181 = vmatprep.subr.bf16.mxu0 0
    %1182 = vmatpush1.bf16.msra.mxu0 0
    %1183 = vmatprep.subr.bf16.mxu0 0
    %1184 = vmatpush1.bf16.msra.mxu0 0
    %1185 = vmatprep.subr.bf16.mxu0 0
    %1186 = vmatpush1.bf16.msra.mxu0 0
    %1187 = vmatprep.subr.bf16.mxu0 0
    %1188 = vmatpush1.bf16.msra.mxu0 0
    %1189 = vmatprep.subr.bf16.mxu0 0
    %1190 = vmatpush1.bf16.msra.mxu0 0
    %1191 = vmatprep.subr.bf16.mxu0 0
    %1192 = vmatpush1.bf16.msra.mxu0 0
    %1193 = vmatprep.subr.bf16.mxu0 0
    %1194 = vmatpush1.bf16.msra.mxu0 0
    %1195 = vmatprep.subr.bf16.mxu0 0
    %1196 = vmatpush1.bf16.msra.mxu0 0
    %1197 = vmatprep.subr.bf16.mxu0 0
    %1198 = vmatpush1.bf16.msra.mxu0 0
    %1199 = vmatprep.subr.bf16.mxu0 0
    %1200 = vmatpush1.bf16.msra.mxu0 0
    %1201 = vmatprep.subr.bf16.mxu0 0
    %1202 = vmatpush1.bf16.msra.mxu0 0
    %1203 = vmatprep.subr.bf16.mxu0 0
    %1204 = vmatpush1.bf16.msra.mxu0 0
    %1205 = vmatprep.subr.bf16.mxu0 0
    %1206 = vmatpush1.bf16.msra.mxu0 0
    %1207 = vmatprep.mubr.bf16.mxu0 0
    %1208 = vmatmul.mubr.bf16.gmra.mrb[0].mxu0 %v1086
    %v1209 = vpop.f32.mrb[0].mxu0
    %v1210 = vadd.f32 %v204, %v1209
    %v1211 = vpop.f32.mrb[0].mxu0
    %v1212 = vpop.f32.mrb[0].mxu0
    %v1213 = vpop.f32.mrb[0].mxu0
    %1214 = vdwg.mxu0
    %v1215 = vadd.f32 %v1170, %v1210
    %v1216 = vxor.u32 %v1215, 2147483648
    %v1217 = vmul.f32 %v1216, 1.442695
    %v1218 = vpow.pop %v1217
    %v1219 = vadd.f32 %v1218, 1.0
    %v1220 = vrcp.pop %v1219
    %v1221 = vmul.f32 1.0, %v1220
    %1223 = vrot.lane.b32.xlu0 %v1210, 64
    %v1224 = vpop.permute.xlu0 %1223
    %v1226 = vmul.f32 %v1221, %v1224
    %1228 = vrot.lane.b32.xlu0 %v1226, 64
    %v1229 = vpop.permute.xlu0 %1228
    %v1231 = vadd.f32 %v1170, %v1229
    %v1232 = vtanh.pop %v1231
    %v1233 = vsub.f32 1.0, %v1221
    %1235 = vrot.lane.b32.xlu0 %v1232, 96
    %v1236 = vpop.permute.xlu0 %1235
    %v1238 = vmul.f32 %v1233, %v1236
    %v1239 = vmul.f32 %v1221, %v1080
    %v1240 = vadd.f32 %v1238, %v1239
    %v1241 = vpack.c.bf16 %v1240, %v1240
    %1243 = vrot.lane.b32.xlu0 %v1241, 96
    %v1244 = vpop.permute.xlu0 %1243
    %v1246 = vsel %vm206, %v1244, 0
    %1248 = vmatprep.subr.bf16.mxu0 0
    %1249 = vmatpush1.bf16.msra.mxu0 %v94
    %1250 = vmatprep.subr.bf16.mxu0 0
    %1251 = vmatpush1.bf16.msra.mxu0 %v95
    %1252 = vmatprep.subr.bf16.mxu0 0
    %1253 = vmatpush1.bf16.msra.mxu0 0
    %1254 = vmatprep.subr.bf16.mxu0 0
    %1255 = vmatpush1.bf16.msra.mxu0 0
    %1256 = vmatprep.subr.bf16.mxu0 0
    %1257 = vmatpush1.bf16.msra.mxu0 0
    %1258 = vmatprep.subr.bf16.mxu0 0
    %1259 = vmatpush1.bf16.msra.mxu0 0
    %1260 = vmatprep.subr.bf16.mxu0 0
    %1261 = vmatpush1.bf16.msra.mxu0 0
    %1262 = vmatprep.subr.bf16.mxu0 0
    %1263 = vmatpush1.bf16.msra.mxu0 0
    %1264 = vmatprep.subr.bf16.mxu0 0
    %1265 = vmatpush1.bf16.msra.mxu0 0
    %1266 = vmatprep.subr.bf16.mxu0 0
    %1267 = vmatpush1.bf16.msra.mxu0 0
    %1268 = vmatprep.subr.bf16.mxu0 0
    %1269 = vmatpush1.bf16.msra.mxu0 0
    %1270 = vmatprep.subr.bf16.mxu0 0
    %1271 = vmatpush1.bf16.msra.mxu0 0
    %1272 = vmatprep.subr.bf16.mxu0 0
    %1273 = vmatpush1.bf16.msra.mxu0 0
    %1274 = vmatprep.subr.bf16.mxu0 0
    %1275 = vmatpush1.bf16.msra.mxu0 0
    %1276 = vmatprep.subr.bf16.mxu0 0
    %1277 = vmatpush1.bf16.msra.mxu0 0
    %1278 = vmatprep.subr.bf16.mxu0 0
    %1279 = vmatpush1.bf16.msra.mxu0 0
    %1280 = vmatprep.mubr.bf16.mxu0 0
    %1281 = vmatmul.mubr.bf16.gmra.mrb[0].mxu0 %v1246
    %v1282 = vpop.f32.mrb[0].mxu0
    %v1283 = vadd.f32 %v281, %v1282
    %v1284 = vpop.f32.mrb[0].mxu0
    %v1285 = vpop.f32.mrb[0].mxu0
    %v1286 = vpop.f32.mrb[0].mxu0
    %1287 = vdwg.mxu0
    %v1288 = vrot.slane %v150, 7
    %v1289 = vrot.slane %v151, 6
    %v1290 = vsel %vm153, %v1289, %v1288
    %v1291 = vpack.c.b16 %v1290, %v1290
    %v1293 = vsel %vm156, %v1291, 0
    %1295 = vmatprep.subr.bf16.mxu0 0
    %1296 = vmatpush1.bf16.msra.mxu0 %v75
    %1297 = vmatprep.subr.bf16.mxu0 0
    %1298 = vmatpush1.bf16.msra.mxu0 0
    %1299 = vmatprep.subr.bf16.mxu0 0
    %1300 = vmatpush1.bf16.msra.mxu0 0
    %1301 = vmatprep.subr.bf16.mxu0 0
    %1302 = vmatpush1.bf16.msra.mxu0 0
    %1303 = vmatprep.subr.bf16.mxu0 0
    %1304 = vmatpush1.bf16.msra.mxu0 0
    %1305 = vmatprep.subr.bf16.mxu0 0
    %1306 = vmatpush1.bf16.msra.mxu0 0
    %1307 = vmatprep.subr.bf16.mxu0 0
    %1308 = vmatpush1.bf16.msra.mxu0 0
    %1309 = vmatprep.subr.bf16.mxu0 0
    %1310 = vmatpush1.bf16.msra.mxu0 0
    %1311 = vmatprep.subr.bf16.mxu0 0
    %1312 = vmatpush1.bf16.msra.mxu0 0
    %1313 = vmatprep.subr.bf16.mxu0 0
    %1314 = vmatpush1.bf16.msra.mxu0 0
    %1315 = vmatprep.subr.bf16.mxu0 0
    %1316 = vmatpush1.bf16.msra.mxu0 0
    %1317 = vmatprep.subr.bf16.mxu0 0
    %1318 = vmatpush1.bf16.msra.mxu0 0
    %1319 = vmatprep.subr.bf16.mxu0 0
    %1320 = vmatpush1.bf16.msra.mxu0 0
    %1321 = vmatprep.subr.bf16.mxu0 0
    %1322 = vmatpush1.bf16.msra.mxu0 0
    %1323 = vmatprep.subr.bf16.mxu0 0
    %1324 = vmatpush1.bf16.msra.mxu0 0
    %1325 = vmatprep.subr.bf16.mxu0 0
    %1326 = vmatpush1.bf16.msra.mxu0 0
    %1327 = vmatprep.mubr.bf16.mxu0 0
    %1328 = vmatmul.mubr.bf16.gmra.mrb[0].mxu0 %v1293
    %v1329 = vpop.f32.mrb[0].mxu0
    %v1330 = vadd.f32 %v146, %v1329
    %v1331 = vpop.f32.mrb[0].mxu0
    %v1332 = vpop.f32.mrb[0].mxu0
    %v1333 = vpop.f32.mrb[0].mxu0
    %1334 = vdwg.mxu0
    %1335 = vmatprep.subr.bf16.mxu0 0
    %1336 = vmatpush1.bf16.msra.mxu0 %v80
    %1337 = vmatprep.subr.bf16.mxu0 0
    %1338 = vmatpush1.bf16.msra.mxu0 %v81
    %1339 = vmatprep.subr.bf16.mxu0 0
    %1340 = vmatpush1.bf16.msra.mxu0 0
    %1341 = vmatprep.subr.bf16.mxu0 0
    %1342 = vmatpush1.bf16.msra.mxu0 0
    %1343 = vmatprep.subr.bf16.mxu0 0
    %1344 = vmatpush1.bf16.msra.mxu0 0
    %1345 = vmatprep.subr.bf16.mxu0 0
    %1346 = vmatpush1.bf16.msra.mxu0 0
    %1347 = vmatprep.subr.bf16.mxu0 0
    %1348 = vmatpush1.bf16.msra.mxu0 0
    %1349 = vmatprep.subr.bf16.mxu0 0
    %1350 = vmatpush1.bf16.msra.mxu0 0
    %1351 = vmatprep.subr.bf16.mxu0 0
    %1352 = vmatpush1.bf16.msra.mxu0 0
    %1353 = vmatprep.subr.bf16.mxu0 0
    %1354 = vmatpush1.bf16.msra.mxu0 0
    %1355 = vmatprep.subr.bf16.mxu0 0
    %1356 = vmatpush1.bf16.msra.mxu0 0
    %1357 = vmatprep.subr.bf16.mxu0 0
    %1358 = vmatpush1.bf16.msra.mxu0 0
    %1359 = vmatprep.subr.bf16.mxu0 0
    %1360 = vmatpush1.bf16.msra.mxu0 0
    %1361 = vmatprep.subr.bf16.mxu0 0
    %1362 = vmatpush1.bf16.msra.mxu0 0
    %1363 = vmatprep.subr.bf16.mxu0 0
    %1364 = vmatpush1.bf16.msra.mxu0 0
    %1365 = vmatprep.subr.bf16.mxu0 0
    %1366 = vmatpush1.bf16.msra.mxu0 0
    %1367 = vmatprep.mubr.bf16.mxu0 0
    %1368 = vmatmul.mubr.bf16.gmra.mrb[0].mxu0 %v1246
    %v1369 = vpop.f32.mrb[0].mxu0
    %v1370 = vadd.f32 %v204, %v1369
    %v1371 = vpop.f32.mrb[0].mxu0
    %v1372 = vpop.f32.mrb[0].mxu0
    %v1373 = vpop.f32.mrb[0].mxu0
    %1374 = vdwg.mxu0
    %v1375 = vadd.f32 %v1330, %v1370
    %v1376 = vxor.u32 %v1375, 2147483648
    %v1377 = vmul.f32 %v1376, 1.442695
    %v1378 = vpow.pop %v1377
    %v1379 = vadd.f32 %v1378, 1.0
    %v1380 = vrcp.pop %v1379
    %v1381 = vmul.f32 1.0, %v1380
    %1383 = vrot.lane.b32.xlu0 %v1370, 64
    %v1384 = vpop.permute.xlu0 %1383
    %v1386 = vmul.f32 %v1381, %v1384
    %1388 = vrot.lane.b32.xlu0 %v1386, 64
    %v1389 = vpop.permute.xlu0 %1388
    %v1391 = vadd.f32 %v1330, %v1389
    %v1392 = vtanh.pop %v1391
    %v1393 = vsub.f32 1.0, %v1381
    %1395 = vrot.lane.b32.xlu0 %v1392, 96
    %v1396 = vpop.permute.xlu0 %1395
    %v1398 = vmul.f32 %v1393, %v1396
    %v1399 = vmul.f32 %v1381, %v1240
    %v1400 = vadd.f32 %v1398, %v1399
    %v1401 = vpack.c.bf16 %v1400, %v1400
    %1403 = vrot.lane.b32.xlu0 %v1401, 96
    %v1404 = vpop.permute.xlu0 %1403
    %v1406 = vsel %vm206, %v1404, 0
    %1408 = vmatprep.subr.bf16.mxu0 0
    %1409 = vmatpush1.bf16.msra.mxu0 %v94
    %1410 = vmatprep.subr.bf16.mxu0 0
    %1411 = vmatpush1.bf16.msra.mxu0 %v95
    %1412 = vmatprep.subr.bf16.mxu0 0
    %1413 = vmatpush1.bf16.msra.mxu0 0
    %1414 = vmatprep.subr.bf16.mxu0 0
    %1415 = vmatpush1.bf16.msra.mxu0 0
    %1416 = vmatprep.subr.bf16.mxu0 0
    %1417 = vmatpush1.bf16.msra.mxu0 0
    %1418 = vmatprep.subr.bf16.mxu0 0
    %1419 = vmatpush1.bf16.msra.mxu0 0
    %1420 = vmatprep.subr.bf16.mxu0 0
    %1421 = vmatpush1.bf16.msra.mxu0 0
    %1422 = vmatprep.subr.bf16.mxu0 0
    %1423 = vmatpush1.bf16.msra.mxu0 0
    %1424 = vmatprep.subr.bf16.mxu0 0
    %1425 = vmatpush1.bf16.msra.mxu0 0
    %1426 = vmatprep.subr.bf16.mxu0 0
    %1427 = vmatpush1.bf16.msra.mxu0 0
    %1428 = vmatprep.subr.bf16.mxu0 0
    %1429 = vmatpush1.bf16.msra.mxu0 0
    %1430 = vmatprep.subr.bf16.mxu0 0
    %1431 = vmatpush1.bf16.msra.mxu0 0
    %1432 = vmatprep.subr.bf16.mxu0 0
    %1433 = vmatpush1.bf16.msra.mxu0 0
    %1434 = vmatprep.subr.bf16.mxu0 0
    %1435 = vmatpush1.bf16.msra.mxu0 0
    %1436 = vmatprep.subr.bf16.mxu0 0
    %1437 = vmatpush1.bf16.msra.mxu0 0
    %1438 = vmatprep.subr.bf16.mxu0 0
    %1439 = vmatpush1.bf16.msra.mxu0 0
    %1440 = vmatprep.mubr.bf16.mxu0 0
    %1441 = vmatmul.mubr.bf16.gmra.mrb[0].mxu0 %v1406
    %v1442 = vpop.f32.mrb[0].mxu0
    %v1443 = vadd.f32 %v281, %v1442
    %v1444 = vpop.f32.mrb[0].mxu0
    %v1445 = vpop.f32.mrb[0].mxu0
    %v1446 = vpop.f32.mrb[0].mxu0
    %1447 = vdwg.mxu0
    %v1450 = vunpack.c.l.s4 1966171168
    %v1451 = vunpack.c.0.s8 %v1450
    %v1452 = vlaneseq
    %v1453 = vshrl.u32 %v1452, 7
    %v1454 = vsub.s32 %v1451, %v1453
    %v1455 = vrot.slane %v275, %v1454
    %v1456 = vcombine.high %v1455, %v1455
    %v1458 = vunpack.c.l.s4 1966171168
    %v1459 = vunpack.c.0.s8 %v1458
    %v1460 = vlaneseq
    %v1461 = vshrl.u32 %v1460, 7
    %v1462 = vsub.s32 %v1459, %v1461
    %v1463 = vrot.slane %v1455, %v1462
    %v1465 = vunpack.c.l.s4 1966171168
    %v1466 = vunpack.c.0.s8 %v1465
    %v1467 = vlaneseq
    %v1468 = vshrl.u32 %v1467, 7
    %v1469 = vsub.s32 %v1466, %v1468
    %v1470 = vrot.slane %v1456, %v1469
    %v1475 = vunpack.c.l.s4 1966171168
    %v1476 = vunpack.c.0.s8 %v1475
    %v1477 = vlaneseq
    %v1478 = vshrl.u32 %v1477, 7
    %v1479 = vsub.s32 %v1476, %v1478
    %v1480 = vrot.slane %v440, %v1479
    %v1481 = vcombine.high %v1480, %v1480
    %v1483 = vunpack.c.l.s4 1966171168
    %v1484 = vunpack.c.0.s8 %v1483
    %v1485 = vlaneseq
    %v1486 = vshrl.u32 %v1485, 7
    %v1487 = vsub.s32 %v1484, %v1486
    %v1488 = vrot.slane %v1480, %v1487
    %v1490 = vunpack.c.l.s4 1966171168
    %v1491 = vunpack.c.0.s8 %v1490
    %v1492 = vlaneseq
    %v1493 = vshrl.u32 %v1492, 7
    %v1494 = vsub.s32 %v1491, %v1493
    %v1495 = vrot.slane %v1481, %v1494
    %v1498 = vunpack.c.l.s4 1966171168
    %v1499 = vunpack.c.0.s8 %v1498
    %v1500 = vlaneseq
    %v1501 = vshrl.u32 %v1500, 7
    %v1502 = vsub.s32 %v1499, %v1501
    %v1503 = vrot.slane %v600, %v1502
    %v1504 = vcombine.high %v1503, %v1503
    %v1506 = vunpack.c.l.s4 1966171168
    %v1507 = vunpack.c.0.s8 %v1506
    %v1508 = vlaneseq
    %v1509 = vshrl.u32 %v1508, 7
    %v1510 = vsub.s32 %v1507, %v1509
    %v1511 = vrot.slane %v1503, %v1510
    %v1513 = vunpack.c.l.s4 1966171168
    %v1514 = vunpack.c.0.s8 %v1513
    %v1515 = vlaneseq
    %v1516 = vshrl.u32 %v1515, 7
    %v1517 = vsub.s32 %v1514, %v1516
    %v1518 = vrot.slane %v1504, %v1517
    %v1521 = vunpack.c.l.s4 1966171168
    %v1522 = vunpack.c.0.s8 %v1521
    %v1523 = vlaneseq
    %v1524 = vshrl.u32 %v1523, 7
    %v1525 = vsub.s32 %v1522, %v1524
    %v1526 = vrot.slane %v760, %v1525
    %v1527 = vcombine.high %v1526, %v1526
    %v1529 = vunpack.c.l.s4 1966171168
    %v1530 = vunpack.c.0.s8 %v1529
    %v1531 = vlaneseq
    %v1532 = vshrl.u32 %v1531, 7
    %v1533 = vsub.s32 %v1530, %v1532
    %v1534 = vrot.slane %v1526, %v1533
    %v1536 = vunpack.c.l.s4 1966171168
    %v1537 = vunpack.c.0.s8 %v1536
    %v1538 = vlaneseq
    %v1539 = vshrl.u32 %v1538, 7
    %v1540 = vsub.s32 %v1537, %v1539
    %v1541 = vrot.slane %v1527, %v1540
    %v1544 = vunpack.c.l.s4 1966171168
    %v1545 = vunpack.c.0.s8 %v1544
    %v1546 = vlaneseq
    %v1547 = vshrl.u32 %v1546, 7
    %v1548 = vsub.s32 %v1545, %v1547
    %v1549 = vrot.slane %v920, %v1548
    %v1550 = vcombine.high %v1549, %v1549
    %v1552 = vunpack.c.l.s4 1966171168
    %v1553 = vunpack.c.0.s8 %v1552
    %v1554 = vlaneseq
    %v1555 = vshrl.u32 %v1554, 7
    %v1556 = vsub.s32 %v1553, %v1555
    %v1557 = vrot.slane %v1549, %v1556
    %v1559 = vunpack.c.l.s4 1966171168
    %v1560 = vunpack.c.0.s8 %v1559
    %v1561 = vlaneseq
    %v1562 = vshrl.u32 %v1561, 7
    %v1563 = vsub.s32 %v1560, %v1562
    %v1564 = vrot.slane %v1550, %v1563
    %v1567 = vunpack.c.l.s4 1966171168
    %v1568 = vunpack.c.0.s8 %v1567
    %v1569 = vlaneseq
    %v1570 = vshrl.u32 %v1569, 7
    %v1571 = vsub.s32 %v1568, %v1570
    %v1572 = vrot.slane %v1080, %v1571
    %v1573 = vcombine.high %v1572, %v1572
    %v1575 = vunpack.c.l.s4 1966171168
    %v1576 = vunpack.c.0.s8 %v1575
    %v1577 = vlaneseq
    %v1578 = vshrl.u32 %v1577, 7
    %v1579 = vsub.s32 %v1576, %v1578
    %v1580 = vrot.slane %v1572, %v1579
    %v1582 = vunpack.c.l.s4 1966171168
    %v1583 = vunpack.c.0.s8 %v1582
    %v1584 = vlaneseq
    %v1585 = vshrl.u32 %v1584, 7
    %v1586 = vsub.s32 %v1583, %v1585
    %v1587 = vrot.slane %v1573, %v1586
    %v1590 = vunpack.c.l.s4 1966171168
    %v1591 = vunpack.c.0.s8 %v1590
    %v1592 = vlaneseq
    %v1593 = vshrl.u32 %v1592, 7
    %v1594 = vsub.s32 %v1591, %v1593
    %v1595 = vrot.slane %v1240, %v1594
    %v1596 = vcombine.high %v1595, %v1595
    %v1598 = vunpack.c.l.s4 1966171168
    %v1599 = vunpack.c.0.s8 %v1598
    %v1600 = vlaneseq
    %v1601 = vshrl.u32 %v1600, 7
    %v1602 = vsub.s32 %v1599, %v1601
    %v1603 = vrot.slane %v1595, %v1602
    %v1605 = vunpack.c.l.s4 1966171168
    %v1606 = vunpack.c.0.s8 %v1605
    %v1607 = vlaneseq
    %v1608 = vshrl.u32 %v1607, 7
    %v1609 = vsub.s32 %v1606, %v1608
    %v1610 = vrot.slane %v1596, %v1609
    %v1613 = vunpack.c.l.s4 1966171168
    %v1614 = vunpack.c.0.s8 %v1613
    %v1615 = vlaneseq
    %v1616 = vshrl.u32 %v1615, 7
    %v1617 = vsub.s32 %v1614, %v1616
    %v1618 = vrot.slane %v1400, %v1617
    %v1619 = vcombine.high %v1618, %v1618
    %v1621 = vunpack.c.l.s4 1966171168
    %v1622 = vunpack.c.0.s8 %v1621
    %v1623 = vlaneseq
    %v1624 = vshrl.u32 %v1623, 7
    %v1625 = vsub.s32 %v1622, %v1624
    %v1626 = vrot.slane %v1618, %v1625
    %v1628 = vunpack.c.l.s4 1966171168
    %v1629 = vunpack.c.0.s8 %v1628
    %v1630 = vlaneseq
    %v1631 = vshrl.u32 %v1630, 7
    %v1632 = vsub.s32 %v1629, %v1631
    %v1633 = vrot.slane %v1619, %v1632
    %v1634 = vlaneseq
    %v1635 = vshrl.u32 %v1634, 7
    %v1636 = vsub.s32 0, %v1635
    %v1637 = vrot.slane %v1488, %v1636
    %v1638 = vlaneseq
    %v1639 = vshrl.u32 %v1638, 7
    %v1640 = vsub.s32 0, %v1639
    %v1641 = vrot.slane %v1495, %v1640
    %v1644 = vlaneseq
    %v1645 = vshrl.u32 %v1644, 7
    %v1646 = vsub.s32 0, %v1645
    %v1647 = vrot.slane %v1511, %v1646
    %v1648 = vlaneseq
    %v1649 = vshrl.u32 %v1648, 7
    %v1650 = vsub.s32 0, %v1649
    %v1651 = vrot.slane %v1518, %v1650
    %v1654 = vlaneseq
    %v1655 = vshrl.u32 %v1654, 7
    %v1656 = vsub.s32 0, %v1655
    %v1657 = vrot.slane %v1534, %v1656
    %v1658 = vlaneseq
    %v1659 = vshrl.u32 %v1658, 7
    %v1660 = vsub.s32 0, %v1659
    %v1661 = vrot.slane %v1541, %v1660
    %v1664 = vlaneseq
    %v1665 = vshrl.u32 %v1664, 7
    %v1666 = vsub.s32 0, %v1665
    %v1667 = vrot.slane %v1557, %v1666
    %v1668 = vlaneseq
    %v1669 = vshrl.u32 %v1668, 7
    %v1670 = vsub.s32 0, %v1669
    %v1671 = vrot.slane %v1564, %v1670
    %v1674 = vlaneseq
    %v1675 = vshrl.u32 %v1674, 7
    %v1676 = vsub.s32 0, %v1675
    %v1677 = vrot.slane %v1580, %v1676
    %v1678 = vlaneseq
    %v1679 = vshrl.u32 %v1678, 7
    %v1680 = vsub.s32 0, %v1679
    %v1681 = vrot.slane %v1587, %v1680
    %v1684 = vlaneseq
    %v1685 = vshrl.u32 %v1684, 7
    %v1686 = vsub.s32 0, %v1685
    %v1687 = vrot.slane %v1603, %v1686
    %v1688 = vlaneseq
    %v1689 = vshrl.u32 %v1688, 7
    %v1690 = vsub.s32 0, %v1689
    %v1691 = vrot.slane %v1610, %v1690
    %v1694 = vlaneseq
    %v1695 = vshrl.u32 %v1694, 7
    %v1696 = vsub.s32 0, %v1695
    %v1697 = vrot.slane %v1626, %v1696
    %v1698 = vlaneseq
    %v1699 = vshrl.u32 %v1698, 7
    %v1700 = vsub.s32 0, %v1699
    %v1701 = vrot.slane %v1633, %v1700
    %vm1704 = vcmask 1040384
    %v1705 = vsel %vm1704, %v1463, %v1637
    %v1706 = vsel %vm1704, %v1470, %v1641
    %vm1707 = vcmask 1041408
    %v1708 = vsel %vm1707, %v1705, %v1647
    %v1709 = vsel %vm1707, %v1706, %v1651
    %vm1710 = vcmask 1042432
    %v1711 = vsel %vm1710, %v1708, %v1657
    %v1712 = vsel %vm1710, %v1709, %v1661
    %vm1713 = vcmask 1043456
    %v1714 = vsel %vm1713, %v1711, %v1667
    %v1715 = vsel %vm1713, %v1712, %v1671
    %vm1716 = vcmask 1044480
    %v1717 = vsel %vm1716, %v1714, %v1677
    %v1718 = vsel %vm1716, %v1715, %v1681
    %vm1719 = vcmask 1045504
    %v1720 = vsel %vm1719, %v1717, %v1687
    %v1721 = vsel %vm1719, %v1718, %v1691
    %vm1722 = vcmask 1046528
    %v1723 = vsel %vm1722, %v1720, %v1697
    %v1724 = vsel %vm1722, %v1721, %v1701
    %v1727 = vunpack.c.l.s4 1966171168
    %v1728 = vunpack.c.0.s8 %v1727
    %v1729 = vlaneseq
    %v1730 = vshrl.u32 %v1729, 7
    %v1731 = vsub.s32 %v1728, %v1730
    %v1732 = vrot.slane %v324, %v1731
    %v1733 = vcombine.high %v1732, %v1732
    %v1735 = vunpack.c.l.s4 1966171168
    %v1736 = vunpack.c.0.s8 %v1735
    %v1737 = vlaneseq
    %v1738 = vshrl.u32 %v1737, 7
    %v1739 = vsub.s32 %v1736, %v1738
    %v1740 = vrot.slane %v1732, %v1739
    %v1742 = vunpack.c.l.s4 1966171168
    %v1743 = vunpack.c.0.s8 %v1742
    %v1744 = vlaneseq
    %v1745 = vshrl.u32 %v1744, 7
    %v1746 = vsub.s32 %v1743, %v1745
    %v1747 = vrot.slane %v1733, %v1746
    %v1752 = vunpack.c.l.s4 1966171168
    %v1753 = vunpack.c.0.s8 %v1752
    %v1754 = vlaneseq
    %v1755 = vshrl.u32 %v1754, 7
    %v1756 = vsub.s32 %v1753, %v1755
    %v1757 = vrot.slane %v483, %v1756
    %v1758 = vcombine.high %v1757, %v1757
    %v1760 = vunpack.c.l.s4 1966171168
    %v1761 = vunpack.c.0.s8 %v1760
    %v1762 = vlaneseq
    %v1763 = vshrl.u32 %v1762, 7
    %v1764 = vsub.s32 %v1761, %v1763
    %v1765 = vrot.slane %v1757, %v1764
    %v1767 = vunpack.c.l.s4 1966171168
    %v1768 = vunpack.c.0.s8 %v1767
    %v1769 = vlaneseq
    %v1770 = vshrl.u32 %v1769, 7
    %v1771 = vsub.s32 %v1768, %v1770
    %v1772 = vrot.slane %v1758, %v1771
    %v1775 = vunpack.c.l.s4 1966171168
    %v1776 = vunpack.c.0.s8 %v1775
    %v1777 = vlaneseq
    %v1778 = vshrl.u32 %v1777, 7
    %v1779 = vsub.s32 %v1776, %v1778
    %v1780 = vrot.slane %v643, %v1779
    %v1781 = vcombine.high %v1780, %v1780
    %v1783 = vunpack.c.l.s4 1966171168
    %v1784 = vunpack.c.0.s8 %v1783
    %v1785 = vlaneseq
    %v1786 = vshrl.u32 %v1785, 7
    %v1787 = vsub.s32 %v1784, %v1786
    %v1788 = vrot.slane %v1780, %v1787
    %v1790 = vunpack.c.l.s4 1966171168
    %v1791 = vunpack.c.0.s8 %v1790
    %v1792 = vlaneseq
    %v1793 = vshrl.u32 %v1792, 7
    %v1794 = vsub.s32 %v1791, %v1793
    %v1795 = vrot.slane %v1781, %v1794
    %v1798 = vunpack.c.l.s4 1966171168
    %v1799 = vunpack.c.0.s8 %v1798
    %v1800 = vlaneseq
    %v1801 = vshrl.u32 %v1800, 7
    %v1802 = vsub.s32 %v1799, %v1801
    %v1803 = vrot.slane %v803, %v1802
    %v1804 = vcombine.high %v1803, %v1803
    %v1806 = vunpack.c.l.s4 1966171168
    %v1807 = vunpack.c.0.s8 %v1806
    %v1808 = vlaneseq
    %v1809 = vshrl.u32 %v1808, 7
    %v1810 = vsub.s32 %v1807, %v1809
    %v1811 = vrot.slane %v1803, %v1810
    %v1813 = vunpack.c.l.s4 1966171168
    %v1814 = vunpack.c.0.s8 %v1813
    %v1815 = vlaneseq
    %v1816 = vshrl.u32 %v1815, 7
    %v1817 = vsub.s32 %v1814, %v1816
    %v1818 = vrot.slane %v1804, %v1817
    %v1821 = vunpack.c.l.s4 1966171168
    %v1822 = vunpack.c.0.s8 %v1821
    %v1823 = vlaneseq
    %v1824 = vshrl.u32 %v1823, 7
    %v1825 = vsub.s32 %v1822, %v1824
    %v1826 = vrot.slane %v963, %v1825
    %v1827 = vcombine.high %v1826, %v1826
    %v1829 = vunpack.c.l.s4 1966171168
    %v1830 = vunpack.c.0.s8 %v1829
    %v1831 = vlaneseq
    %v1832 = vshrl.u32 %v1831, 7
    %v1833 = vsub.s32 %v1830, %v1832
    %v1834 = vrot.slane %v1826, %v1833
    %v1836 = vunpack.c.l.s4 1966171168
    %v1837 = vunpack.c.0.s8 %v1836
    %v1838 = vlaneseq
    %v1839 = vshrl.u32 %v1838, 7
    %v1840 = vsub.s32 %v1837, %v1839
    %v1841 = vrot.slane %v1827, %v1840
    %v1844 = vunpack.c.l.s4 1966171168
    %v1845 = vunpack.c.0.s8 %v1844
    %v1846 = vlaneseq
    %v1847 = vshrl.u32 %v1846, 7
    %v1848 = vsub.s32 %v1845, %v1847
    %v1849 = vrot.slane %v1123, %v1848
    %v1850 = vcombine.high %v1849, %v1849
    %v1852 = vunpack.c.l.s4 1966171168
    %v1853 = vunpack.c.0.s8 %v1852
    %v1854 = vlaneseq
    %v1855 = vshrl.u32 %v1854, 7
    %v1856 = vsub.s32 %v1853, %v1855
    %v1857 = vrot.slane %v1849, %v1856
    %v1859 = vunpack.c.l.s4 1966171168
    %v1860 = vunpack.c.0.s8 %v1859
    %v1861 = vlaneseq
    %v1862 = vshrl.u32 %v1861, 7
    %v1863 = vsub.s32 %v1860, %v1862
    %v1864 = vrot.slane %v1850, %v1863
    %v1867 = vunpack.c.l.s4 1966171168
    %v1868 = vunpack.c.0.s8 %v1867
    %v1869 = vlaneseq
    %v1870 = vshrl.u32 %v1869, 7
    %v1871 = vsub.s32 %v1868, %v1870
    %v1872 = vrot.slane %v1283, %v1871
    %v1873 = vcombine.high %v1872, %v1872
    %v1875 = vunpack.c.l.s4 1966171168
    %v1876 = vunpack.c.0.s8 %v1875
    %v1877 = vlaneseq
    %v1878 = vshrl.u32 %v1877, 7
    %v1879 = vsub.s32 %v1876, %v1878
    %v1880 = vrot.slane %v1872, %v1879
    %v1882 = vunpack.c.l.s4 1966171168
    %v1883 = vunpack.c.0.s8 %v1882
    %v1884 = vlaneseq
    %v1885 = vshrl.u32 %v1884, 7
    %v1886 = vsub.s32 %v1883, %v1885
    %v1887 = vrot.slane %v1873, %v1886
    %v1890 = vunpack.c.l.s4 1966171168
    %v1891 = vunpack.c.0.s8 %v1890
    %v1892 = vlaneseq
    %v1893 = vshrl.u32 %v1892, 7
    %v1894 = vsub.s32 %v1891, %v1893
    %v1895 = vrot.slane %v1443, %v1894
    %v1896 = vcombine.high %v1895, %v1895
    %v1898 = vunpack.c.l.s4 1966171168
    %v1899 = vunpack.c.0.s8 %v1898
    %v1900 = vlaneseq
    %v1901 = vshrl.u32 %v1900, 7
    %v1902 = vsub.s32 %v1899, %v1901
    %v1903 = vrot.slane %v1895, %v1902
    %v1905 = vunpack.c.l.s4 1966171168
    %v1906 = vunpack.c.0.s8 %v1905
    %v1907 = vlaneseq
    %v1908 = vshrl.u32 %v1907, 7
    %v1909 = vsub.s32 %v1906, %v1908
    %v1910 = vrot.slane %v1896, %v1909
    %v1911 = vlaneseq
    %v1912 = vshrl.u32 %v1911, 7
    %v1913 = vsub.s32 0, %v1912
    %v1914 = vrot.slane %v1765, %v1913
    %v1915 = vlaneseq
    %v1916 = vshrl.u32 %v1915, 7
    %v1917 = vsub.s32 0, %v1916
    %v1918 = vrot.slane %v1772, %v1917
    %v1921 = vlaneseq
    %v1922 = vshrl.u32 %v1921, 7
    %v1923 = vsub.s32 0, %v1922
    %v1924 = vrot.slane %v1788, %v1923
    %v1925 = vlaneseq
    %v1926 = vshrl.u32 %v1925, 7
    %v1927 = vsub.s32 0, %v1926
    %v1928 = vrot.slane %v1795, %v1927
    %v1931 = vlaneseq
    %v1932 = vshrl.u32 %v1931, 7
    %v1933 = vsub.s32 0, %v1932
    %v1934 = vrot.slane %v1811, %v1933
    %v1935 = vlaneseq
    %v1936 = vshrl.u32 %v1935, 7
    %v1937 = vsub.s32 0, %v1936
    %v1938 = vrot.slane %v1818, %v1937
    %v1941 = vlaneseq
    %v1942 = vshrl.u32 %v1941, 7
    %v1943 = vsub.s32 0, %v1942
    %v1944 = vrot.slane %v1834, %v1943
    %v1945 = vlaneseq
    %v1946 = vshrl.u32 %v1945, 7
    %v1947 = vsub.s32 0, %v1946
    %v1948 = vrot.slane %v1841, %v1947
    %v1951 = vlaneseq
    %v1952 = vshrl.u32 %v1951, 7
    %v1953 = vsub.s32 0, %v1952
    %v1954 = vrot.slane %v1857, %v1953
    %v1955 = vlaneseq
    %v1956 = vshrl.u32 %v1955, 7
    %v1957 = vsub.s32 0, %v1956
    %v1958 = vrot.slane %v1864, %v1957
    %v1961 = vlaneseq
    %v1962 = vshrl.u32 %v1961, 7
    %v1963 = vsub.s32 0, %v1962
    %v1964 = vrot.slane %v1880, %v1963
    %v1965 = vlaneseq
    %v1966 = vshrl.u32 %v1965, 7
    %v1967 = vsub.s32 0, %v1966
    %v1968 = vrot.slane %v1887, %v1967
    %v1971 = vlaneseq
    %v1972 = vshrl.u32 %v1971, 7
    %v1973 = vsub.s32 0, %v1972
    %v1974 = vrot.slane %v1903, %v1973
    %v1975 = vlaneseq
    %v1976 = vshrl.u32 %v1975, 7
    %v1977 = vsub.s32 0, %v1976
    %v1978 = vrot.slane %v1910, %v1977
    %v1981 = vsel %vm1704, %v1740, %v1914
    %v1982 = vsel %vm1704, %v1747, %v1918
    %v1983 = vsel %vm1707, %v1981, %v1924
    %v1984 = vsel %vm1707, %v1982, %v1928
    %v1985 = vsel %vm1710, %v1983, %v1934
    %v1986 = vsel %vm1710, %v1984, %v1938
    %v1987 = vsel %vm1713, %v1985, %v1944
    %v1988 = vsel %vm1713, %v1986, %v1948
    %v1989 = vsel %vm1716, %v1987, %v1954
    %v1990 = vsel %vm1716, %v1988, %v1958
    %v1991 = vsel %vm1719, %v1989, %v1964
    %v1992 = vsel %vm1719, %v1990, %v1968
    %v1993 = vsel %vm1722, %v1991, %v1974
    %v1994 = vsel %vm1722, %v1992, %v1978
    %v1995 = vlaneseq
    %v1996 = vand.u32 %v1995, 127
    %1997 = vmatprep.subr.bf16.mxu0 0
    %1998 = vmatpush1.bf16.msra.mxu0 %v88
    %1999 = vmatprep.subr.bf16.mxu0 0
    %2000 = vmatpush1.bf16.msra.mxu0 %v89
    %2001 = vmatprep.subr.bf16.mxu0 0
    %2002 = vmatpush1.bf16.msra.mxu0 0
    %2003 = vmatprep.subr.bf16.mxu0 0
    %2004 = vmatpush1.bf16.msra.mxu0 0
    %2005 = vmatprep.subr.bf16.mxu0 0
    %2006 = vmatpush1.bf16.msra.mxu0 0
    %2007 = vmatprep.subr.bf16.mxu0 0
    %2008 = vmatpush1.bf16.msra.mxu0 0
    %2009 = vmatprep.subr.bf16.mxu0 0
    %2010 = vmatpush1.bf16.msra.mxu0 0
    %2011 = vmatprep.subr.bf16.mxu0 0
    %2012 = vmatpush1.bf16.msra.mxu0 0
    %2013 = vmatprep.subr.bf16.mxu0 0
    %2014 = vmatpush1.bf16.msra.mxu0 0
    %2015 = vmatprep.subr.bf16.mxu0 0
    %2016 = vmatpush1.bf16.msra.mxu0 0
    %2017 = vmatprep.subr.bf16.mxu0 0
    %2018 = vmatpush1.bf16.msra.mxu0 0
    %2019 = vmatprep.subr.bf16.mxu0 0
    %2020 = vmatpush1.bf16.msra.mxu0 0
    %2021 = vmatprep.subr.bf16.mxu0 0
    %2022 = vmatpush1.bf16.msra.mxu0 0
    %2023 = vmatprep.subr.bf16.mxu0 0
    %2024 = vmatpush1.bf16.msra.mxu0 0
    %2025 = vmatprep.subr.bf16.mxu0 0
    %2026 = vmatpush1.bf16.msra.mxu0 0
    %2027 = vmatprep.subr.bf16.mxu0 0
    %2028 = vmatpush1.bf16.msra.mxu0 0
    %2029 = vmatprep.mubr.bf16.mxu0 0
    %2030 = vmatmul.mubr.bf16.gmra.mrb[0].mxu0 %v1406
    %v2031 = vpop.f32.mrb[0].mxu0
    %v2032 = vadd.f32 0.0, %v2031
    %v2033 = vpop.f32.mrb[0].mxu0
    %v2034 = vpop.f32.mrb[0].mxu0
    %v2035 = vpop.f32.mrb[0].mxu0
    %2036 = vdwg.mxu0
    %v2039 = vunpack.c.l.s4 1966171168
    %v2040 = vunpack.c.0.s8 %v2039
    %v2041 = vlaneseq
    %v2042 = vshrl.u32 %v2041, 7
    %v2043 = vsub.s32 %v2040, %v2042
    %v2044 = vrot.slane %v2032, %v2043
    %v2045 = vcombine.high %v2044, %v2044
    %v2047 = vunpack.c.l.s4 1966171168
    %v2048 = vunpack.c.0.s8 %v2047
    %v2049 = vlaneseq
    %v2050 = vshrl.u32 %v2049, 7
    %v2051 = vsub.s32 %v2048, %v2050
    %v2052 = vrot.slane %v2044, %v2051
    %v2054 = vunpack.c.l.s4 1966171168
    %v2055 = vunpack.c.0.s8 %v2054
    %v2056 = vlaneseq
    %v2057 = vshrl.u32 %v2056, 7
    %v2058 = vsub.s32 %v2055, %v2057
    %v2059 = vrot.slane %v2045, %v2058
    %v2060 = vlaneseq
    %v2061 = vshrl.u32 %v2060, 7
    %v2062 = vsub.s32 0, %v2061
    %v2063 = vrot.slane %v2052, %v2062
    %v2064 = vlaneseq
    %v2065 = vshrl.u32 %v2064, 7
    %v2066 = vsub.s32 0, %v2065
    %v2067 = vrot.slane %v2059, %v2066
    %v2070 = vadd.f32 %v1993, %v2063
    %v2071 = vadd.f32 %v1994, %v2067
    %v2072 = vtanh.pop %v2070
    %v2073 = vtanh.pop %v2071
    %v2075 = vlaneseq
    %v2076 = vshrl.u32 %v2075, 7
    %v2077 = vsub.s32 0, %v2076
    %v2078 = vrot.slane %v97, %v2077
    %v2080 = vmul.f32 %v2072, %v2078
    %v2081 = vmul.f32 %v2073, %v2078
    %v2082 = vsel %vm206, %v2080, 0.0
    %2083 = vadd.xlane.f32.xlu0 %v2082
    %v2084 = vpop.xlane.xlu0 %2083
    %v2085 = vsel %vm206, %v2081, 0.0
    %2086 = vadd.xlane.f32.xlu0 %v2085
    %v2087 = vpop.xlane.xlu0 %2086
    %v2090 = vlaneseq
    %v2091 = vshrl.u32 %v2090, 7
    %v2092 = vsub.s32 %v1996, %v2091
    %v2093 = vrot.slane %v2084, %v2092
    %v2094 = vlaneseq
    %v2095 = vshrl.u32 %v2094, 7
    %v2096 = vsub.s32 %v1996, %v2095
    %v2097 = vrot.slane %v2087, %v2096
    %v2098 = vsel %vm153, %v2097, %v2093
    %vm2100 = vcmask 58368
    %v2101 = vsel %vm2100, %v2098, -inf
    %2102 = vmax.xlane.f32.xlu0 %v2101
    %v2103 = vpop.xlane.xlu0 %2102
    %v2105 = vlaneseq
    %v2106 = vshrl.u32 %v2105, 7
    %v2107 = vsub.s32 0, %v2106
    %v2108 = vrot.slane %v2103, %v2107
    %v2109 = vlaneseq
    %v2110 = vshrl.u32 %v2109, 7
    %v2111 = vsub.s32 1, %v2110
    %v2112 = vrot.slane %v2103, %v2111
    %v2115 = vsub.f32 %v2084, %v2108
    %v2116 = vsub.f32 %v2087, %v2112
    %v2117 = vmul.f32 %v2115, 1.442695
    %v2118 = vpow.pop %v2117
    %v2119 = vmul.f32 %v2116, 1.442695
    %v2120 = vpow.pop %v2119
    %2123 = vset.pattern.permute.xlu0 0
    %2124 = vperm.xlu0 %2123, %v2118
    %v2125 = vpop.permute.xlu0 %2124
    %2126 = vset.pattern.permute.xlu0 0
    %2127 = vperm.xlu0 %2126, %v2120
    %v2128 = vpop.permute.xlu0 %2127
    %v2129 = vlaneseq
    %v2130 = vshrl.u32 %v2129, 7
    %v2131 = vsub.s32 %v1996, %v2130
    %v2132 = vrot.slane %v2125, %v2131
    %v2133 = vlaneseq
    %v2134 = vshrl.u32 %v2133, 7
    %v2135 = vsub.s32 %v1996, %v2134
    %v2136 = vrot.slane %v2128, %v2135
    %v2137 = vsel %vm153, %v2136, %v2132
    %v2139 = vsel %vm2100, %v2137, 0.0
    %2140 = vadd.xlane.f32.xlu0 %v2139
    %v2141 = vpop.xlane.xlu0 %2140
    %v2143 = vlaneseq
    %v2144 = vshrl.u32 %v2143, 7
    %v2145 = vsub.s32 0, %v2144
    %v2146 = vrot.slane %v2141, %v2145
    %v2147 = vlaneseq
    %v2148 = vshrl.u32 %v2147, 7
    %v2149 = vsub.s32 1, %v2148
    %v2150 = vrot.slane %v2141, %v2149
    %v2153 = vrcp.pop %v2146
    %v2154 = vmul.f32 %v2118, %v2153
    %v2155 = vrcp.pop %v2150
    %v2156 = vmul.f32 %v2120, %v2155
    %2158 = vset.pattern.permute.xlu0 0
    %2159 = vperm.xlu0 %2158, %v2154
    %v2160 = vpop.permute.xlu0 %2159
    %2163 = vset.pattern.permute.xlu0 0
    %2164 = vperm.xlu0 %2163, %v2156
    %v2165 = vpop.permute.xlu0 %2164
    %v2167 = vmul.f32 %v2160, %v1723
    %v2168 = vmul.f32 %v2165, %v1724
    %vm2169 = vcmask 523520
    %v2170 = vsel %vm2169, %v2167, 0.0
    %v2171 = vrot.slane %v2170, 4
    %v2172 = vadd.f32 %v2170, %v2171
    %v2173 = vrot.slane %v2172, 2
    %v2174 = vadd.f32 %v2172, %v2173
    %v2175 = vrot.slane %v2174, 1
    %v2176 = vadd.f32 %v2174, %v2175
    %v2177 = vsel %vm2169, %v2168, 0.0
    %v2178 = vrot.slane %v2177, 4
    %v2179 = vadd.f32 %v2177, %v2178
    %v2180 = vrot.slane %v2179, 2
    %v2181 = vadd.f32 %v2179, %v2180
    %v2182 = vrot.slane %v2181, 1
    %v2183 = vadd.f32 %v2181, %v2182
    %v2186 = vrot.slane %v139, 7
    %v2187 = vsel %vm153, %v2186, %v138
    %v2191 = vsel %vm153, %v2183, %v2176
    %2192 = vrot.lane.b32.xlu0 %v2191, 112
    %v2193 = vpop.permute.xlu0 %2192
    %v2195 = vsel %vm156, %v2187, %v2193
    %v2196 = vpack.c.bf16 %v2195, %v2195
    %v2198 = vlaneseq
    %v2199 = vshrl.u32 %v2198, 7
    %v2200 = vsub.s32 0, %v2199
    %v2201 = vrot.slane %v113, %v2200
    %vm2203 = vcmask 392192
    %v2205 = vsel %vm2203, %v2196, 0
    %2207 = vmatprep.subr.bf16.mxu0 0
    %2208 = vmatpush1.bf16.msra.mxu0 %v104
    %2209 = vmatprep.subr.bf16.mxu0 0
    %2210 = vmatpush1.bf16.msra.mxu0 %v105
    %2211 = vmatprep.subr.bf16.mxu0 0
    %2212 = vmatpush1.bf16.msra.mxu0 %v106
    %2213 = vmatprep.subr.bf16.mxu0 0
    %2214 = vmatpush1.bf16.msra.mxu0 0
    %2215 = vmatprep.subr.bf16.mxu0 0
    %2216 = vmatpush1.bf16.msra.mxu0 0
    %2217 = vmatprep.subr.bf16.mxu0 0
    %2218 = vmatpush1.bf16.msra.mxu0 0
    %2219 = vmatprep.subr.bf16.mxu0 0
    %2220 = vmatpush1.bf16.msra.mxu0 0
    %2221 = vmatprep.subr.bf16.mxu0 0
    %2222 = vmatpush1.bf16.msra.mxu0 0
    %2223 = vmatprep.subr.bf16.mxu0 0
    %2224 = vmatpush1.bf16.msra.mxu0 0
    %2225 = vmatprep.subr.bf16.mxu0 0
    %2226 = vmatpush1.bf16.msra.mxu0 0
    %2227 = vmatprep.subr.bf16.mxu0 0
    %2228 = vmatpush1.bf16.msra.mxu0 0
    %2229 = vmatprep.subr.bf16.mxu0 0
    %2230 = vmatpush1.bf16.msra.mxu0 0
    %2231 = vmatprep.subr.bf16.mxu0 0
    %2232 = vmatpush1.bf16.msra.mxu0 0
    %2233 = vmatprep.subr.bf16.mxu0 0
    %2234 = vmatpush1.bf16.msra.mxu0 0
    %2235 = vmatprep.subr.bf16.mxu0 0
    %2236 = vmatpush1.bf16.msra.mxu0 0
    %2237 = vmatprep.subr.bf16.mxu0 0
    %2238 = vmatpush1.bf16.msra.mxu0 0
    %2239 = vmatprep.mubr.bf16.mxu0 0
    %2240 = vmatmul.mubr.bf16.gmra.mrb[0].mxu0 %v2205
    %v2241 = vpop.f32.mrb[0].mxu0
    %v2242 = vadd.f32 %v2201, %v2241
    %v2243 = vpop.f32.mrb[0].mxu0
    %v2244 = vpop.f32.mrb[0].mxu0
    %v2245 = vpop.f32.mrb[0].mxu0
    %2246 = vdwg.mxu0
    %v2248 = vlaneseq
    %v2249 = vshrl.u32 %v2248, 7
    %v2250 = vsub.s32 0, %v2249
    %v2251 = vrot.slane %v114, %v2250
    %2253 = vmatprep.subr.bf16.mxu0 0
    %2254 = vmatpush1.bf16.msra.mxu0 %v111
    %2255 = vmatprep.subr.bf16.mxu0 0
    %2256 = vmatpush1.bf16.msra.mxu0 %v112
    %2257 = vmatprep.subr.bf16.mxu0 0
    %2258 = vmatpush1.bf16.msra.mxu0 0
    %2259 = vmatprep.subr.bf16.mxu0 0
    %2260 = vmatpush1.bf16.msra.mxu0 0
    %2261 = vmatprep.subr.bf16.mxu0 0
    %2262 = vmatpush1.bf16.msra.mxu0 0
    %2263 = vmatprep.subr.bf16.mxu0 0
    %2264 = vmatpush1.bf16.msra.mxu0 0
    %2265 = vmatprep.subr.bf16.mxu0 0
    %2266 = vmatpush1.bf16.msra.mxu0 0
    %2267 = vmatprep.subr.bf16.mxu0 0
    %2268 = vmatpush1.bf16.msra.mxu0 0
    %2269 = vmatprep.subr.bf16.mxu0 0
    %2270 = vmatpush1.bf16.msra.mxu0 0
    %2271 = vmatprep.subr.bf16.mxu0 0
    %2272 = vmatpush1.bf16.msra.mxu0 0
    %2273 = vmatprep.subr.bf16.mxu0 0
    %2274 = vmatpush1.bf16.msra.mxu0 0
    %2275 = vmatprep.subr.bf16.mxu0 0
    %2276 = vmatpush1.bf16.msra.mxu0 0
    %2277 = vmatprep.subr.bf16.mxu0 0
    %2278 = vmatpush1.bf16.msra.mxu0 0
    %2279 = vmatprep.subr.bf16.mxu0 0
    %2280 = vmatpush1.bf16.msra.mxu0 0
    %2281 = vmatprep.subr.bf16.mxu0 0
    %2282 = vmatpush1.bf16.msra.mxu0 0
    %2283 = vmatprep.subr.bf16.mxu0 0
    %2284 = vmatpush1.bf16.msra.mxu0 0
    %2285 = vmatprep.mubr.bf16.mxu0 0
    %2286 = vmatmul.mubr.bf16.gmra.mrb[0].mxu0 %v1406
    %v2287 = vpop.f32.mrb[0].mxu0
    %v2288 = vadd.f32 %v2251, %v2287
    %v2289 = vpop.f32.mrb[0].mxu0
    %v2290 = vpop.f32.mrb[0].mxu0
    %v2291 = vpop.f32.mrb[0].mxu0
    %2292 = vdwg.mxu0
    %v2293 = vadd.f32 %v2242, %v2288
    %v2294 = vxor.u32 %v2293, 2147483648
    %v2295 = vmul.f32 %v2294, 1.442695
    %v2296 = vpow.pop %v2295
    %v2297 = vadd.f32 %v2296, 1.0
    %v2298 = vrcp.pop %v2297
    %v2299 = vmul.f32 1.0, %v2298
    %2301 = vrot.lane.b32.xlu0 %v2288, 64
    %v2302 = vpop.permute.xlu0 %2301
    %v2304 = vmul.f32 %v2299, %v2302
    %2306 = vrot.lane.b32.xlu0 %v2304, 64
    %v2307 = vpop.permute.xlu0 %2306
    %v2309 = vadd.f32 %v2242, %v2307
    %v2310 = vtanh.pop %v2309
    %v2311 = vsub.f32 1.0, %v2299
    %2313 = vrot.lane.b32.xlu0 %v2310, 96
    %v2314 = vpop.permute.xlu0 %2313
    %v2316 = vmul.f32 %v2311, %v2314
    %v2317 = vmul.f32 %v2299, %v1400
    %v2318 = vadd.f32 %v2316, %v2317
    %2320 = vrot.lane.b32.xlu0 %v2318, 96
    %v2321 = vpop.permute.xlu0 %2320
    %2324 = vrot.lane.b32.xlu0 %v2187, 64
    %v2325 = vpop.permute.xlu0 %2324
    %v2327 = vsel %vm206, %v2321, %v2191
    %vm2328 = vcmask 523264
    %v2329 = vsel %vm2328, %v2327, %v2325
    %v2330 = vpack.c.bf16 %v2329, %v2329
    %v2332 = vlaneseq
    %v2333 = vshrl.u32 %v2332, 7
    %v2334 = vsub.s32 0, %v2333
    %v2335 = vrot.slane %v130, %v2334
    %vm2337 = vcmask 654336
    %v2339 = vsel %vm2337, %v2330, 0
    %2341 = vmatprep.subr.bf16.mxu0 0
    %2342 = vmatpush1.bf16.msra.mxu0 %v125
    %2343 = vmatprep.subr.bf16.mxu0 0
    %2344 = vmatpush1.bf16.msra.mxu0 %v126
    %2345 = vmatprep.subr.bf16.mxu0 0
    %2346 = vmatpush1.bf16.msra.mxu0 %v127
    %2347 = vmatprep.subr.bf16.mxu0 0
    %2348 = vmatpush1.bf16.msra.mxu0 %v128
    %2349 = vmatprep.subr.bf16.mxu0 0
    %2350 = vmatpush1.bf16.msra.mxu0 %v129
    %2351 = vmatprep.subr.bf16.mxu0 0
    %2352 = vmatpush1.bf16.msra.mxu0 0
    %2353 = vmatprep.subr.bf16.mxu0 0
    %2354 = vmatpush1.bf16.msra.mxu0 0
    %2355 = vmatprep.subr.bf16.mxu0 0
    %2356 = vmatpush1.bf16.msra.mxu0 0
    %2357 = vmatprep.subr.bf16.mxu0 0
    %2358 = vmatpush1.bf16.msra.mxu0 0
    %2359 = vmatprep.subr.bf16.mxu0 0
    %2360 = vmatpush1.bf16.msra.mxu0 0
    %2361 = vmatprep.subr.bf16.mxu0 0
    %2362 = vmatpush1.bf16.msra.mxu0 0
    %2363 = vmatprep.subr.bf16.mxu0 0
    %2364 = vmatpush1.bf16.msra.mxu0 0
    %2365 = vmatprep.subr.bf16.mxu0 0
    %2366 = vmatpush1.bf16.msra.mxu0 0
    %2367 = vmatprep.subr.bf16.mxu0 0
    %2368 = vmatpush1.bf16.msra.mxu0 0
    %2369 = vmatprep.subr.bf16.mxu0 0
    %2370 = vmatpush1.bf16.msra.mxu0 0
    %2371 = vmatprep.subr.bf16.mxu0 0
    %2372 = vmatpush1.bf16.msra.mxu0 0
    %2373 = vmatprep.mubr.bf16.mxu0 0
    %2374 = vmatmul.mubr.bf16.gmra.mrb[0].mxu0 %v2339
    %v2375 = vpop.f32.mrb[0].mxu0
    %v2376 = vadd.f32 %v2335, %v2375
    %v2377 = vpop.f32.mrb[0].mxu0
    %v2378 = vpop.f32.mrb[0].mxu0
    %v2379 = vpop.f32.mrb[0].mxu0
    %2380 = vdwg.mxu0
    %vm2381 = vcmask 189440
    %v2382 = vsel %vm2381, %v2376, -inf
    %2383 = vmax.xlane.f32.xlu0 %v2382
    %v2384 = vpop.xlane.xlu0 %2383
    %vm2385 = vcmp.ge.f32.partialorder %v2376, %v2384
    %v2386 = vsel %vm2385, %v1996, 24
    %v2387 = vsel %vm2381, %v2386, 2147483647
    %v2388 = vand.u32 %v2387, 65535
    %v2389 = vshra.s32 %v2387, 16
    %v2390 = vcvt.s32.f32 %v2388
    %v2391 = vcvt.s32.f32 %v2389
    %2392 = vmin.xlane.f32.xlu0 %v2391
    %v2393 = vpop.xlane.xlu0 %2392
    %vm2394 = vcmp.eq.f32.partialorder %v2391, %v2393
    %v2395 = vsel %vm2394, %v2390, inf
    %2396 = vmin.xlane.f32.xlu0 %v2395
    %v2397 = vpop.xlane.xlu0 %2396
    %v2398 = vcvt.f32.s32 %v2397
    %v2399 = vcvt.f32.s32 %v2393
    %v2400 = vshll.u32 %v2399, 16
    %v2401 = vadd.s32 %v2400, %v2398
    %vm2402 = vcmp.eq.s32.totalorder %v1996, %v2401
    %v2403 = vsel %vm2402, 1, 0
    %v2404 = vcvt.s32.f32 %v2403
    %v2405 = vpack.c.bf16 %v2404, %v2404
    %vm2406 = vcmask 195584
    %v2408 = vsel %vm2406, %v2405, 0
    %v2411 = vsel %vm1713, %v135, 0
    %2413 = vmatprep.subr.bf16.mxu0 0
    %2414 = vmatpush1.bf16.msra.mxu0 %v134
    %2415 = vmatprep.subr.bf16.mxu0 0
    %2416 = vmatpush1.bf16.msra.mxu0 %v2411
    %2417 = vmatprep.subr.bf16.mxu0 0
    %2418 = vmatpush1.bf16.msra.mxu0 0
    %2419 = vmatprep.subr.bf16.mxu0 0
    %2420 = vmatpush1.bf16.msra.mxu0 0
    %2421 = vmatprep.subr.bf16.mxu0 0
    %2422 = vmatpush1.bf16.msra.mxu0 0
    %2423 = vmatprep.subr.bf16.mxu0 0
    %2424 = vmatpush1.bf16.msra.mxu0 0
    %2425 = vmatprep.subr.bf16.mxu0 0
    %2426 = vmatpush1.bf16.msra.mxu0 0
    %2427 = vmatprep.subr.bf16.mxu0 0
    %2428 = vmatpush1.bf16.msra.mxu0 0
    %2429 = vmatprep.subr.bf16.mxu0 0
    %2430 = vmatpush1.bf16.msra.mxu0 0
    %2431 = vmatprep.subr.bf16.mxu0 0
    %2432 = vmatpush1.bf16.msra.mxu0 0
    %2433 = vmatprep.subr.bf16.mxu0 0
    %2434 = vmatpush1.bf16.msra.mxu0 0
    %2435 = vmatprep.subr.bf16.mxu0 0
    %2436 = vmatpush1.bf16.msra.mxu0 0
    %2437 = vmatprep.subr.bf16.mxu0 0
    %2438 = vmatpush1.bf16.msra.mxu0 0
    %2439 = vmatprep.subr.bf16.mxu0 0
    %2440 = vmatpush1.bf16.msra.mxu0 0
    %2441 = vmatprep.subr.bf16.mxu0 0
    %2442 = vmatpush1.bf16.msra.mxu0 0
    %2443 = vmatprep.subr.bf16.mxu0 0
    %2444 = vmatpush1.bf16.msra.mxu0 0
    %2445 = vmatprep.mubr.bf16.mxu0 0
    %2446 = vmatmul.mubr.bf16.gmra.mrb[0].mxu0 %v2408
    %v2447 = vpop.f32.mrb[0].mxu0
    %v2448 = vadd.f32 0.0, %v2447
    %v2449 = vpop.f32.mrb[0].mxu0
    %v2450 = vpop.f32.mrb[0].mxu0
    %v2451 = vpop.f32.mrb[0].mxu0
    %2452 = vdwg.mxu0
    %s2453 = sld [smem:[#allocation2 + $0x1]]
    %p2454 = scmp.gt.s32.totalorder %s2453, 0
    %s2455 = scalar_select %p2454, 1, 0
    %v2456 = vstv %s2455
    %vm2457 = vcmp.eq.s32.totalorder %v2456, 1
    %v2459 = vrot.slane %v2448, 7
    %v2462 = vsel %vm2457, %v138, %v2459
    %v2463 = vsel %vm2457, %v139, %v2448
    %v2464 = vpack.c.bf16 %v2318, %v2318
    %2466 = vrot.lane.b32.xlu0 %v2464, 96
    %v2467 = vpop.permute.xlu0 %2466
    %v2469 = vsel %vm206, %v2467, 0
    %2471 = vmatprep.subr.bf16.mxu0 0
    %2472 = vmatpush1.bf16.msra.mxu0 %v88
    %2473 = vmatprep.subr.bf16.mxu0 0
    %2474 = vmatpush1.bf16.msra.mxu0 %v89
    %2475 = vmatprep.subr.bf16.mxu0 0
    %2476 = vmatpush1.bf16.msra.mxu0 0
    %2477 = vmatprep.subr.bf16.mxu0 0
    %2478 = vmatpush1.bf16.msra.mxu0 0
    %2479 = vmatprep.subr.bf16.mxu0 0
    %2480 = vmatpush1.bf16.msra.mxu0 0
    %2481 = vmatprep.subr.bf16.mxu0 0
    %2482 = vmatpush1.bf16.msra.mxu0 0
    %2483 = vmatprep.subr.bf16.mxu0 0
    %2484 = vmatpush1.bf16.msra.mxu0 0
    %2485 = vmatprep.subr.bf16.mxu0 0
    %2486 = vmatpush1.bf16.msra.mxu0 0
    %2487 = vmatprep.subr.bf16.mxu0 0
    %2488 = vmatpush1.bf16.msra.mxu0 0
    %2489 = vmatprep.subr.bf16.mxu0 0
    %2490 = vmatpush1.bf16.msra.mxu0 0
    %2491 = vmatprep.subr.bf16.mxu0 0
    %2492 = vmatpush1.bf16.msra.mxu0 0
    %2493 = vmatprep.subr.bf16.mxu0 0
    %2494 = vmatpush1.bf16.msra.mxu0 0
    %2495 = vmatprep.subr.bf16.mxu0 0
    %2496 = vmatpush1.bf16.msra.mxu0 0
    %2497 = vmatprep.subr.bf16.mxu0 0
    %2498 = vmatpush1.bf16.msra.mxu0 0
    %2499 = vmatprep.subr.bf16.mxu0 0
    %2500 = vmatpush1.bf16.msra.mxu0 0
    %2501 = vmatprep.subr.bf16.mxu0 0
    %2502 = vmatpush1.bf16.msra.mxu0 0
    %2503 = vmatprep.mubr.bf16.mxu0 0
    %2504 = vmatmul.mubr.bf16.gmra.mrb[0].mxu0 %v2469
    %v2505 = vpop.f32.mrb[0].mxu0
    %v2506 = vadd.f32 0.0, %v2505
    %v2507 = vpop.f32.mrb[0].mxu0
    %v2508 = vpop.f32.mrb[0].mxu0
    %v2509 = vpop.f32.mrb[0].mxu0
    %2510 = vdwg.mxu0
    %v2513 = vunpack.c.l.s4 1966171168
    %v2514 = vunpack.c.0.s8 %v2513
    %v2515 = vlaneseq
    %v2516 = vshrl.u32 %v2515, 7
    %v2517 = vsub.s32 %v2514, %v2516
    %v2518 = vrot.slane %v2506, %v2517
    %v2519 = vcombine.high %v2518, %v2518
    %v2521 = vunpack.c.l.s4 1966171168
    %v2522 = vunpack.c.0.s8 %v2521
    %v2523 = vlaneseq
    %v2524 = vshrl.u32 %v2523, 7
    %v2525 = vsub.s32 %v2522, %v2524
    %v2526 = vrot.slane %v2518, %v2525
    %v2528 = vunpack.c.l.s4 1966171168
    %v2529 = vunpack.c.0.s8 %v2528
    %v2530 = vlaneseq
    %v2531 = vshrl.u32 %v2530, 7
    %v2532 = vsub.s32 %v2529, %v2531
    %v2533 = vrot.slane %v2519, %v2532
    %v2534 = vlaneseq
    %v2535 = vshrl.u32 %v2534, 7
    %v2536 = vsub.s32 0, %v2535
    %v2537 = vrot.slane %v2526, %v2536
    %v2538 = vlaneseq
    %v2539 = vshrl.u32 %v2538, 7
    %v2540 = vsub.s32 0, %v2539
    %v2541 = vrot.slane %v2533, %v2540
    %v2544 = vadd.f32 %v1993, %v2537
    %v2545 = vadd.f32 %v1994, %v2541
    %v2546 = vtanh.pop %v2544
    %v2547 = vtanh.pop %v2545
    %v2548 = vmul.f32 %v2546, %v2078
    %v2549 = vmul.f32 %v2547, %v2078
    %v2550 = vsel %vm206, %v2548, 0.0
    %2551 = vadd.xlane.f32.xlu0 %v2550
    %v2552 = vpop.xlane.xlu0 %2551
    %v2553 = vsel %vm206, %v2549, 0.0
    %2554 = vadd.xlane.f32.xlu0 %v2553
    %v2555 = vpop.xlane.xlu0 %2554
    %v2558 = vlaneseq
    %v2559 = vshrl.u32 %v2558, 7
    %v2560 = vsub.s32 %v1996, %v2559
    %v2561 = vrot.slane %v2552, %v2560
    %v2562 = vlaneseq
    %v2563 = vshrl.u32 %v2562, 7
    %v2564 = vsub.s32 %v1996, %v2563
    %v2565 = vrot.slane %v2555, %v2564
    %v2566 = vsel %vm153, %v2565, %v2561
    %v2568 = vsel %vm2100, %v2566, -inf
    %2569 = vmax.xlane.f32.xlu0 %v2568
    %v2570 = vpop.xlane.xlu0 %2569
    %v2572 = vlaneseq
    %v2573 = vshrl.u32 %v2572, 7
    %v2574 = vsub.s32 0, %v2573
    %v2575 = vrot.slane %v2570, %v2574
    %v2576 = vlaneseq
    %v2577 = vshrl.u32 %v2576, 7
    %v2578 = vsub.s32 1, %v2577
    %v2579 = vrot.slane %v2570, %v2578
    %v2582 = vsub.f32 %v2552, %v2575
    %v2583 = vsub.f32 %v2555, %v2579
    %v2584 = vmul.f32 %v2582, 1.442695
    %v2585 = vpow.pop %v2584
    %v2586 = vmul.f32 %v2583, 1.442695
    %v2587 = vpow.pop %v2586
    %2590 = vset.pattern.permute.xlu0 0
    %2591 = vperm.xlu0 %2590, %v2585
    %v2592 = vpop.permute.xlu0 %2591
    %2593 = vset.pattern.permute.xlu0 0
    %2594 = vperm.xlu0 %2593, %v2587
    %v2595 = vpop.permute.xlu0 %2594
    %v2596 = vlaneseq
    %v2597 = vshrl.u32 %v2596, 7
    %v2598 = vsub.s32 %v1996, %v2597
    %v2599 = vrot.slane %v2592, %v2598
    %v2600 = vlaneseq
    %v2601 = vshrl.u32 %v2600, 7
    %v2602 = vsub.s32 %v1996, %v2601
    %v2603 = vrot.slane %v2595, %v2602
    %v2604 = vsel %vm153, %v2603, %v2599
    %v2606 = vsel %vm2100, %v2604, 0.0
    %2607 = vadd.xlane.f32.xlu0 %v2606
    %v2608 = vpop.xlane.xlu0 %2607
    %v2610 = vlaneseq
    %v2611 = vshrl.u32 %v2610, 7
    %v2612 = vsub.s32 0, %v2611
    %v2613 = vrot.slane %v2608, %v2612
    %v2614 = vlaneseq
    %v2615 = vshrl.u32 %v2614, 7
    %v2616 = vsub.s32 1, %v2615
    %v2617 = vrot.slane %v2608, %v2616
    %v2620 = vrcp.pop %v2613
    %v2621 = vmul.f32 %v2585, %v2620
    %v2622 = vrcp.pop %v2617
    %v2623 = vmul.f32 %v2587, %v2622
    %2625 = vset.pattern.permute.xlu0 0
    %2626 = vperm.xlu0 %2625, %v2621
    %v2627 = vpop.permute.xlu0 %2626
    %2630 = vset.pattern.permute.xlu0 0
    %2631 = vperm.xlu0 %2630, %v2623
    %v2632 = vpop.permute.xlu0 %2631
    %v2634 = vmul.f32 %v2627, %v1723
    %v2635 = vmul.f32 %v2632, %v1724
    %v2636 = vsel %vm2169, %v2634, 0.0
    %v2637 = vrot.slane %v2636, 4
    %v2638 = vadd.f32 %v2636, %v2637
    %v2639 = vrot.slane %v2638, 2
    %v2640 = vadd.f32 %v2638, %v2639
    %v2641 = vrot.slane %v2640, 1
    %v2642 = vadd.f32 %v2640, %v2641
    %v2643 = vsel %vm2169, %v2635, 0.0
    %v2644 = vrot.slane %v2643, 4
    %v2645 = vadd.f32 %v2643, %v2644
    %v2646 = vrot.slane %v2645, 2
    %v2647 = vadd.f32 %v2645, %v2646
    %v2648 = vrot.slane %v2647, 1
    %v2649 = vadd.f32 %v2647, %v2648
    %v2652 = vrot.slane %v2463, 7
    %vm2653 = vcmask 1042434
    %v2654 = vsel %vm2653, %v2652, %v2462
    %v2658 = vsel %vm2653, %v2649, %v2642
    %2659 = vrot.lane.b32.xlu0 %v2658, 112
    %v2660 = vpop.permute.xlu0 %2659
    %v2662 = vsel %vm156, %v2654, %v2660
    %v2663 = vpack.c.bf16 %v2662, %v2662
    %v2665 = vshrl.u32 %v2663, 16
    %v2667 = vshll.u32 %v2663, 16
    %v2669 = vrot.slane %v2667, 1
    %v2670 = vor.u32 %v2665, %v2669
    %v2672 = vsel %vm2203, %v2670, 0
    %2674 = vmatprep.subr.bf16.mxu0 0
    %2675 = vmatpush1.bf16.msra.mxu0 %v104
    %2676 = vmatprep.subr.bf16.mxu0 0
    %2677 = vmatpush1.bf16.msra.mxu0 %v105
    %2678 = vmatprep.subr.bf16.mxu0 0
    %2679 = vmatpush1.bf16.msra.mxu0 %v106
    %2680 = vmatprep.subr.bf16.mxu0 0
    %2681 = vmatpush1.bf16.msra.mxu0 0
    %2682 = vmatprep.subr.bf16.mxu0 0
    %2683 = vmatpush1.bf16.msra.mxu0 0
    %2684 = vmatprep.subr.bf16.mxu0 0
    %2685 = vmatpush1.bf16.msra.mxu0 0
    %2686 = vmatprep.subr.bf16.mxu0 0
    %2687 = vmatpush1.bf16.msra.mxu0 0
    %2688 = vmatprep.subr.bf16.mxu0 0
    %2689 = vmatpush1.bf16.msra.mxu0 0
    %2690 = vmatprep.subr.bf16.mxu0 0
    %2691 = vmatpush1.bf16.msra.mxu0 0
    %2692 = vmatprep.subr.bf16.mxu0 0
    %2693 = vmatpush1.bf16.msra.mxu0 0
    %2694 = vmatprep.subr.bf16.mxu0 0
    %2695 = vmatpush1.bf16.msra.mxu0 0
    %2696 = vmatprep.subr.bf16.mxu0 0
    %2697 = vmatpush1.bf16.msra.mxu0 0
    %2698 = vmatprep.subr.bf16.mxu0 0
    %2699 = vmatpush1.bf16.msra.mxu0 0
    %2700 = vmatprep.subr.bf16.mxu0 0
    %2701 = vmatpush1.bf16.msra.mxu0 0
    %2702 = vmatprep.subr.bf16.mxu0 0
    %2703 = vmatpush1.bf16.msra.mxu0 0
    %2704 = vmatprep.subr.bf16.mxu0 0
    %2705 = vmatpush1.bf16.msra.mxu0 0
    %2706 = vmatprep.mubr.bf16.mxu0 0
    %2707 = vmatmul.mubr.bf16.gmra.mrb[0].mxu0 %v2672
    %v2708 = vpop.f32.mrb[0].mxu0
    %v2709 = vadd.f32 %v2201, %v2708
    %v2710 = vpop.f32.mrb[0].mxu0
    %v2711 = vpop.f32.mrb[0].mxu0
    %v2712 = vpop.f32.mrb[0].mxu0
    %2713 = vdwg.mxu0
    %2714 = vmatprep.subr.bf16.mxu0 0
    %2715 = vmatpush1.bf16.msra.mxu0 %v111
    %2716 = vmatprep.subr.bf16.mxu0 0
    %2717 = vmatpush1.bf16.msra.mxu0 %v112
    %2718 = vmatprep.subr.bf16.mxu0 0
    %2719 = vmatpush1.bf16.msra.mxu0 0
    %2720 = vmatprep.subr.bf16.mxu0 0
    %2721 = vmatpush1.bf16.msra.mxu0 0
    %2722 = vmatprep.subr.bf16.mxu0 0
    %2723 = vmatpush1.bf16.msra.mxu0 0
    %2724 = vmatprep.subr.bf16.mxu0 0
    %2725 = vmatpush1.bf16.msra.mxu0 0
    %2726 = vmatprep.subr.bf16.mxu0 0
    %2727 = vmatpush1.bf16.msra.mxu0 0
    %2728 = vmatprep.subr.bf16.mxu0 0
    %2729 = vmatpush1.bf16.msra.mxu0 0
    %2730 = vmatprep.subr.bf16.mxu0 0
    %2731 = vmatpush1.bf16.msra.mxu0 0
    %2732 = vmatprep.subr.bf16.mxu0 0
    %2733 = vmatpush1.bf16.msra.mxu0 0
    %2734 = vmatprep.subr.bf16.mxu0 0
    %2735 = vmatpush1.bf16.msra.mxu0 0
    %2736 = vmatprep.subr.bf16.mxu0 0
    %2737 = vmatpush1.bf16.msra.mxu0 0
    %2738 = vmatprep.subr.bf16.mxu0 0
    %2739 = vmatpush1.bf16.msra.mxu0 0
    %2740 = vmatprep.subr.bf16.mxu0 0
    %2741 = vmatpush1.bf16.msra.mxu0 0
    %2742 = vmatprep.subr.bf16.mxu0 0
    %2743 = vmatpush1.bf16.msra.mxu0 0
    %2744 = vmatprep.subr.bf16.mxu0 0
    %2745 = vmatpush1.bf16.msra.mxu0 0
    %2746 = vmatprep.mubr.bf16.mxu0 0
    %2747 = vmatmul.mubr.bf16.gmra.mrb[0].mxu0 %v2469
    %v2748 = vpop.f32.mrb[0].mxu0
    %v2749 = vadd.f32 %v2251, %v2748
    %v2750 = vpop.f32.mrb[0].mxu0
    %v2751 = vpop.f32.mrb[0].mxu0
    %v2752 = vpop.f32.mrb[0].mxu0
    %2753 = vdwg.mxu0
    %v2754 = vadd.f32 %v2709, %v2749
    %v2755 = vxor.u32 %v2754, 2147483648
    %v2756 = vmul.f32 %v2755, 1.442695
    %v2757 = vpow.pop %v2756
    %v2758 = vadd.f32 %v2757, 1.0
    %v2759 = vrcp.pop %v2758
    %v2760 = vmul.f32 1.0, %v2759
    %2762 = vrot.lane.b32.xlu0 %v2749, 64
    %v2763 = vpop.permute.xlu0 %2762
    %v2765 = vmul.f32 %v2760, %v2763
    %2767 = vrot.lane.b32.xlu0 %v2765, 64
    %v2768 = vpop.permute.xlu0 %2767
    %v2770 = vadd.f32 %v2709, %v2768
    %v2771 = vtanh.pop %v2770
    %v2772 = vsub.f32 1.0, %v2760
    %2774 = vrot.lane.b32.xlu0 %v2771, 96
    %v2775 = vpop.permute.xlu0 %2774
    %v2777 = vmul.f32 %v2772, %v2775
    %v2778 = vmul.f32 %v2760, %v2318
    %v2779 = vadd.f32 %v2777, %v2778
    %2781 = vrot.lane.b32.xlu0 %v2779, 96
    %v2782 = vpop.permute.xlu0 %2781
    %v2784 = vsel %vm153, %v2649, %v2642
    %v2786 = vrot.slane %v2462, 1
    %v2787 = vsel %vm153, %v2463, %v2786
    %2788 = vrot.lane.b32.xlu0 %v2787, 64
    %v2789 = vpop.permute.xlu0 %2788
    %v2791 = vsel %vm206, %v2782, %v2784
    %v2792 = vsel %vm2328, %v2791, %v2789
    %v2793 = vpack.c.bf16 %v2792, %v2792
    %v2795 = vsel %vm2337, %v2793, 0
    %2797 = vmatprep.subr.bf16.mxu0 0
    %2798 = vmatpush1.bf16.msra.mxu0 %v125
    %2799 = vmatprep.subr.bf16.mxu0 0
    %2800 = vmatpush1.bf16.msra.mxu0 %v126
    %2801 = vmatprep.subr.bf16.mxu0 0
    %2802 = vmatpush1.bf16.msra.mxu0 %v127
    %2803 = vmatprep.subr.bf16.mxu0 0
    %2804 = vmatpush1.bf16.msra.mxu0 %v128
    %2805 = vmatprep.subr.bf16.mxu0 0
    %2806 = vmatpush1.bf16.msra.mxu0 %v129
    %2807 = vmatprep.subr.bf16.mxu0 0
    %2808 = vmatpush1.bf16.msra.mxu0 0
    %2809 = vmatprep.subr.bf16.mxu0 0
    %2810 = vmatpush1.bf16.msra.mxu0 0
    %2811 = vmatprep.subr.bf16.mxu0 0
    %2812 = vmatpush1.bf16.msra.mxu0 0
    %2813 = vmatprep.subr.bf16.mxu0 0
    %2814 = vmatpush1.bf16.msra.mxu0 0
    %2815 = vmatprep.subr.bf16.mxu0 0
    %2816 = vmatpush1.bf16.msra.mxu0 0
    %2817 = vmatprep.subr.bf16.mxu0 0
    %2818 = vmatpush1.bf16.msra.mxu0 0
    %2819 = vmatprep.subr.bf16.mxu0 0
    %2820 = vmatpush1.bf16.msra.mxu0 0
    %2821 = vmatprep.subr.bf16.mxu0 0
    %2822 = vmatpush1.bf16.msra.mxu0 0
    %2823 = vmatprep.subr.bf16.mxu0 0
    %2824 = vmatpush1.bf16.msra.mxu0 0
    %2825 = vmatprep.subr.bf16.mxu0 0
    %2826 = vmatpush1.bf16.msra.mxu0 0
    %2827 = vmatprep.subr.bf16.mxu0 0
    %2828 = vmatpush1.bf16.msra.mxu0 0
    %2829 = vmatprep.mubr.bf16.mxu0 0
    %2830 = vmatmul.mubr.bf16.gmra.mrb[0].mxu0 %v2795
    %v2831 = vpop.f32.mrb[0].mxu0
    %v2832 = vadd.f32 %v2335, %v2831
    %v2833 = vpop.f32.mrb[0].mxu0
    %v2834 = vpop.f32.mrb[0].mxu0
    %v2835 = vpop.f32.mrb[0].mxu0
    %2836 = vdwg.mxu0
    %v2837 = vsel %vm2381, %v2832, -inf
    %2838 = vmax.xlane.f32.xlu0 %v2837
    %v2839 = vpop.xlane.xlu0 %2838
    %vm2840 = vcmp.ge.f32.partialorder %v2832, %v2839
    %v2841 = vsel %vm2840, %v1996, 24
    %v2842 = vsel %vm2381, %v2841, 2147483647
    %v2843 = vand.u32 %v2842, 65535
    %v2844 = vshra.s32 %v2842, 16
    %v2845 = vcvt.s32.f32 %v2843
    %v2846 = vcvt.s32.f32 %v2844
    %2847 = vmin.xlane.f32.xlu0 %v2846
    %v2848 = vpop.xlane.xlu0 %2847
    %vm2849 = vcmp.eq.f32.partialorder %v2846, %v2848
    %v2850 = vsel %vm2849, %v2845, inf
    %2851 = vmin.xlane.f32.xlu0 %v2850
    %v2852 = vpop.xlane.xlu0 %2851
    %v2853 = vcvt.f32.s32 %v2852
    %v2854 = vcvt.f32.s32 %v2848
    %v2855 = vshll.u32 %v2854, 16
    %v2856 = vadd.s32 %v2855, %v2853
    %vm2857 = vcmp.eq.s32.totalorder %v1996, %v2856
    %v2858 = vsel %vm2857, 1, 0
    %v2859 = vcvt.s32.f32 %v2858
    %v2860 = vpack.c.bf16 %v2859, %v2859
    %v2862 = vsel %vm2406, %v2860, 0
    %2864 = vmatprep.subr.bf16.mxu0 0
    %2865 = vmatpush1.bf16.msra.mxu0 %v134
    %2866 = vmatprep.subr.bf16.mxu0 0
    %2867 = vmatpush1.bf16.msra.mxu0 %v2411
    %2868 = vmatprep.subr.bf16.mxu0 0
    %2869 = vmatpush1.bf16.msra.mxu0 0
    %2870 = vmatprep.subr.bf16.mxu0 0
    %2871 = vmatpush1.bf16.msra.mxu0 0
    %2872 = vmatprep.subr.bf16.mxu0 0
    %2873 = vmatpush1.bf16.msra.mxu0 0
    %2874 = vmatprep.subr.bf16.mxu0 0
    %2875 = vmatpush1.bf16.msra.mxu0 0
    %2876 = vmatprep.subr.bf16.mxu0 0
    %2877 = vmatpush1.bf16.msra.mxu0 0
    %2878 = vmatprep.subr.bf16.mxu0 0
    %2879 = vmatpush1.bf16.msra.mxu0 0
    %2880 = vmatprep.subr.bf16.mxu0 0
    %2881 = vmatpush1.bf16.msra.mxu0 0
    %2882 = vmatprep.subr.bf16.mxu0 0
    %2883 = vmatpush1.bf16.msra.mxu0 0
    %2884 = vmatprep.subr.bf16.mxu0 0
    %2885 = vmatpush1.bf16.msra.mxu0 0
    %2886 = vmatprep.subr.bf16.mxu0 0
    %2887 = vmatpush1.bf16.msra.mxu0 0
    %2888 = vmatprep.subr.bf16.mxu0 0
    %2889 = vmatpush1.bf16.msra.mxu0 0
    %2890 = vmatprep.subr.bf16.mxu0 0
    %2891 = vmatpush1.bf16.msra.mxu0 0
    %2892 = vmatprep.subr.bf16.mxu0 0
    %2893 = vmatpush1.bf16.msra.mxu0 0
    %2894 = vmatprep.subr.bf16.mxu0 0
    %2895 = vmatpush1.bf16.msra.mxu0 0
    %2896 = vmatprep.mubr.bf16.mxu0 0
    %2897 = vmatmul.mubr.bf16.gmra.mrb[0].mxu0 %v2862
    %v2898 = vpop.f32.mrb[0].mxu0
    %v2899 = vadd.f32 0.0, %v2898
    %v2900 = vpop.f32.mrb[0].mxu0
    %v2901 = vpop.f32.mrb[0].mxu0
    %v2902 = vpop.f32.mrb[0].mxu0
    %2903 = vdwg.mxu0
    %s2904 = sld [smem:[#allocation2 + $0x2]]
    %p2905 = scmp.gt.s32.totalorder %s2904, 0
    %s2906 = scalar_select %p2905, 1, 0
    %v2907 = vstv %s2906
    %vm2908 = vcmp.eq.s32.totalorder %v2907, 1
    %v2910 = vrot.slane %v2899, 6
    %v2911 = vrot.slane %v2899, 7
    %v2914 = vsel %vm2908, %v138, %v2910
    %v2915 = vsel %vm2908, %v139, %v2911
    %v2916 = vpack.c.bf16 %v2779, %v2779
    %2918 = vrot.lane.b32.xlu0 %v2916, 96
    %v2919 = vpop.permute.xlu0 %2918
    %v2921 = vsel %vm206, %v2919, 0
    %2923 = vmatprep.subr.bf16.mxu0 0
    %2924 = vmatpush1.bf16.msra.mxu0 %v88
    %2925 = vmatprep.subr.bf16.mxu0 0
    %2926 = vmatpush1.bf16.msra.mxu0 %v89
    %2927 = vmatprep.subr.bf16.mxu0 0
    %2928 = vmatpush1.bf16.msra.mxu0 0
    %2929 = vmatprep.subr.bf16.mxu0 0
    %2930 = vmatpush1.bf16.msra.mxu0 0
    %2931 = vmatprep.subr.bf16.mxu0 0
    %2932 = vmatpush1.bf16.msra.mxu0 0
    %2933 = vmatprep.subr.bf16.mxu0 0
    %2934 = vmatpush1.bf16.msra.mxu0 0
    %2935 = vmatprep.subr.bf16.mxu0 0
    %2936 = vmatpush1.bf16.msra.mxu0 0
    %2937 = vmatprep.subr.bf16.mxu0 0
    %2938 = vmatpush1.bf16.msra.mxu0 0
    %2939 = vmatprep.subr.bf16.mxu0 0
    %2940 = vmatpush1.bf16.msra.mxu0 0
    %2941 = vmatprep.subr.bf16.mxu0 0
    %2942 = vmatpush1.bf16.msra.mxu0 0
    %2943 = vmatprep.subr.bf16.mxu0 0
    %2944 = vmatpush1.bf16.msra.mxu0 0
    %2945 = vmatprep.subr.bf16.mxu0 0
    %2946 = vmatpush1.bf16.msra.mxu0 0
    %2947 = vmatprep.subr.bf16.mxu0 0
    %2948 = vmatpush1.bf16.msra.mxu0 0
    %2949 = vmatprep.subr.bf16.mxu0 0
    %2950 = vmatpush1.bf16.msra.mxu0 0
    %2951 = vmatprep.subr.bf16.mxu0 0
    %2952 = vmatpush1.bf16.msra.mxu0 0
    %2953 = vmatprep.subr.bf16.mxu0 0
    %2954 = vmatpush1.bf16.msra.mxu0 0
    %2955 = vmatprep.mubr.bf16.mxu0 0
    %2956 = vmatmul.mubr.bf16.gmra.mrb[0].mxu0 %v2921
    %v2957 = vpop.f32.mrb[0].mxu0
    %v2958 = vadd.f32 0.0, %v2957
    %v2959 = vpop.f32.mrb[0].mxu0
    %v2960 = vpop.f32.mrb[0].mxu0
    %v2961 = vpop.f32.mrb[0].mxu0
    %2962 = vdwg.mxu0
    %v2965 = vunpack.c.l.s4 1966171168
    %v2966 = vunpack.c.0.s8 %v2965
    %v2967 = vlaneseq
    %v2968 = vshrl.u32 %v2967, 7
    %v2969 = vsub.s32 %v2966, %v2968
    %v2970 = vrot.slane %v2958, %v2969
    %v2971 = vcombine.high %v2970, %v2970
    %v2973 = vunpack.c.l.s4 1966171168
    %v2974 = vunpack.c.0.s8 %v2973
    %v2975 = vlaneseq
    %v2976 = vshrl.u32 %v2975, 7
    %v2977 = vsub.s32 %v2974, %v2976
    %v2978 = vrot.slane %v2970, %v2977
    %v2980 = vunpack.c.l.s4 1966171168
    %v2981 = vunpack.c.0.s8 %v2980
    %v2982 = vlaneseq
    %v2983 = vshrl.u32 %v2982, 7
    %v2984 = vsub.s32 %v2981, %v2983
    %v2985 = vrot.slane %v2971, %v2984
    %v2986 = vlaneseq
    %v2987 = vshrl.u32 %v2986, 7
    %v2988 = vsub.s32 0, %v2987
    %v2989 = vrot.slane %v2978, %v2988
    %v2990 = vlaneseq
    %v2991 = vshrl.u32 %v2990, 7
    %v2992 = vsub.s32 0, %v2991
    %v2993 = vrot.slane %v2985, %v2992
    %v2996 = vadd.f32 %v1993, %v2989
    %v2997 = vadd.f32 %v1994, %v2993
    %v2998 = vtanh.pop %v2996
    %v2999 = vtanh.pop %v2997
    %v3000 = vmul.f32 %v2998, %v2078
    %v3001 = vmul.f32 %v2999, %v2078
    %v3002 = vsel %vm206, %v3000, 0.0
    %3003 = vadd.xlane.f32.xlu0 %v3002
    %v3004 = vpop.xlane.xlu0 %3003
    %v3005 = vsel %vm206, %v3001, 0.0
    %3006 = vadd.xlane.f32.xlu0 %v3005
    %v3007 = vpop.xlane.xlu0 %3006
    %v3010 = vlaneseq
    %v3011 = vshrl.u32 %v3010, 7
    %v3012 = vsub.s32 %v1996, %v3011
    %v3013 = vrot.slane %v3004, %v3012
    %v3014 = vlaneseq
    %v3015 = vshrl.u32 %v3014, 7
    %v3016 = vsub.s32 %v1996, %v3015
    %v3017 = vrot.slane %v3007, %v3016
    %v3018 = vsel %vm153, %v3017, %v3013
    %v3020 = vsel %vm2100, %v3018, -inf
    %3021 = vmax.xlane.f32.xlu0 %v3020
    %v3022 = vpop.xlane.xlu0 %3021
    %v3024 = vlaneseq
    %v3025 = vshrl.u32 %v3024, 7
    %v3026 = vsub.s32 0, %v3025
    %v3027 = vrot.slane %v3022, %v3026
    %v3028 = vlaneseq
    %v3029 = vshrl.u32 %v3028, 7
    %v3030 = vsub.s32 1, %v3029
    %v3031 = vrot.slane %v3022, %v3030
    %v3034 = vsub.f32 %v3004, %v3027
    %v3035 = vsub.f32 %v3007, %v3031
    %v3036 = vmul.f32 %v3034, 1.442695
    %v3037 = vpow.pop %v3036
    %v3038 = vmul.f32 %v3035, 1.442695
    %v3039 = vpow.pop %v3038
    %3042 = vset.pattern.permute.xlu0 0
    %3043 = vperm.xlu0 %3042, %v3037
    %v3044 = vpop.permute.xlu0 %3043
    %3045 = vset.pattern.permute.xlu0 0
    %3046 = vperm.xlu0 %3045, %v3039
    %v3047 = vpop.permute.xlu0 %3046
    %v3048 = vlaneseq
    %v3049 = vshrl.u32 %v3048, 7
    %v3050 = vsub.s32 %v1996, %v3049
    %v3051 = vrot.slane %v3044, %v3050
    %v3052 = vlaneseq
    %v3053 = vshrl.u32 %v3052, 7
    %v3054 = vsub.s32 %v1996, %v3053
    %v3055 = vrot.slane %v3047, %v3054
    %v3056 = vsel %vm153, %v3055, %v3051
    %v3058 = vsel %vm2100, %v3056, 0.0
    %3059 = vadd.xlane.f32.xlu0 %v3058
    %v3060 = vpop.xlane.xlu0 %3059
    %v3062 = vlaneseq
    %v3063 = vshrl.u32 %v3062, 7
    %v3064 = vsub.s32 0, %v3063
    %v3065 = vrot.slane %v3060, %v3064
    %v3066 = vlaneseq
    %v3067 = vshrl.u32 %v3066, 7
    %v3068 = vsub.s32 1, %v3067
    %v3069 = vrot.slane %v3060, %v3068
    %v3072 = vrcp.pop %v3065
    %v3073 = vmul.f32 %v3037, %v3072
    %v3074 = vrcp.pop %v3069
    %v3075 = vmul.f32 %v3039, %v3074
    %3077 = vset.pattern.permute.xlu0 0
    %3078 = vperm.xlu0 %3077, %v3073
    %v3079 = vpop.permute.xlu0 %3078
    %3082 = vset.pattern.permute.xlu0 0
    %3083 = vperm.xlu0 %3082, %v3075
    %v3084 = vpop.permute.xlu0 %3083
    %v3086 = vmul.f32 %v3079, %v1723
    %v3087 = vmul.f32 %v3084, %v1724
    %v3088 = vsel %vm2169, %v3086, 0.0
    %v3089 = vrot.slane %v3088, 4
    %v3090 = vadd.f32 %v3088, %v3089
    %v3091 = vrot.slane %v3090, 2
    %v3092 = vadd.f32 %v3090, %v3091
    %v3093 = vrot.slane %v3092, 1
    %v3094 = vadd.f32 %v3092, %v3093
    %v3095 = vsel %vm2169, %v3087, 0.0
    %v3096 = vrot.slane %v3095, 4
    %v3097 = vadd.f32 %v3095, %v3096
    %v3098 = vrot.slane %v3097, 2
    %v3099 = vadd.f32 %v3097, %v3098
    %v3100 = vrot.slane %v3099, 1
    %v3101 = vadd.f32 %v3099, %v3100
    %v3104 = vrot.slane %v2915, 7
    %vm3105 = vcmask 1043459
    %v3106 = vsel %vm3105, %v3104, %v2914
    %v3110 = vsel %vm3105, %v3101, %v3094
    %3111 = vrot.lane.b32.xlu0 %v3110, 112
    %v3112 = vpop.permute.xlu0 %3111
    %v3114 = vsel %vm156, %v3106, %v3112
    %v3115 = vpack.c.bf16 %v3114, %v3114
    %v3117 = vrot.slane %v3115, 1
    %v3119 = vsel %vm2203, %v3117, 0
    %3121 = vmatprep.subr.bf16.mxu0 0
    %3122 = vmatpush1.bf16.msra.mxu0 %v104
    %3123 = vmatprep.subr.bf16.mxu0 0
    %3124 = vmatpush1.bf16.msra.mxu0 %v105
    %3125 = vmatprep.subr.bf16.mxu0 0
    %3126 = vmatpush1.bf16.msra.mxu0 %v106
    %3127 = vmatprep.subr.bf16.mxu0 0
    %3128 = vmatpush1.bf16.msra.mxu0 0
    %3129 = vmatprep.subr.bf16.mxu0 0
    %3130 = vmatpush1.bf16.msra.mxu0 0
    %3131 = vmatprep.subr.bf16.mxu0 0
    %3132 = vmatpush1.bf16.msra.mxu0 0
    %3133 = vmatprep.subr.bf16.mxu0 0
    %3134 = vmatpush1.bf16.msra.mxu0 0
    %3135 = vmatprep.subr.bf16.mxu0 0
    %3136 = vmatpush1.bf16.msra.mxu0 0
    %3137 = vmatprep.subr.bf16.mxu0 0
    %3138 = vmatpush1.bf16.msra.mxu0 0
    %3139 = vmatprep.subr.bf16.mxu0 0
    %3140 = vmatpush1.bf16.msra.mxu0 0
    %3141 = vmatprep.subr.bf16.mxu0 0
    %3142 = vmatpush1.bf16.msra.mxu0 0
    %3143 = vmatprep.subr.bf16.mxu0 0
    %3144 = vmatpush1.bf16.msra.mxu0 0
    %3145 = vmatprep.subr.bf16.mxu0 0
    %3146 = vmatpush1.bf16.msra.mxu0 0
    %3147 = vmatprep.subr.bf16.mxu0 0
    %3148 = vmatpush1.bf16.msra.mxu0 0
    %3149 = vmatprep.subr.bf16.mxu0 0
    %3150 = vmatpush1.bf16.msra.mxu0 0
    %3151 = vmatprep.subr.bf16.mxu0 0
    %3152 = vmatpush1.bf16.msra.mxu0 0
    %3153 = vmatprep.mubr.bf16.mxu0 0
    %3154 = vmatmul.mubr.bf16.gmra.mrb[0].mxu0 %v3119
    %v3155 = vpop.f32.mrb[0].mxu0
    %v3156 = vadd.f32 %v2201, %v3155
    %v3157 = vpop.f32.mrb[0].mxu0
    %v3158 = vpop.f32.mrb[0].mxu0
    %v3159 = vpop.f32.mrb[0].mxu0
    %3160 = vdwg.mxu0
    %3161 = vmatprep.subr.bf16.mxu0 0
    %3162 = vmatpush1.bf16.msra.mxu0 %v111
    %3163 = vmatprep.subr.bf16.mxu0 0
    %3164 = vmatpush1.bf16.msra.mxu0 %v112
    %3165 = vmatprep.subr.bf16.mxu0 0
    %3166 = vmatpush1.bf16.msra.mxu0 0
    %3167 = vmatprep.subr.bf16.mxu0 0
    %3168 = vmatpush1.bf16.msra.mxu0 0
    %3169 = vmatprep.subr.bf16.mxu0 0
    %3170 = vmatpush1.bf16.msra.mxu0 0
    %3171 = vmatprep.subr.bf16.mxu0 0
    %3172 = vmatpush1.bf16.msra.mxu0 0
    %3173 = vmatprep.subr.bf16.mxu0 0
    %3174 = vmatpush1.bf16.msra.mxu0 0
    %3175 = vmatprep.subr.bf16.mxu0 0
    %3176 = vmatpush1.bf16.msra.mxu0 0
    %3177 = vmatprep.subr.bf16.mxu0 0
    %3178 = vmatpush1.bf16.msra.mxu0 0
    %3179 = vmatprep.subr.bf16.mxu0 0
    %3180 = vmatpush1.bf16.msra.mxu0 0
    %3181 = vmatprep.subr.bf16.mxu0 0
    %3182 = vmatpush1.bf16.msra.mxu0 0
    %3183 = vmatprep.subr.bf16.mxu0 0
    %3184 = vmatpush1.bf16.msra.mxu0 0
    %3185 = vmatprep.subr.bf16.mxu0 0
    %3186 = vmatpush1.bf16.msra.mxu0 0
    %3187 = vmatprep.subr.bf16.mxu0 0
    %3188 = vmatpush1.bf16.msra.mxu0 0
    %3189 = vmatprep.subr.bf16.mxu0 0
    %3190 = vmatpush1.bf16.msra.mxu0 0
    %3191 = vmatprep.subr.bf16.mxu0 0
    %3192 = vmatpush1.bf16.msra.mxu0 0
    %3193 = vmatprep.mubr.bf16.mxu0 0
    %3194 = vmatmul.mubr.bf16.gmra.mrb[0].mxu0 %v2921
    %v3195 = vpop.f32.mrb[0].mxu0
    %v3196 = vadd.f32 %v2251, %v3195
    %v3197 = vpop.f32.mrb[0].mxu0
    %v3198 = vpop.f32.mrb[0].mxu0
    %v3199 = vpop.f32.mrb[0].mxu0
    %3200 = vdwg.mxu0
    %v3201 = vadd.f32 %v3156, %v3196
    %v3202 = vxor.u32 %v3201, 2147483648
    %v3203 = vmul.f32 %v3202, 1.442695
    %v3204 = vpow.pop %v3203
    %v3205 = vadd.f32 %v3204, 1.0
    %v3206 = vrcp.pop %v3205
    %v3207 = vmul.f32 1.0, %v3206
    %3209 = vrot.lane.b32.xlu0 %v3196, 64
    %v3210 = vpop.permute.xlu0 %3209
    %v3212 = vmul.f32 %v3207, %v3210
    %3214 = vrot.lane.b32.xlu0 %v3212, 64
    %v3215 = vpop.permute.xlu0 %3214
    %v3217 = vadd.f32 %v3156, %v3215
    %v3218 = vtanh.pop %v3217
    %v3219 = vsub.f32 1.0, %v3207
    %3221 = vrot.lane.b32.xlu0 %v3218, 96
    %v3222 = vpop.permute.xlu0 %3221
    %v3224 = vmul.f32 %v3219, %v3222
    %v3225 = vmul.f32 %v3207, %v2779
    %v3226 = vadd.f32 %v3224, %v3225
    %3228 = vrot.lane.b32.xlu0 %v3226, 96
    %v3229 = vpop.permute.xlu0 %3228
    %v3231 = vsel %vm153, %v3101, %v3094
    %v3233 = vrot.slane %v2914, 2
    %v3234 = vrot.slane %v2915, 1
    %v3235 = vsel %vm153, %v3234, %v3233
    %3236 = vrot.lane.b32.xlu0 %v3235, 64
    %v3237 = vpop.permute.xlu0 %3236
    %v3239 = vsel %vm206, %v3229, %v3231
    %v3240 = vsel %vm2328, %v3239, %v3237
    %v3241 = vpack.c.bf16 %v3240, %v3240
    %v3243 = vsel %vm2337, %v3241, 0
    %3245 = vmatprep.subr.bf16.mxu0 0
    %3246 = vmatpush1.bf16.msra.mxu0 %v125
    %3247 = vmatprep.subr.bf16.mxu0 0
    %3248 = vmatpush1.bf16.msra.mxu0 %v126
    %3249 = vmatprep.subr.bf16.mxu0 0
    %3250 = vmatpush1.bf16.msra.mxu0 %v127
    %3251 = vmatprep.subr.bf16.mxu0 0
    %3252 = vmatpush1.bf16.msra.mxu0 %v128
    %3253 = vmatprep.subr.bf16.mxu0 0
    %3254 = vmatpush1.bf16.msra.mxu0 %v129
    %3255 = vmatprep.subr.bf16.mxu0 0
    %3256 = vmatpush1.bf16.msra.mxu0 0
    %3257 = vmatprep.subr.bf16.mxu0 0
    %3258 = vmatpush1.bf16.msra.mxu0 0
    %3259 = vmatprep.subr.bf16.mxu0 0
    %3260 = vmatpush1.bf16.msra.mxu0 0
    %3261 = vmatprep.subr.bf16.mxu0 0
    %3262 = vmatpush1.bf16.msra.mxu0 0
    %3263 = vmatprep.subr.bf16.mxu0 0
    %3264 = vmatpush1.bf16.msra.mxu0 0
    %3265 = vmatprep.subr.bf16.mxu0 0
    %3266 = vmatpush1.bf16.msra.mxu0 0
    %3267 = vmatprep.subr.bf16.mxu0 0
    %3268 = vmatpush1.bf16.msra.mxu0 0
    %3269 = vmatprep.subr.bf16.mxu0 0
    %3270 = vmatpush1.bf16.msra.mxu0 0
    %3271 = vmatprep.subr.bf16.mxu0 0
    %3272 = vmatpush1.bf16.msra.mxu0 0
    %3273 = vmatprep.subr.bf16.mxu0 0
    %3274 = vmatpush1.bf16.msra.mxu0 0
    %3275 = vmatprep.subr.bf16.mxu0 0
    %3276 = vmatpush1.bf16.msra.mxu0 0
    %3277 = vmatprep.mubr.bf16.mxu0 0
    %3278 = vmatmul.mubr.bf16.gmra.mrb[0].mxu0 %v3243
    %v3279 = vpop.f32.mrb[0].mxu0
    %v3280 = vadd.f32 %v2335, %v3279
    %v3281 = vpop.f32.mrb[0].mxu0
    %v3282 = vpop.f32.mrb[0].mxu0
    %v3283 = vpop.f32.mrb[0].mxu0
    %3284 = vdwg.mxu0
    %v3285 = vsel %vm2381, %v3280, -inf
    %3286 = vmax.xlane.f32.xlu0 %v3285
    %v3287 = vpop.xlane.xlu0 %3286
    %vm3288 = vcmp.ge.f32.partialorder %v3280, %v3287
    %v3289 = vsel %vm3288, %v1996, 24
    %v3290 = vsel %vm2381, %v3289, 2147483647
    %v3291 = vand.u32 %v3290, 65535
    %v3292 = vshra.s32 %v3290, 16
    %v3293 = vcvt.s32.f32 %v3291
    %v3294 = vcvt.s32.f32 %v3292
    %3295 = vmin.xlane.f32.xlu0 %v3294
    %v3296 = vpop.xlane.xlu0 %3295
    %vm3297 = vcmp.eq.f32.partialorder %v3294, %v3296
    %v3298 = vsel %vm3297, %v3293, inf
    %3299 = vmin.xlane.f32.xlu0 %v3298
    %v3300 = vpop.xlane.xlu0 %3299
    %v3301 = vcvt.f32.s32 %v3300
    %v3302 = vcvt.f32.s32 %v3296
    %v3303 = vshll.u32 %v3302, 16
    %v3304 = vadd.s32 %v3303, %v3301
    %vm3305 = vcmp.eq.s32.totalorder %v1996, %v3304
    %v3306 = vsel %vm3305, 1, 0
    %v3307 = vcvt.s32.f32 %v3306
    %v3308 = vpack.c.bf16 %v3307, %v3307
    %v3310 = vsel %vm2406, %v3308, 0
    %3312 = vmatprep.subr.bf16.mxu0 0
    %3313 = vmatpush1.bf16.msra.mxu0 %v134
    %3314 = vmatprep.subr.bf16.mxu0 0
    %3315 = vmatpush1.bf16.msra.mxu0 %v2411
    %3316 = vmatprep.subr.bf16.mxu0 0
    %3317 = vmatpush1.bf16.msra.mxu0 0
    %3318 = vmatprep.subr.bf16.mxu0 0
    %3319 = vmatpush1.bf16.msra.mxu0 0
    %3320 = vmatprep.subr.bf16.mxu0 0
    %3321 = vmatpush1.bf16.msra.mxu0 0
    %3322 = vmatprep.subr.bf16.mxu0 0
    %3323 = vmatpush1.bf16.msra.mxu0 0
    %3324 = vmatprep.subr.bf16.mxu0 0
    %3325 = vmatpush1.bf16.msra.mxu0 0
    %3326 = vmatprep.subr.bf16.mxu0 0
    %3327 = vmatpush1.bf16.msra.mxu0 0
    %3328 = vmatprep.subr.bf16.mxu0 0
    %3329 = vmatpush1.bf16.msra.mxu0 0
    %3330 = vmatprep.subr.bf16.mxu0 0
    %3331 = vmatpush1.bf16.msra.mxu0 0
    %3332 = vmatprep.subr.bf16.mxu0 0
    %3333 = vmatpush1.bf16.msra.mxu0 0
    %3334 = vmatprep.subr.bf16.mxu0 0
    %3335 = vmatpush1.bf16.msra.mxu0 0
    %3336 = vmatprep.subr.bf16.mxu0 0
    %3337 = vmatpush1.bf16.msra.mxu0 0
    %3338 = vmatprep.subr.bf16.mxu0 0
    %3339 = vmatpush1.bf16.msra.mxu0 0
    %3340 = vmatprep.subr.bf16.mxu0 0
    %3341 = vmatpush1.bf16.msra.mxu0 0
    %3342 = vmatprep.subr.bf16.mxu0 0
    %3343 = vmatpush1.bf16.msra.mxu0 0
    %3344 = vmatprep.mubr.bf16.mxu0 0
    %3345 = vmatmul.mubr.bf16.gmra.mrb[0].mxu0 %v3310
    %v3346 = vpop.f32.mrb[0].mxu0
    %v3347 = vadd.f32 0.0, %v3346
    %v3348 = vpop.f32.mrb[0].mxu0
    %v3349 = vpop.f32.mrb[0].mxu0
    %v3350 = vpop.f32.mrb[0].mxu0
    %3351 = vdwg.mxu0
    %s3352 = sld [smem:[#allocation2 + $0x3]]
    %p3353 = scmp.gt.s32.totalorder %s3352, 0
    %s3354 = scalar_select %p3353, 1, 0
    %v3355 = vstv %s3354
    %vm3356 = vcmp.eq.s32.totalorder %v3355, 1
    %v3358 = vrot.slane %v3347, 5
    %v3359 = vrot.slane %v3347, 6
    %v3362 = vsel %vm3356, %v138, %v3358
    %v3363 = vsel %vm3356, %v139, %v3359
    %v3364 = vpack.c.bf16 %v3226, %v3226
    %3366 = vrot.lane.b32.xlu0 %v3364, 96
    %v3367 = vpop.permute.xlu0 %3366
    %v3369 = vsel %vm206, %v3367, 0
    %3371 = vmatprep.subr.bf16.mxu0 0
    %3372 = vmatpush1.bf16.msra.mxu0 %v88
    %3373 = vmatprep.subr.bf16.mxu0 0
    %3374 = vmatpush1.bf16.msra.mxu0 %v89
    %3375 = vmatprep.subr.bf16.mxu0 0
    %3376 = vmatpush1.bf16.msra.mxu0 0
    %3377 = vmatprep.subr.bf16.mxu0 0
    %3378 = vmatpush1.bf16.msra.mxu0 0
    %3379 = vmatprep.subr.bf16.mxu0 0
    %3380 = vmatpush1.bf16.msra.mxu0 0
    %3381 = vmatprep.subr.bf16.mxu0 0
    %3382 = vmatpush1.bf16.msra.mxu0 0
    %3383 = vmatprep.subr.bf16.mxu0 0
    %3384 = vmatpush1.bf16.msra.mxu0 0
    %3385 = vmatprep.subr.bf16.mxu0 0
    %3386 = vmatpush1.bf16.msra.mxu0 0
    %3387 = vmatprep.subr.bf16.mxu0 0
    %3388 = vmatpush1.bf16.msra.mxu0 0
    %3389 = vmatprep.subr.bf16.mxu0 0
    %3390 = vmatpush1.bf16.msra.mxu0 0
    %3391 = vmatprep.subr.bf16.mxu0 0
    %3392 = vmatpush1.bf16.msra.mxu0 0
    %3393 = vmatprep.subr.bf16.mxu0 0
    %3394 = vmatpush1.bf16.msra.mxu0 0
    %3395 = vmatprep.subr.bf16.mxu0 0
    %3396 = vmatpush1.bf16.msra.mxu0 0
    %3397 = vmatprep.subr.bf16.mxu0 0
    %3398 = vmatpush1.bf16.msra.mxu0 0
    %3399 = vmatprep.subr.bf16.mxu0 0
    %3400 = vmatpush1.bf16.msra.mxu0 0
    %3401 = vmatprep.subr.bf16.mxu0 0
    %3402 = vmatpush1.bf16.msra.mxu0 0
    %3403 = vmatprep.mubr.bf16.mxu0 0
    %3404 = vmatmul.mubr.bf16.gmra.mrb[0].mxu0 %v3369
    %v3405 = vpop.f32.mrb[0].mxu0
    %v3406 = vadd.f32 0.0, %v3405
    %v3407 = vpop.f32.mrb[0].mxu0
    %v3408 = vpop.f32.mrb[0].mxu0
    %v3409 = vpop.f32.mrb[0].mxu0
    %3410 = vdwg.mxu0
    %v3413 = vunpack.c.l.s4 1966171168
    %v3414 = vunpack.c.0.s8 %v3413
    %v3415 = vlaneseq
    %v3416 = vshrl.u32 %v3415, 7
    %v3417 = vsub.s32 %v3414, %v3416
    %v3418 = vrot.slane %v3406, %v3417
    %v3419 = vcombine.high %v3418, %v3418
    %v3421 = vunpack.c.l.s4 1966171168
    %v3422 = vunpack.c.0.s8 %v3421
    %v3423 = vlaneseq
    %v3424 = vshrl.u32 %v3423, 7
    %v3425 = vsub.s32 %v3422, %v3424
    %v3426 = vrot.slane %v3418, %v3425
    %v3428 = vunpack.c.l.s4 1966171168
    %v3429 = vunpack.c.0.s8 %v3428
    %v3430 = vlaneseq
    %v3431 = vshrl.u32 %v3430, 7
    %v3432 = vsub.s32 %v3429, %v3431
    %v3433 = vrot.slane %v3419, %v3432
    %v3434 = vlaneseq
    %v3435 = vshrl.u32 %v3434, 7
    %v3436 = vsub.s32 0, %v3435
    %v3437 = vrot.slane %v3426, %v3436
    %v3438 = vlaneseq
    %v3439 = vshrl.u32 %v3438, 7
    %v3440 = vsub.s32 0, %v3439
    %v3441 = vrot.slane %v3433, %v3440
    %v3444 = vadd.f32 %v1993, %v3437
    %v3445 = vadd.f32 %v1994, %v3441
    %v3446 = vtanh.pop %v3444
    %v3447 = vtanh.pop %v3445
    %v3448 = vmul.f32 %v3446, %v2078
    %v3449 = vmul.f32 %v3447, %v2078
    %v3450 = vsel %vm206, %v3448, 0.0
    %3451 = vadd.xlane.f32.xlu0 %v3450
    %v3452 = vpop.xlane.xlu0 %3451
    %v3453 = vsel %vm206, %v3449, 0.0
    %3454 = vadd.xlane.f32.xlu0 %v3453
    %v3455 = vpop.xlane.xlu0 %3454
    %v3458 = vlaneseq
    %v3459 = vshrl.u32 %v3458, 7
    %v3460 = vsub.s32 %v1996, %v3459
    %v3461 = vrot.slane %v3452, %v3460
    %v3462 = vlaneseq
    %v3463 = vshrl.u32 %v3462, 7
    %v3464 = vsub.s32 %v1996, %v3463
    %v3465 = vrot.slane %v3455, %v3464
    %v3466 = vsel %vm153, %v3465, %v3461
    %v3468 = vsel %vm2100, %v3466, -inf
    %3469 = vmax.xlane.f32.xlu0 %v3468
    %v3470 = vpop.xlane.xlu0 %3469
    %v3472 = vlaneseq
    %v3473 = vshrl.u32 %v3472, 7
    %v3474 = vsub.s32 0, %v3473
    %v3475 = vrot.slane %v3470, %v3474
    %v3476 = vlaneseq
    %v3477 = vshrl.u32 %v3476, 7
    %v3478 = vsub.s32 1, %v3477
    %v3479 = vrot.slane %v3470, %v3478
    %v3482 = vsub.f32 %v3452, %v3475
    %v3483 = vsub.f32 %v3455, %v3479
    %v3484 = vmul.f32 %v3482, 1.442695
    %v3485 = vpow.pop %v3484
    %v3486 = vmul.f32 %v3483, 1.442695
    %v3487 = vpow.pop %v3486
    %3490 = vset.pattern.permute.xlu0 0
    %3491 = vperm.xlu0 %3490, %v3485
    %v3492 = vpop.permute.xlu0 %3491
    %3493 = vset.pattern.permute.xlu0 0
    %3494 = vperm.xlu0 %3493, %v3487
    %v3495 = vpop.permute.xlu0 %3494
    %v3496 = vlaneseq
    %v3497 = vshrl.u32 %v3496, 7
    %v3498 = vsub.s32 %v1996, %v3497
    %v3499 = vrot.slane %v3492, %v3498
    %v3500 = vlaneseq
    %v3501 = vshrl.u32 %v3500, 7
    %v3502 = vsub.s32 %v1996, %v3501
    %v3503 = vrot.slane %v3495, %v3502
    %v3504 = vsel %vm153, %v3503, %v3499
    %v3506 = vsel %vm2100, %v3504, 0.0
    %3507 = vadd.xlane.f32.xlu0 %v3506
    %v3508 = vpop.xlane.xlu0 %3507
    %v3510 = vlaneseq
    %v3511 = vshrl.u32 %v3510, 7
    %v3512 = vsub.s32 0, %v3511
    %v3513 = vrot.slane %v3508, %v3512
    %v3514 = vlaneseq
    %v3515 = vshrl.u32 %v3514, 7
    %v3516 = vsub.s32 1, %v3515
    %v3517 = vrot.slane %v3508, %v3516
    %v3520 = vrcp.pop %v3513
    %v3521 = vmul.f32 %v3485, %v3520
    %v3522 = vrcp.pop %v3517
    %v3523 = vmul.f32 %v3487, %v3522
    %3525 = vset.pattern.permute.xlu0 0
    %3526 = vperm.xlu0 %3525, %v3521
    %v3527 = vpop.permute.xlu0 %3526
    %3530 = vset.pattern.permute.xlu0 0
    %3531 = vperm.xlu0 %3530, %v3523
    %v3532 = vpop.permute.xlu0 %3531
    %v3534 = vmul.f32 %v3527, %v1723
    %v3535 = vmul.f32 %v3532, %v1724
    %v3536 = vsel %vm2169, %v3534, 0.0
    %v3537 = vrot.slane %v3536, 4
    %v3538 = vadd.f32 %v3536, %v3537
    %v3539 = vrot.slane %v3538, 2
    %v3540 = vadd.f32 %v3538, %v3539
    %v3541 = vrot.slane %v3540, 1
    %v3542 = vadd.f32 %v3540, %v3541
    %v3543 = vsel %vm2169, %v3535, 0.0
    %v3544 = vrot.slane %v3543, 4
    %v3545 = vadd.f32 %v3543, %v3544
    %v3546 = vrot.slane %v3545, 2
    %v3547 = vadd.f32 %v3545, %v3546
    %v3548 = vrot.slane %v3547, 1
    %v3549 = vadd.f32 %v3547, %v3548
    %v3552 = vrot.slane %v3363, 7
    %vm3553 = vcmask 1044484
    %v3554 = vsel %vm3553, %v3552, %v3362
    %v3558 = vsel %vm3553, %v3549, %v3542
    %3559 = vrot.lane.b32.xlu0 %v3558, 112
    %v3560 = vpop.permute.xlu0 %3559
    %v3562 = vsel %vm156, %v3554, %v3560
    %v3563 = vpack.c.bf16 %v3562, %v3562
    %v3565 = vshrl.u32 %v3563, 16
    %v3567 = vrot.slane %v3565, 1
    %v3568 = vshll.u32 %v3563, 16
    %v3570 = vrot.slane %v3568, 2
    %v3571 = vor.u32 %v3567, %v3570
    %v3573 = vsel %vm2203, %v3571, 0
    %3575 = vmatprep.subr.bf16.mxu0 0
    %3576 = vmatpush1.bf16.msra.mxu0 %v104
    %3577 = vmatprep.subr.bf16.mxu0 0
    %3578 = vmatpush1.bf16.msra.mxu0 %v105
    %3579 = vmatprep.subr.bf16.mxu0 0
    %3580 = vmatpush1.bf16.msra.mxu0 %v106
    %3581 = vmatprep.subr.bf16.mxu0 0
    %3582 = vmatpush1.bf16.msra.mxu0 0
    %3583 = vmatprep.subr.bf16.mxu0 0
    %3584 = vmatpush1.bf16.msra.mxu0 0
    %3585 = vmatprep.subr.bf16.mxu0 0
    %3586 = vmatpush1.bf16.msra.mxu0 0
    %3587 = vmatprep.subr.bf16.mxu0 0
    %3588 = vmatpush1.bf16.msra.mxu0 0
    %3589 = vmatprep.subr.bf16.mxu0 0
    %3590 = vmatpush1.bf16.msra.mxu0 0
    %3591 = vmatprep.subr.bf16.mxu0 0
    %3592 = vmatpush1.bf16.msra.mxu0 0
    %3593 = vmatprep.subr.bf16.mxu0 0
    %3594 = vmatpush1.bf16.msra.mxu0 0
    %3595 = vmatprep.subr.bf16.mxu0 0
    %3596 = vmatpush1.bf16.msra.mxu0 0
    %3597 = vmatprep.subr.bf16.mxu0 0
    %3598 = vmatpush1.bf16.msra.mxu0 0
    %3599 = vmatprep.subr.bf16.mxu0 0
    %3600 = vmatpush1.bf16.msra.mxu0 0
    %3601 = vmatprep.subr.bf16.mxu0 0
    %3602 = vmatpush1.bf16.msra.mxu0 0
    %3603 = vmatprep.subr.bf16.mxu0 0
    %3604 = vmatpush1.bf16.msra.mxu0 0
    %3605 = vmatprep.subr.bf16.mxu0 0
    %3606 = vmatpush1.bf16.msra.mxu0 0
    %3607 = vmatprep.mubr.bf16.mxu0 0
    %3608 = vmatmul.mubr.bf16.gmra.mrb[0].mxu0 %v3573
    %v3609 = vpop.f32.mrb[0].mxu0
    %v3610 = vadd.f32 %v2201, %v3609
    %v3611 = vpop.f32.mrb[0].mxu0
    %v3612 = vpop.f32.mrb[0].mxu0
    %v3613 = vpop.f32.mrb[0].mxu0
    %3614 = vdwg.mxu0
    %3615 = vmatprep.subr.bf16.mxu0 0
    %3616 = vmatpush1.bf16.msra.mxu0 %v111
    %3617 = vmatprep.subr.bf16.mxu0 0
    %3618 = vmatpush1.bf16.msra.mxu0 %v112
    %3619 = vmatprep.subr.bf16.mxu0 0
    %3620 = vmatpush1.bf16.msra.mxu0 0
    %3621 = vmatprep.subr.bf16.mxu0 0
    %3622 = vmatpush1.bf16.msra.mxu0 0
    %3623 = vmatprep.subr.bf16.mxu0 0
    %3624 = vmatpush1.bf16.msra.mxu0 0
    %3625 = vmatprep.subr.bf16.mxu0 0
    %3626 = vmatpush1.bf16.msra.mxu0 0
    %3627 = vmatprep.subr.bf16.mxu0 0
    %3628 = vmatpush1.bf16.msra.mxu0 0
    %3629 = vmatprep.subr.bf16.mxu0 0
    %3630 = vmatpush1.bf16.msra.mxu0 0
    %3631 = vmatprep.subr.bf16.mxu0 0
    %3632 = vmatpush1.bf16.msra.mxu0 0
    %3633 = vmatprep.subr.bf16.mxu0 0
    %3634 = vmatpush1.bf16.msra.mxu0 0
    %3635 = vmatprep.subr.bf16.mxu0 0
    %3636 = vmatpush1.bf16.msra.mxu0 0
    %3637 = vmatprep.subr.bf16.mxu0 0
    %3638 = vmatpush1.bf16.msra.mxu0 0
    %3639 = vmatprep.subr.bf16.mxu0 0
    %3640 = vmatpush1.bf16.msra.mxu0 0
    %3641 = vmatprep.subr.bf16.mxu0 0
    %3642 = vmatpush1.bf16.msra.mxu0 0
    %3643 = vmatprep.subr.bf16.mxu0 0
    %3644 = vmatpush1.bf16.msra.mxu0 0
    %3645 = vmatprep.subr.bf16.mxu0 0
    %3646 = vmatpush1.bf16.msra.mxu0 0
    %3647 = vmatprep.mubr.bf16.mxu0 0
    %3648 = vmatmul.mubr.bf16.gmra.mrb[0].mxu0 %v3369
    %v3649 = vpop.f32.mrb[0].mxu0
    %v3650 = vadd.f32 %v2251, %v3649
    %v3651 = vpop.f32.mrb[0].mxu0
    %v3652 = vpop.f32.mrb[0].mxu0
    %v3653 = vpop.f32.mrb[0].mxu0
    %3654 = vdwg.mxu0
    %v3655 = vadd.f32 %v3610, %v3650
    %v3656 = vxor.u32 %v3655, 2147483648
    %v3657 = vmul.f32 %v3656, 1.442695
    %v3658 = vpow.pop %v3657
    %v3659 = vadd.f32 %v3658, 1.0
    %v3660 = vrcp.pop %v3659
    %v3661 = vmul.f32 1.0, %v3660
    %3663 = vrot.lane.b32.xlu0 %v3650, 64
    %v3664 = vpop.permute.xlu0 %3663
    %v3666 = vmul.f32 %v3661, %v3664
    %3668 = vrot.lane.b32.xlu0 %v3666, 64
    %v3669 = vpop.permute.xlu0 %3668
    %v3671 = vadd.f32 %v3610, %v3669
    %v3672 = vtanh.pop %v3671
    %v3673 = vsub.f32 1.0, %v3661
    %3675 = vrot.lane.b32.xlu0 %v3672, 96
    %v3676 = vpop.permute.xlu0 %3675
    %v3678 = vmul.f32 %v3673, %v3676
    %v3679 = vmul.f32 %v3661, %v3226
    %v3680 = vadd.f32 %v3678, %v3679
    %3682 = vrot.lane.b32.xlu0 %v3680, 96
    %v3683 = vpop.permute.xlu0 %3682
    %v3685 = vsel %vm153, %v3549, %v3542
    %v3687 = vrot.slane %v3362, 3
    %v3688 = vrot.slane %v3363, 2
    %v3689 = vsel %vm153, %v3688, %v3687
    %3690 = vrot.lane.b32.xlu0 %v3689, 64
    %v3691 = vpop.permute.xlu0 %3690
    %v3693 = vsel %vm206, %v3683, %v3685
    %v3694 = vsel %vm2328, %v3693, %v3691
    %v3695 = vpack.c.bf16 %v3694, %v3694
    %v3697 = vsel %vm2337, %v3695, 0
    %3699 = vmatprep.subr.bf16.mxu0 0
    %3700 = vmatpush1.bf16.msra.mxu0 %v125
    %3701 = vmatprep.subr.bf16.mxu0 0
    %3702 = vmatpush1.bf16.msra.mxu0 %v126
    %3703 = vmatprep.subr.bf16.mxu0 0
    %3704 = vmatpush1.bf16.msra.mxu0 %v127
    %3705 = vmatprep.subr.bf16.mxu0 0
    %3706 = vmatpush1.bf16.msra.mxu0 %v128
    %3707 = vmatprep.subr.bf16.mxu0 0
    %3708 = vmatpush1.bf16.msra.mxu0 %v129
    %3709 = vmatprep.subr.bf16.mxu0 0
    %3710 = vmatpush1.bf16.msra.mxu0 0
    %3711 = vmatprep.subr.bf16.mxu0 0
    %3712 = vmatpush1.bf16.msra.mxu0 0
    %3713 = vmatprep.subr.bf16.mxu0 0
    %3714 = vmatpush1.bf16.msra.mxu0 0
    %3715 = vmatprep.subr.bf16.mxu0 0
    %3716 = vmatpush1.bf16.msra.mxu0 0
    %3717 = vmatprep.subr.bf16.mxu0 0
    %3718 = vmatpush1.bf16.msra.mxu0 0
    %3719 = vmatprep.subr.bf16.mxu0 0
    %3720 = vmatpush1.bf16.msra.mxu0 0
    %3721 = vmatprep.subr.bf16.mxu0 0
    %3722 = vmatpush1.bf16.msra.mxu0 0
    %3723 = vmatprep.subr.bf16.mxu0 0
    %3724 = vmatpush1.bf16.msra.mxu0 0
    %3725 = vmatprep.subr.bf16.mxu0 0
    %3726 = vmatpush1.bf16.msra.mxu0 0
    %3727 = vmatprep.subr.bf16.mxu0 0
    %3728 = vmatpush1.bf16.msra.mxu0 0
    %3729 = vmatprep.subr.bf16.mxu0 0
    %3730 = vmatpush1.bf16.msra.mxu0 0
    %3731 = vmatprep.mubr.bf16.mxu0 0
    %3732 = vmatmul.mubr.bf16.gmra.mrb[0].mxu0 %v3697
    %v3733 = vpop.f32.mrb[0].mxu0
    %v3734 = vadd.f32 %v2335, %v3733
    %v3735 = vpop.f32.mrb[0].mxu0
    %v3736 = vpop.f32.mrb[0].mxu0
    %v3737 = vpop.f32.mrb[0].mxu0
    %3738 = vdwg.mxu0
    %v3739 = vsel %vm2381, %v3734, -inf
    %3740 = vmax.xlane.f32.xlu0 %v3739
    %v3741 = vpop.xlane.xlu0 %3740
    %vm3742 = vcmp.ge.f32.partialorder %v3734, %v3741
    %v3743 = vsel %vm3742, %v1996, 24
    %v3744 = vsel %vm2381, %v3743, 2147483647
    %v3745 = vand.u32 %v3744, 65535
    %v3746 = vshra.s32 %v3744, 16
    %v3747 = vcvt.s32.f32 %v3745
    %v3748 = vcvt.s32.f32 %v3746
    %3749 = vmin.xlane.f32.xlu0 %v3748
    %v3750 = vpop.xlane.xlu0 %3749
    %vm3751 = vcmp.eq.f32.partialorder %v3748, %v3750
    %v3752 = vsel %vm3751, %v3747, inf
    %3753 = vmin.xlane.f32.xlu0 %v3752
    %v3754 = vpop.xlane.xlu0 %3753
    %v3755 = vcvt.f32.s32 %v3754
    %v3756 = vcvt.f32.s32 %v3750
    %v3757 = vshll.u32 %v3756, 16
    %v3758 = vadd.s32 %v3757, %v3755
    %vm3759 = vcmp.eq.s32.totalorder %v1996, %v3758
    %v3760 = vsel %vm3759, 1, 0
    %v3761 = vcvt.s32.f32 %v3760
    %v3762 = vpack.c.bf16 %v3761, %v3761
    %v3764 = vsel %vm2406, %v3762, 0
    %3766 = vmatprep.subr.bf16.mxu0 0
    %3767 = vmatpush1.bf16.msra.mxu0 %v134
    %3768 = vmatprep.subr.bf16.mxu0 0
    %3769 = vmatpush1.bf16.msra.mxu0 %v2411
    %3770 = vmatprep.subr.bf16.mxu0 0
    %3771 = vmatpush1.bf16.msra.mxu0 0
    %3772 = vmatprep.subr.bf16.mxu0 0
    %3773 = vmatpush1.bf16.msra.mxu0 0
    %3774 = vmatprep.subr.bf16.mxu0 0
    %3775 = vmatpush1.bf16.msra.mxu0 0
    %3776 = vmatprep.subr.bf16.mxu0 0
    %3777 = vmatpush1.bf16.msra.mxu0 0
    %3778 = vmatprep.subr.bf16.mxu0 0
    %3779 = vmatpush1.bf16.msra.mxu0 0
    %3780 = vmatprep.subr.bf16.mxu0 0
    %3781 = vmatpush1.bf16.msra.mxu0 0
    %3782 = vmatprep.subr.bf16.mxu0 0
    %3783 = vmatpush1.bf16.msra.mxu0 0
    %3784 = vmatprep.subr.bf16.mxu0 0
    %3785 = vmatpush1.bf16.msra.mxu0 0
    %3786 = vmatprep.subr.bf16.mxu0 0
    %3787 = vmatpush1.bf16.msra.mxu0 0
    %3788 = vmatprep.subr.bf16.mxu0 0
    %3789 = vmatpush1.bf16.msra.mxu0 0
    %3790 = vmatprep.subr.bf16.mxu0 0
    %3791 = vmatpush1.bf16.msra.mxu0 0
    %3792 = vmatprep.subr.bf16.mxu0 0
    %3793 = vmatpush1.bf16.msra.mxu0 0
    %3794 = vmatprep.subr.bf16.mxu0 0
    %3795 = vmatpush1.bf16.msra.mxu0 0
    %3796 = vmatprep.subr.bf16.mxu0 0
    %3797 = vmatpush1.bf16.msra.mxu0 0
    %3798 = vmatprep.mubr.bf16.mxu0 0
    %3799 = vmatmul.mubr.bf16.gmra.mrb[0].mxu0 %v3764
    %v3800 = vpop.f32.mrb[0].mxu0
    %v3801 = vadd.f32 0.0, %v3800
    %v3802 = vpop.f32.mrb[0].mxu0
    %v3803 = vpop.f32.mrb[0].mxu0
    %v3804 = vpop.f32.mrb[0].mxu0
    %3805 = vdwg.mxu0
    %s3806 = sld [smem:[#allocation2 + $0x4]]
    %p3807 = scmp.gt.s32.totalorder %s3806, 0
    %s3808 = scalar_select %p3807, 1, 0
    %v3809 = vstv %s3808
    %vm3810 = vcmp.eq.s32.totalorder %v3809, 1
    %v3812 = vrot.slane %v3801, 4
    %v3813 = vrot.slane %v3801, 5
    %v3816 = vsel %vm3810, %v138, %v3812
    %v3817 = vsel %vm3810, %v139, %v3813
    %v3818 = vpack.c.bf16 %v3680, %v3680
    %3820 = vrot.lane.b32.xlu0 %v3818, 96
    %v3821 = vpop.permute.xlu0 %3820
    %v3823 = vsel %vm206, %v3821, 0
    %3825 = vmatprep.subr.bf16.mxu0 0
    %3826 = vmatpush1.bf16.msra.mxu0 %v88
    %3827 = vmatprep.subr.bf16.mxu0 0
    %3828 = vmatpush1.bf16.msra.mxu0 %v89
    %3829 = vmatprep.subr.bf16.mxu0 0
    %3830 = vmatpush1.bf16.msra.mxu0 0
    %3831 = vmatprep.subr.bf16.mxu0 0
    %3832 = vmatpush1.bf16.msra.mxu0 0
    %3833 = vmatprep.subr.bf16.mxu0 0
    %3834 = vmatpush1.bf16.msra.mxu0 0
    %3835 = vmatprep.subr.bf16.mxu0 0
    %3836 = vmatpush1.bf16.msra.mxu0 0
    %3837 = vmatprep.subr.bf16.mxu0 0
    %3838 = vmatpush1.bf16.msra.mxu0 0
    %3839 = vmatprep.subr.bf16.mxu0 0
    %3840 = vmatpush1.bf16.msra.mxu0 0
    %3841 = vmatprep.subr.bf16.mxu0 0
    %3842 = vmatpush1.bf16.msra.mxu0 0
    %3843 = vmatprep.subr.bf16.mxu0 0
    %3844 = vmatpush1.bf16.msra.mxu0 0
    %3845 = vmatprep.subr.bf16.mxu0 0
    %3846 = vmatpush1.bf16.msra.mxu0 0
    %3847 = vmatprep.subr.bf16.mxu0 0
    %3848 = vmatpush1.bf16.msra.mxu0 0
    %3849 = vmatprep.subr.bf16.mxu0 0
    %3850 = vmatpush1.bf16.msra.mxu0 0
    %3851 = vmatprep.subr.bf16.mxu0 0
    %3852 = vmatpush1.bf16.msra.mxu0 0
    %3853 = vmatprep.subr.bf16.mxu0 0
    %3854 = vmatpush1.bf16.msra.mxu0 0
    %3855 = vmatprep.subr.bf16.mxu0 0
    %3856 = vmatpush1.bf16.msra.mxu0 0
    %3857 = vmatprep.mubr.bf16.mxu0 0
    %3858 = vmatmul.mubr.bf16.gmra.mrb[0].mxu0 %v3823
    %v3859 = vpop.f32.mrb[0].mxu0
    %v3860 = vadd.f32 0.0, %v3859
    %v3861 = vpop.f32.mrb[0].mxu0
    %v3862 = vpop.f32.mrb[0].mxu0
    %v3863 = vpop.f32.mrb[0].mxu0
    %3864 = vdwg.mxu0
    %v3867 = vunpack.c.l.s4 1966171168
    %v3868 = vunpack.c.0.s8 %v3867
    %v3869 = vlaneseq
    %v3870 = vshrl.u32 %v3869, 7
    %v3871 = vsub.s32 %v3868, %v3870
    %v3872 = vrot.slane %v3860, %v3871
    %v3873 = vcombine.high %v3872, %v3872
    %v3875 = vunpack.c.l.s4 1966171168
    %v3876 = vunpack.c.0.s8 %v3875
    %v3877 = vlaneseq
    %v3878 = vshrl.u32 %v3877, 7
    %v3879 = vsub.s32 %v3876, %v3878
    %v3880 = vrot.slane %v3872, %v3879
    %v3882 = vunpack.c.l.s4 1966171168
    %v3883 = vunpack.c.0.s8 %v3882
    %v3884 = vlaneseq
    %v3885 = vshrl.u32 %v3884, 7
    %v3886 = vsub.s32 %v3883, %v3885
    %v3887 = vrot.slane %v3873, %v3886
    %v3888 = vlaneseq
    %v3889 = vshrl.u32 %v3888, 7
    %v3890 = vsub.s32 0, %v3889
    %v3891 = vrot.slane %v3880, %v3890
    %v3892 = vlaneseq
    %v3893 = vshrl.u32 %v3892, 7
    %v3894 = vsub.s32 0, %v3893
    %v3895 = vrot.slane %v3887, %v3894
    %v3898 = vadd.f32 %v1993, %v3891
    %v3899 = vadd.f32 %v1994, %v3895
    %v3900 = vtanh.pop %v3898
    %v3901 = vtanh.pop %v3899
    %v3902 = vmul.f32 %v3900, %v2078
    %v3903 = vmul.f32 %v3901, %v2078
    %v3904 = vsel %vm206, %v3902, 0.0
    %3905 = vadd.xlane.f32.xlu0 %v3904
    %v3906 = vpop.xlane.xlu0 %3905
    %v3907 = vsel %vm206, %v3903, 0.0
    %3908 = vadd.xlane.f32.xlu0 %v3907
    %v3909 = vpop.xlane.xlu0 %3908
    %v3912 = vlaneseq
    %v3913 = vshrl.u32 %v3912, 7
    %v3914 = vsub.s32 %v1996, %v3913
    %v3915 = vrot.slane %v3906, %v3914
    %v3916 = vlaneseq
    %v3917 = vshrl.u32 %v3916, 7
    %v3918 = vsub.s32 %v1996, %v3917
    %v3919 = vrot.slane %v3909, %v3918
    %v3920 = vsel %vm153, %v3919, %v3915
    %v3922 = vsel %vm2100, %v3920, -inf
    %3923 = vmax.xlane.f32.xlu0 %v3922
    %v3924 = vpop.xlane.xlu0 %3923
    %v3926 = vlaneseq
    %v3927 = vshrl.u32 %v3926, 7
    %v3928 = vsub.s32 0, %v3927
    %v3929 = vrot.slane %v3924, %v3928
    %v3930 = vlaneseq
    %v3931 = vshrl.u32 %v3930, 7
    %v3932 = vsub.s32 1, %v3931
    %v3933 = vrot.slane %v3924, %v3932
    %v3936 = vsub.f32 %v3906, %v3929
    %v3937 = vsub.f32 %v3909, %v3933
    %v3938 = vmul.f32 %v3936, 1.442695
    %v3939 = vpow.pop %v3938
    %v3940 = vmul.f32 %v3937, 1.442695
    %v3941 = vpow.pop %v3940
    %3944 = vset.pattern.permute.xlu0 0
    %3945 = vperm.xlu0 %3944, %v3939
    %v3946 = vpop.permute.xlu0 %3945
    %3947 = vset.pattern.permute.xlu0 0
    %3948 = vperm.xlu0 %3947, %v3941
    %v3949 = vpop.permute.xlu0 %3948
    %v3950 = vlaneseq
    %v3951 = vshrl.u32 %v3950, 7
    %v3952 = vsub.s32 %v1996, %v3951
    %v3953 = vrot.slane %v3946, %v3952
    %v3954 = vlaneseq
    %v3955 = vshrl.u32 %v3954, 7
    %v3956 = vsub.s32 %v1996, %v3955
    %v3957 = vrot.slane %v3949, %v3956
    %v3958 = vsel %vm153, %v3957, %v3953
    %v3960 = vsel %vm2100, %v3958, 0.0
    %3961 = vadd.xlane.f32.xlu0 %v3960
    %v3962 = vpop.xlane.xlu0 %3961
    %v3964 = vlaneseq
    %v3965 = vshrl.u32 %v3964, 7
    %v3966 = vsub.s32 0, %v3965
    %v3967 = vrot.slane %v3962, %v3966
    %v3968 = vlaneseq
    %v3969 = vshrl.u32 %v3968, 7
    %v3970 = vsub.s32 1, %v3969
    %v3971 = vrot.slane %v3962, %v3970
    %v3974 = vrcp.pop %v3967
    %v3975 = vmul.f32 %v3939, %v3974
    %v3976 = vrcp.pop %v3971
    %v3977 = vmul.f32 %v3941, %v3976
    %3979 = vset.pattern.permute.xlu0 0
    %3980 = vperm.xlu0 %3979, %v3975
    %v3981 = vpop.permute.xlu0 %3980
    %3984 = vset.pattern.permute.xlu0 0
    %3985 = vperm.xlu0 %3984, %v3977
    %v3986 = vpop.permute.xlu0 %3985
    %v3988 = vmul.f32 %v3981, %v1723
    %v3989 = vmul.f32 %v3986, %v1724
    %v3990 = vsel %vm2169, %v3988, 0.0
    %v3991 = vrot.slane %v3990, 4
    %v3992 = vadd.f32 %v3990, %v3991
    %v3993 = vrot.slane %v3992, 2
    %v3994 = vadd.f32 %v3992, %v3993
    %v3995 = vrot.slane %v3994, 1
    %v3996 = vadd.f32 %v3994, %v3995
    %v3997 = vsel %vm2169, %v3989, 0.0
    %v3998 = vrot.slane %v3997, 4
    %v3999 = vadd.f32 %v3997, %v3998
    %v4000 = vrot.slane %v3999, 2
    %v4001 = vadd.f32 %v3999, %v4000
    %v4002 = vrot.slane %v4001, 1
    %v4003 = vadd.f32 %v4001, %v4002
    %v4006 = vrot.slane %v3817, 7
    %vm4007 = vcmask 1045509
    %v4008 = vsel %vm4007, %v4006, %v3816
    %v4012 = vsel %vm4007, %v4003, %v3996
    %4013 = vrot.lane.b32.xlu0 %v4012, 112
    %v4014 = vpop.permute.xlu0 %4013
    %v4016 = vsel %vm156, %v4008, %v4014
    %v4017 = vpack.c.bf16 %v4016, %v4016
    %v4019 = vrot.slane %v4017, 2
    %v4021 = vsel %vm2203, %v4019, 0
    %4023 = vmatprep.subr.bf16.mxu0 0
    %4024 = vmatpush1.bf16.msra.mxu0 %v104
    %4025 = vmatprep.subr.bf16.mxu0 0
    %4026 = vmatpush1.bf16.msra.mxu0 %v105
    %4027 = vmatprep.subr.bf16.mxu0 0
    %4028 = vmatpush1.bf16.msra.mxu0 %v106
    %4029 = vmatprep.subr.bf16.mxu0 0
    %4030 = vmatpush1.bf16.msra.mxu0 0
    %4031 = vmatprep.subr.bf16.mxu0 0
    %4032 = vmatpush1.bf16.msra.mxu0 0
    %4033 = vmatprep.subr.bf16.mxu0 0
    %4034 = vmatpush1.bf16.msra.mxu0 0
    %4035 = vmatprep.subr.bf16.mxu0 0
    %4036 = vmatpush1.bf16.msra.mxu0 0
    %4037 = vmatprep.subr.bf16.mxu0 0
    %4038 = vmatpush1.bf16.msra.mxu0 0
    %4039 = vmatprep.subr.bf16.mxu0 0
    %4040 = vmatpush1.bf16.msra.mxu0 0
    %4041 = vmatprep.subr.bf16.mxu0 0
    %4042 = vmatpush1.bf16.msra.mxu0 0
    %4043 = vmatprep.subr.bf16.mxu0 0
    %4044 = vmatpush1.bf16.msra.mxu0 0
    %4045 = vmatprep.subr.bf16.mxu0 0
    %4046 = vmatpush1.bf16.msra.mxu0 0
    %4047 = vmatprep.subr.bf16.mxu0 0
    %4048 = vmatpush1.bf16.msra.mxu0 0
    %4049 = vmatprep.subr.bf16.mxu0 0
    %4050 = vmatpush1.bf16.msra.mxu0 0
    %4051 = vmatprep.subr.bf16.mxu0 0
    %4052 = vmatpush1.bf16.msra.mxu0 0
    %4053 = vmatprep.subr.bf16.mxu0 0
    %4054 = vmatpush1.bf16.msra.mxu0 0
    %4055 = vmatprep.mubr.bf16.mxu0 0
    %4056 = vmatmul.mubr.bf16.gmra.mrb[0].mxu0 %v4021
    %v4057 = vpop.f32.mrb[0].mxu0
    %v4058 = vadd.f32 %v2201, %v4057
    %v4059 = vpop.f32.mrb[0].mxu0
    %v4060 = vpop.f32.mrb[0].mxu0
    %v4061 = vpop.f32.mrb[0].mxu0
    %4062 = vdwg.mxu0
    %4063 = vmatprep.subr.bf16.mxu0 0
    %4064 = vmatpush1.bf16.msra.mxu0 %v111
    %4065 = vmatprep.subr.bf16.mxu0 0
    %4066 = vmatpush1.bf16.msra.mxu0 %v112
    %4067 = vmatprep.subr.bf16.mxu0 0
    %4068 = vmatpush1.bf16.msra.mxu0 0
    %4069 = vmatprep.subr.bf16.mxu0 0
    %4070 = vmatpush1.bf16.msra.mxu0 0
    %4071 = vmatprep.subr.bf16.mxu0 0
    %4072 = vmatpush1.bf16.msra.mxu0 0
    %4073 = vmatprep.subr.bf16.mxu0 0
    %4074 = vmatpush1.bf16.msra.mxu0 0
    %4075 = vmatprep.subr.bf16.mxu0 0
    %4076 = vmatpush1.bf16.msra.mxu0 0
    %4077 = vmatprep.subr.bf16.mxu0 0
    %4078 = vmatpush1.bf16.msra.mxu0 0
    %4079 = vmatprep.subr.bf16.mxu0 0
    %4080 = vmatpush1.bf16.msra.mxu0 0
    %4081 = vmatprep.subr.bf16.mxu0 0
    %4082 = vmatpush1.bf16.msra.mxu0 0
    %4083 = vmatprep.subr.bf16.mxu0 0
    %4084 = vmatpush1.bf16.msra.mxu0 0
    %4085 = vmatprep.subr.bf16.mxu0 0
    %4086 = vmatpush1.bf16.msra.mxu0 0
    %4087 = vmatprep.subr.bf16.mxu0 0
    %4088 = vmatpush1.bf16.msra.mxu0 0
    %4089 = vmatprep.subr.bf16.mxu0 0
    %4090 = vmatpush1.bf16.msra.mxu0 0
    %4091 = vmatprep.subr.bf16.mxu0 0
    %4092 = vmatpush1.bf16.msra.mxu0 0
    %4093 = vmatprep.subr.bf16.mxu0 0
    %4094 = vmatpush1.bf16.msra.mxu0 0
    %4095 = vmatprep.mubr.bf16.mxu0 0
    %4096 = vmatmul.mubr.bf16.gmra.mrb[0].mxu0 %v3823
    %v4097 = vpop.f32.mrb[0].mxu0
    %v4098 = vadd.f32 %v2251, %v4097
    %v4099 = vpop.f32.mrb[0].mxu0
    %v4100 = vpop.f32.mrb[0].mxu0
    %v4101 = vpop.f32.mrb[0].mxu0
    %4102 = vdwg.mxu0
    %v4103 = vadd.f32 %v4058, %v4098
    %v4104 = vxor.u32 %v4103, 2147483648
    %v4105 = vmul.f32 %v4104, 1.442695
    %v4106 = vpow.pop %v4105
    %v4107 = vadd.f32 %v4106, 1.0
    %v4108 = vrcp.pop %v4107
    %v4109 = vmul.f32 1.0, %v4108
    %4111 = vrot.lane.b32.xlu0 %v4098, 64
    %v4112 = vpop.permute.xlu0 %4111
    %v4114 = vmul.f32 %v4109, %v4112
    %4116 = vrot.lane.b32.xlu0 %v4114, 64
    %v4117 = vpop.permute.xlu0 %4116
    %v4119 = vadd.f32 %v4058, %v4117
    %v4120 = vtanh.pop %v4119
    %v4121 = vsub.f32 1.0, %v4109
    %4123 = vrot.lane.b32.xlu0 %v4120, 96
    %v4124 = vpop.permute.xlu0 %4123
    %v4126 = vmul.f32 %v4121, %v4124
    %v4127 = vmul.f32 %v4109, %v3680
    %v4128 = vadd.f32 %v4126, %v4127
    %4130 = vrot.lane.b32.xlu0 %v4128, 96
    %v4131 = vpop.permute.xlu0 %4130
    %v4133 = vsel %vm153, %v4003, %v3996
    %v4135 = vrot.slane %v3816, 4
    %v4136 = vrot.slane %v3817, 3
    %v4137 = vsel %vm153, %v4136, %v4135
    %4138 = vrot.lane.b32.xlu0 %v4137, 64
    %v4139 = vpop.permute.xlu0 %4138
    %v4141 = vsel %vm206, %v4131, %v4133
    %v4142 = vsel %vm2328, %v4141, %v4139
    %v4143 = vpack.c.bf16 %v4142, %v4142
    %v4145 = vsel %vm2337, %v4143, 0
    %4147 = vmatprep.subr.bf16.mxu0 0
    %4148 = vmatpush1.bf16.msra.mxu0 %v125
    %4149 = vmatprep.subr.bf16.mxu0 0
    %4150 = vmatpush1.bf16.msra.mxu0 %v126
    %4151 = vmatprep.subr.bf16.mxu0 0
    %4152 = vmatpush1.bf16.msra.mxu0 %v127
    %4153 = vmatprep.subr.bf16.mxu0 0
    %4154 = vmatpush1.bf16.msra.mxu0 %v128
    %4155 = vmatprep.subr.bf16.mxu0 0
    %4156 = vmatpush1.bf16.msra.mxu0 %v129
    %4157 = vmatprep.subr.bf16.mxu0 0
    %4158 = vmatpush1.bf16.msra.mxu0 0
    %4159 = vmatprep.subr.bf16.mxu0 0
    %4160 = vmatpush1.bf16.msra.mxu0 0
    %4161 = vmatprep.subr.bf16.mxu0 0
    %4162 = vmatpush1.bf16.msra.mxu0 0
    %4163 = vmatprep.subr.bf16.mxu0 0
    %4164 = vmatpush1.bf16.msra.mxu0 0
    %4165 = vmatprep.subr.bf16.mxu0 0
    %4166 = vmatpush1.bf16.msra.mxu0 0
    %4167 = vmatprep.subr.bf16.mxu0 0
    %4168 = vmatpush1.bf16.msra.mxu0 0
    %4169 = vmatprep.subr.bf16.mxu0 0
    %4170 = vmatpush1.bf16.msra.mxu0 0
    %4171 = vmatprep.subr.bf16.mxu0 0
    %4172 = vmatpush1.bf16.msra.mxu0 0
    %4173 = vmatprep.subr.bf16.mxu0 0
    %4174 = vmatpush1.bf16.msra.mxu0 0
    %4175 = vmatprep.subr.bf16.mxu0 0
    %4176 = vmatpush1.bf16.msra.mxu0 0
    %4177 = vmatprep.subr.bf16.mxu0 0
    %4178 = vmatpush1.bf16.msra.mxu0 0
    %4179 = vmatprep.mubr.bf16.mxu0 0
    %4180 = vmatmul.mubr.bf16.gmra.mrb[0].mxu0 %v4145
    %v4181 = vpop.f32.mrb[0].mxu0
    %v4182 = vadd.f32 %v2335, %v4181
    %v4183 = vpop.f32.mrb[0].mxu0
    %v4184 = vpop.f32.mrb[0].mxu0
    %v4185 = vpop.f32.mrb[0].mxu0
    %4186 = vdwg.mxu0
    %v4189 = vunpack.c.l.s4 1966171168
    %v4190 = vunpack.c.0.s8 %v4189
    %v4191 = vlaneseq
    %v4192 = vshrl.u32 %v4191, 7
    %v4193 = vsub.s32 %v4190, %v4192
    %v4194 = vrot.slane %v2376, %v4193
    %v4195 = vcombine.high %v4194, %v4194
    %v4197 = vunpack.c.l.s4 1966171168
    %v4198 = vunpack.c.0.s8 %v4197
    %v4199 = vlaneseq
    %v4200 = vshrl.u32 %v4199, 7
    %v4201 = vsub.s32 %v4198, %v4200
    %v4202 = vrot.slane %v4194, %v4201
    %v4204 = vunpack.c.l.s4 1966171168
    %v4205 = vunpack.c.0.s8 %v4204
    %v4206 = vlaneseq
    %v4207 = vshrl.u32 %v4206, 7
    %v4208 = vsub.s32 %v4205, %v4207
    %v4209 = vrot.slane %v4195, %v4208
    %v4212 = vunpack.c.l.s4 1966171168
    %v4213 = vunpack.c.0.s8 %v4212
    %v4214 = vlaneseq
    %v4215 = vshrl.u32 %v4214, 7
    %v4216 = vsub.s32 %v4213, %v4215
    %v4217 = vrot.slane %v2832, %v4216
    %v4218 = vcombine.high %v4217, %v4217
    %v4220 = vunpack.c.l.s4 1966171168
    %v4221 = vunpack.c.0.s8 %v4220
    %v4222 = vlaneseq
    %v4223 = vshrl.u32 %v4222, 7
    %v4224 = vsub.s32 %v4221, %v4223
    %v4225 = vrot.slane %v4217, %v4224
    %v4227 = vunpack.c.l.s4 1966171168
    %v4228 = vunpack.c.0.s8 %v4227
    %v4229 = vlaneseq
    %v4230 = vshrl.u32 %v4229, 7
    %v4231 = vsub.s32 %v4228, %v4230
    %v4232 = vrot.slane %v4218, %v4231
    %v4235 = vunpack.c.l.s4 1966171168
    %v4236 = vunpack.c.0.s8 %v4235
    %v4237 = vlaneseq
    %v4238 = vshrl.u32 %v4237, 7
    %v4239 = vsub.s32 %v4236, %v4238
    %v4240 = vrot.slane %v3280, %v4239
    %v4241 = vcombine.high %v4240, %v4240
    %v4243 = vunpack.c.l.s4 1966171168
    %v4244 = vunpack.c.0.s8 %v4243
    %v4245 = vlaneseq
    %v4246 = vshrl.u32 %v4245, 7
    %v4247 = vsub.s32 %v4244, %v4246
    %v4248 = vrot.slane %v4240, %v4247
    %v4250 = vunpack.c.l.s4 1966171168
    %v4251 = vunpack.c.0.s8 %v4250
    %v4252 = vlaneseq
    %v4253 = vshrl.u32 %v4252, 7
    %v4254 = vsub.s32 %v4251, %v4253
    %v4255 = vrot.slane %v4241, %v4254
    %v4258 = vunpack.c.l.s4 1966171168
    %v4259 = vunpack.c.0.s8 %v4258
    %v4260 = vlaneseq
    %v4261 = vshrl.u32 %v4260, 7
    %v4262 = vsub.s32 %v4259, %v4261
    %v4263 = vrot.slane %v3734, %v4262
    %v4264 = vcombine.high %v4263, %v4263
    %v4266 = vunpack.c.l.s4 1966171168
    %v4267 = vunpack.c.0.s8 %v4266
    %v4268 = vlaneseq
    %v4269 = vshrl.u32 %v4268, 7
    %v4270 = vsub.s32 %v4267, %v4269
    %v4271 = vrot.slane %v4263, %v4270
    %v4273 = vunpack.c.l.s4 1966171168
    %v4274 = vunpack.c.0.s8 %v4273
    %v4275 = vlaneseq
    %v4276 = vshrl.u32 %v4275, 7
    %v4277 = vsub.s32 %v4274, %v4276
    %v4278 = vrot.slane %v4264, %v4277
    %v4281 = vunpack.c.l.s4 1966171168
    %v4282 = vunpack.c.0.s8 %v4281
    %v4283 = vlaneseq
    %v4284 = vshrl.u32 %v4283, 7
    %v4285 = vsub.s32 %v4282, %v4284
    %v4286 = vrot.slane %v4182, %v4285
    %v4287 = vcombine.high %v4286, %v4286
    %v4289 = vunpack.c.l.s4 1966171168
    %v4290 = vunpack.c.0.s8 %v4289
    %v4291 = vlaneseq
    %v4292 = vshrl.u32 %v4291, 7
    %v4293 = vsub.s32 %v4290, %v4292
    %v4294 = vrot.slane %v4286, %v4293
    %v4296 = vunpack.c.l.s4 1966171168
    %v4297 = vunpack.c.0.s8 %v4296
    %v4298 = vlaneseq
    %v4299 = vshrl.u32 %v4298, 7
    %v4300 = vsub.s32 %v4297, %v4299
    %v4301 = vrot.slane %v4287, %v4300
    %v4302 = vlaneseq
    %v4303 = vshrl.u32 %v4302, 7
    %v4304 = vsub.s32 0, %v4303
    %v4305 = vrot.slane %v4202, %v4304
    %v4306 = vlaneseq
    %v4307 = vshrl.u32 %v4306, 7
    %v4308 = vsub.s32 0, %v4307
    %v4309 = vrot.slane %v4209, %v4308
    %v4312 = vlaneseq
    %v4313 = vshrl.u32 %v4312, 7
    %v4314 = vsub.s32 0, %v4313
    %v4315 = vrot.slane %v4225, %v4314
    %v4316 = vlaneseq
    %v4317 = vshrl.u32 %v4316, 7
    %v4318 = vsub.s32 0, %v4317
    %v4319 = vrot.slane %v4232, %v4318
    %v4322 = vlaneseq
    %v4323 = vshrl.u32 %v4322, 7
    %v4324 = vsub.s32 0, %v4323
    %v4325 = vrot.slane %v4248, %v4324
    %v4326 = vlaneseq
    %v4327 = vshrl.u32 %v4326, 7
    %v4328 = vsub.s32 0, %v4327
    %v4329 = vrot.slane %v4255, %v4328
    %v4332 = vlaneseq
    %v4333 = vshrl.u32 %v4332, 7
    %v4334 = vsub.s32 0, %v4333
    %v4335 = vrot.slane %v4271, %v4334
    %v4336 = vlaneseq
    %v4337 = vshrl.u32 %v4336, 7
    %v4338 = vsub.s32 0, %v4337
    %v4339 = vrot.slane %v4278, %v4338
    %v4342 = vlaneseq
    %v4343 = vshrl.u32 %v4342, 7
    %v4344 = vsub.s32 0, %v4343
    %v4345 = vrot.slane %v4294, %v4344
    %v4346 = vlaneseq
    %v4347 = vshrl.u32 %v4346, 7
    %v4348 = vsub.s32 0, %v4347
    %v4349 = vrot.slane %v4301, %v4348
    %v4352 = vsel %vm1704, 0.0, %v4305
    %v4353 = vsel %vm1704, 0.0, %v4309
    %v4354 = vsel %vm1707, %v4352, %v4315
    %v4355 = vsel %vm1707, %v4353, %v4319
    %v4356 = vsel %vm1710, %v4354, %v4325
    %v4357 = vsel %vm1710, %v4355, %v4329
    %v4358 = vsel %vm1713, %v4356, %v4335
    %v4359 = vsel %vm1713, %v4357, %v4339
    %v4360 = vsel %vm1716, %v4358, %v4345
    %v4361 = vsel %vm1716, %v4359, %v4349
    %vm4362 = vcmask 193536
    %4363 = vst.msk [vmem:[%s18] sm:$0x3f] %vm4362, %v4360
    %4364 = vst.msk [vmem:[%s18 + $0x8] sm:$0x3f] %vm4362, %v4361
    // Predicated region
    $region78: #{seq2seq_forward.1} parent=1 // pred_check
      _
    $region79: #{seq2seq_forward.1} parent=1 // pred_check_branch
      %4366 = sbr.rel (0) target = $region81
    $region80: #{seq2seq_forward.1} parent=1 // pred_region
      _
    $region81: #{seq2seq_forward.1} parent=1 // pred_fallthru
      _
    // Predicated region
    $region82: #{seq2seq_forward.1} parent=1 // pred_check
      _
    $region83: #{seq2seq_forward.1} parent=1 // pred_check_branch
      %4368 = sbr.rel (0) target = $region85
    $region84: #{seq2seq_forward.1} parent=1 // pred_region
      _
    $region85: #{seq2seq_forward.1} parent=1 // pred_fallthru
      _
    %4369 = vsyncpa [#allocation3], 1

</llo_original>
